<compile_context>
chip_gen: v6e
topology: v6e:2x2x1
jax: 0.10.0
libtpu: 0.0.40
codegen_flags: <defaults>
</compile_context>

<pallas_src>
import math
from functools import partial

import jax
import jax.numpy as jnp
from jax.experimental import pallas as pl
from jax.experimental.pallas import tpu as pltpu

# ---------------- synthetic BERT config (small) ----------------
VOCAB = 100
HIDDEN = 32
LAYERS = 2
HEADS = 4
HEAD_DIM = HIDDEN // HEADS
INTER = 64
MAX_POS = 32
TYPE_VOCAB = 2
NUM_LABELS = 2
LN_EPS = 1e-12
BATCH = 2
SEQ = 8

HP = 128   # hidden padded to one full lane tile (lane-dense activations)
IP = 128   # intermediate padded to one full lane tile


def _full_spec(shape):
    nd = len(shape)
    return pl.BlockSpec(shape, lambda *_: (0,) * nd)


# ---------------- fully fused BERT kernel ----------------
def _bert_kernel(emb_ref, bias_ref,
                 emb_g_ref, emb_b_ref,
                 w_qkv_ref, b_qkv_ref, w_ao_ref, b_ao_ref, ln1_g_ref, ln1_b_ref,
                 w_i_ref, b_i_ref, w_o_ref, b_o_ref, ln2_g_ref, ln2_b_ref,
                 w_pool_ref, b_pool_ref, w_cls_ref, b_cls_ref,
                 logits_ref, probs_ref, *, batch, seq):
    f32 = jnp.float32
    lane = jax.lax.broadcasted_iota(jnp.int32, (1, HP), 1)
    feat_mask = lane < HIDDEN                  # valid hidden lanes
    # per-head lane masks (hoisted out of the layer loop)
    head_masks = [((lane >= h * HEAD_DIM) & (lane < (h + 1) * HEAD_DIM)).astype(f32)
                  for h in range(HEADS)]

    def layernorm(h, gamma, beta):
        # h has zeros in padded lanes -> plain sums reduce over the HIDDEN valid features;
        # zero-padded gamma/beta keep the padded lanes of the output zero.
        mu = jnp.sum(h, axis=-1, keepdims=True) * (1.0 / HIDDEN)
        centered = jnp.where(feat_mask, h - mu, 0.0)
        var = jnp.sum(centered * centered, axis=-1, keepdims=True) * (1.0 / HIDDEN)
        return centered * jax.lax.rsqrt(var + LN_EPS) * gamma + beta

    def gelu(y):
        # TODO(synk): HF BERT default is erf-based GELU; tanh approximation differs by ~1e-3.
        c = math.sqrt(2.0 / math.pi)
        return 0.5 * y * (1.0 + jnp.tanh(c * (y + 0.044715 * y * y * y)))

    scale = 1.0 / math.sqrt(HEAD_DIM)
    attn_bias = bias_ref[...]                                   # (B*S, B*S) additive bias

    # --- embedding LayerNorm ---
    x = layernorm(emb_ref[...], emb_g_ref[...], emb_b_ref[...])          # (B*S, HP)

    # --- encoder layers (fully unrolled; everything stays in VMEM/vregs) ---
    for l in range(LAYERS):
        # fused QKV projection: one (B*S,128) @ (128,384) matmul
        qkv = jnp.dot(x, w_qkv_ref[l], preferred_element_type=f32) + b_qkv_ref[l]
        q_all = qkv[:, 0:HP]                    # lane-aligned 128-wide slices
        k_all = qkv[:, HP:2 * HP]
        v_all = qkv[:, 2 * HP:3 * HP]

        ctx = jnp.zeros_like(x)                 # (B*S, HP) multi-head context
        for hm in head_masks:
            # masking Q to this head's lanes makes the full 128-lane contraction equal
            # the per-head (HEAD_DIM) dot product exactly.
            s = jax.lax.dot_general(q_all * hm, k_all,
                                    (((1,), (1,)), ((), ())),
                                    preferred_element_type=f32) * scale + attn_bias
            s = s - jnp.max(s, axis=-1, keepdims=True)
            e = jnp.exp(s)
            p = e / jnp.sum(e, axis=-1, keepdims=True)              # (B*S, B*S)
            ctx = ctx + jnp.dot(p, v_all, preferred_element_type=f32) * hm

        attn_out = jnp.dot(ctx, w_ao_ref[l], preferred_element_type=f32) + b_ao_ref[l]
        x = layernorm(attn_out + x, ln1_g_ref[l], ln1_b_ref[l])

        inter = gelu(jnp.dot(x, w_i_ref[l], preferred_element_type=f32) + b_i_ref[l])
        ffn = jnp.dot(inter, w_o_ref[l], preferred_element_type=f32) + b_o_ref[l]
        x = layernorm(ffn + x, ln2_g_ref[l], ln2_b_ref[l])

    # --- pooler + classifier + softmax (fused tail, all CLS rows at once) ---
    cls = jnp.concatenate([x[b * seq:b * seq + 1, :] for b in range(batch)], axis=0)  # (B,HP)
    pooled = jnp.tanh(
        jnp.dot(cls, w_pool_ref[...], preferred_element_type=f32) + b_pool_ref[...])
    logits = (jnp.dot(pooled, w_cls_ref[...], preferred_element_type=f32)
              + b_cls_ref[...])                                                        # (B, HP)

    label_mask = lane < NUM_LABELS
    ml = jnp.where(label_mask, logits, -1e30)
    m = jnp.max(ml, axis=-1, keepdims=True)
    e = jnp.where(label_mask, jnp.exp(ml - m), 0.0)
    probs = e / jnp.sum(e, axis=-1, keepdims=True)

    logits_ref[...] = logits      # padded: only first NUM_LABELS lanes valid
    probs_ref[...] = probs


# ---------------- deterministic, pre-padded parameter init ----------------
def init_params(key):
    keys = iter(jax.random.split(key, 64))

    def nrm(shape):
        return (0.02 * jax.random.normal(next(keys), shape)).astype(jnp.float32)

    def pad(x, target):
        return jnp.pad(x, [(0, t - s) for s, t in zip(x.shape, target)])

    params = {
        "word_emb": pad(nrm((VOCAB, HIDDEN)), (VOCAB, HP)),
        "pos_emb": pad(nrm((MAX_POS, HIDDEN)), (MAX_POS, HP)),
        "type_emb": pad(nrm((TYPE_VOCAB, HIDDEN)), (TYPE_VOCAB, HP)),
        "emb_ln_g": pad(jnp.ones((1, HIDDEN), jnp.float32), (1, HP)),
        "emb_ln_b": jnp.zeros((1, HP), jnp.float32),
        "w_pool": pad(nrm((HIDDEN, HIDDEN)), (HP, HP)),
        "b_pool": jnp.zeros((1, HP), jnp.float32),
        "w_cls": pad(nrm((HIDDEN, NUM_LABELS)), (HP, HP)),
        "b_cls": jnp.zeros((1, HP), jnp.float32),
    }

    w_qkv, b_qkv, w_ao, b_ao = [], [], [], []
    ln1_g, ln1_b, w_i, b_i, w_o, b_o, ln2_g, ln2_b = ([] for _ in range(8))
    for _ in range(LAYERS):
        wq, wk, wv = nrm((HIDDEN, HIDDEN)), nrm((HIDDEN, HIDDEN)), nrm((HIDDEN, HIDDEN))
        w_qkv.append(jnp.concatenate(
            [pad(wq, (HP, HP)), pad(wk, (HP, HP)), pad(wv, (HP, HP))], axis=1))  # (HP, 3*HP)
        b_qkv.append(jnp.zeros((1, 3 * HP), jnp.float32))
        w_ao.append(pad(nrm((HIDDEN, HIDDEN)), (HP, HP)))
        b_ao.append(jnp.zeros((1, HP), jnp.float32))
        ln1_g.append(pad(jnp.ones((1, HIDDEN), jnp.float32), (1, HP)))
        ln1_b.append(jnp.zeros((1, HP), jnp.float32))
        w_i.append(pad(nrm((HIDDEN, INTER)), (HP, IP)))
        b_i.append(jnp.zeros((1, IP), jnp.float32))
        w_o.append(pad(nrm((INTER, HIDDEN)), (IP, HP)))
        b_o.append(jnp.zeros((1, HP), jnp.float32))
        ln2_g.append(pad(jnp.ones((1, HIDDEN), jnp.float32), (1, HP)))
        ln2_b.append(jnp.zeros((1, HP), jnp.float32))

    params.update({
        "w_qkv": jnp.stack(w_qkv), "b_qkv": jnp.stack(b_qkv),
        "w_ao": jnp.stack(w_ao), "b_ao": jnp.stack(b_ao),
        "ln1_g": jnp.stack(ln1_g), "ln1_b": jnp.stack(ln1_b),
        "w_i": jnp.stack(w_i), "b_i": jnp.stack(b_i),
        "w_o": jnp.stack(w_o), "b_o": jnp.stack(b_o),
        "ln2_g": jnp.stack(ln2_g), "ln2_b": jnp.stack(ln2_b),
    })
    return params


# ---------------- forward (embedding gathers in JAX glue, everything else in ONE kernel) ----------------
@jax.jit
def bert_model_predict(params, batch_seqs, batch_seq_masks, batch_seq_segments):
    b, s = batch_seqs.shape

    we = jnp.take(params["word_emb"], batch_seqs, axis=0)             # (B, S, HP)
    pe = params["pos_emb"][:s][None, :, :]                            # (1, S, HP)
    te = jnp.take(params["type_emb"], batch_seq_segments, axis=0)     # (B, S, HP)
    emb = (we + pe + te).astype(jnp.float32).reshape(b * s, HP)       # zeros in padded lanes

    # additive attention bias over all (B*S, B*S) pairs:
    #   same-batch valid key -> 0, same-batch padded key -> -10000 (HF convention),
    #   cross-batch pair     -> -1e30 (forbidden).
    tok_batch = jnp.repeat(jnp.arange(b, dtype=jnp.int32), s)                      # (B*S,)
    same = tok_batch[:, None] == tok_batch[None, :]
    key_pad = ((1.0 - batch_seq_masks.astype(jnp.float32)) * -10000.0).reshape(b * s)
    attn_bias = jnp.where(same, key_pad[None, :], jnp.float32(-1e30))              # (B*S, B*S)

    args = (emb, attn_bias,
            params["emb_ln_g"], params["emb_ln_b"],
            params["w_qkv"], params["b_qkv"], params["w_ao"], params["b_ao"],
            params["ln1_g"], params["ln1_b"],
            params["w_i"], params["b_i"], params["w_o"], params["b_o"],
            params["ln2_g"], params["ln2_b"],
            params["w_pool"], params["b_pool"], params["w_cls"], params["b_cls"])

    kernel = partial(_bert_kernel, batch=b, seq=s)
    logits_pad, probs_pad = pl.pallas_call(
        kernel,
        out_shape=(jax.ShapeDtypeStruct((b, HP), jnp.float32),
                   jax.ShapeDtypeStruct((b, HP), jnp.float32)),
        grid=(1,),
        in_specs=[_full_spec(a.shape) for a in args],
        out_specs=(_full_spec((b, HP)), _full_spec((b, HP))),
        compiler_params=pltpu.CompilerParams(dimension_semantics=("arbitrary",)),
    )(*args)

    # strip the lane padding: only the first NUM_LABELS columns are valid
    return logits_pad[:, :NUM_LABELS], probs_pad[:, :NUM_LABELS]


# ---------------- pure-JAX reference (same math, unpadded) ----------------
def bert_reference(params, batch_seqs, batch_seq_masks, batch_seq_segments):
    b, s = batch_seqs.shape
    we = jnp.take(params["word_emb"][:, :HIDDEN], batch_seqs, axis=0)
    pe = params["pos_emb"][:s, :HIDDEN][None]
    te = jnp.take(params["type_emb"][:, :HIDDEN], batch_seq_segments, axis=0)
    h = we + pe + te                                                   # (B, S, HIDDEN)

    def ln(x, g, bta):
        mu = x.mean(-1, keepdims=True)
        var = ((x - mu) ** 2).mean(-1, keepdims=True)
        return (x - mu) / jnp.sqrt(var + LN_EPS) * g + bta

    def gelu(y):
        c = math.sqrt(2.0 / math.pi)
        return 0.5 * y * (1.0 + jnp.tanh(c * (y + 0.044715 * y ** 3)))

    x = ln(h, params["emb_ln_g"][0, :HIDDEN], params["emb_ln_b"][0, :HIDDEN])
    add_mask = (1.0 - batch_seq_masks.astype(jnp.float32)) * -10000.0  # (B, S)

    for l in range(LAYERS):
        wqkv = params["w_qkv"][l]
        wq = wqkv[:HIDDEN, 0:HIDDEN]
        wk = wqkv[:HIDDEN, HP:HP + HIDDEN]
        wv = wqkv[:HIDDEN, 2 * HP:2 * HP + HIDDEN]
        bqkv = params["b_qkv"][l]
        q = x @ wq + bqkv[0, 0:HIDDEN]
        k = x @ wk + bqkv[0, HP:HP + HIDDEN]
        v = x @ wv + bqkv[0, 2 * HP:2 * HP + HIDDEN]
        q = q.reshape(b, s, HEADS, HEAD_DIM).transpose(0, 2, 1, 3)
        k = k.reshape(b, s, HEADS, HEAD_DIM).transpose(0, 2, 1, 3)
        v = v.reshape(b, s, HEADS, HEAD_DIM).transpose(0, 2, 1, 3)
        sc = jnp.einsum('bhqd,bhkd->bhqk', q, k) / math.sqrt(HEAD_DIM) + add_mask[:, None, None, :]
        p = jax.nn.softmax(sc, axis=-1)
        ctx = jnp.einsum('bhqk,bhkd->bhqd', p, v).transpose(0, 2, 1, 3).reshape(b, s, HIDDEN)
        ao = ctx @ params["w_ao"][l][:HIDDEN, :HIDDEN] + params["b_ao"][l][0, :HIDDEN]
        x = ln(ao + x, params["ln1_g"][l][0, :HIDDEN], params["ln1_b"][l][0, :HIDDEN])
        it = gelu(x @ params["w_i"][l][:HIDDEN, :INTER] + params["b_i"][l][0, :INTER])
        ff = it @ params["w_o"][l][:INTER, :HIDDEN] + params["b_o"][l][0, :HIDDEN]
        x = ln(ff + x, params["ln2_g"][l][0, :HIDDEN], params["ln2_b"][l][0, :HIDDEN])

    cls = x[:, 0, :]
    pooled = jnp.tanh(cls @ params["w_pool"][:HIDDEN, :HIDDEN] + params["b_pool"][0, :HIDDEN])
    logits = pooled @ params["w_cls"][:HIDDEN, :NUM_LABELS] + params["b_cls"][0, :NUM_LABELS]
    probs = jax.nn.softmax(logits, axis=-1)
    return logits, probs


# ---------------- main ----------------
if __name__ == "__main__":
    root = jax.random.PRNGKey(0)
    k_params, k_ids = jax.random.split(root, 2)

    params = init_params(k_params)

    batch_seqs = jax.random.randint(k_ids, (BATCH, SEQ), 0, VOCAB, dtype=jnp.int32)
    # attention mask: last two tokens of sample 1 are padding
    batch_seq_masks = jnp.array(
        [[1] * SEQ, [1] * (SEQ - 2) + [0, 0]], dtype=jnp.int32)
    # token type ids: first half segment 0, second half segment 1
    batch_seq_segments = jnp.concatenate(
        [jnp.zeros((BATCH, SEQ // 2), jnp.int32),
         jnp.ones((BATCH, SEQ // 2), jnp.int32)], axis=1)

    logits, probabilities = bert_model_predict(
        params, batch_seqs, batch_seq_masks, batch_seq_segments)
    jax.block_until_ready((logits, probabilities))

    assert logits.shape == (BATCH, NUM_LABELS)
    assert probabilities.shape == (BATCH, NUM_LABELS)
    assert bool(jnp.all(jnp.isfinite(logits)))
    assert bool(jnp.allclose(jnp.sum(probabilities, axis=-1), 1.0, atol=1e-5))

    ref_logits, ref_probs = bert_reference(
        params, batch_seqs, batch_seq_masks, batch_seq_segments)
    assert bool(jnp.allclose(logits, ref_logits, atol=1e-3, rtol=1e-3))
    assert bool(jnp.allclose(probabilities, ref_probs, atol=1e-3, rtol=1e-3))

    print("KERNEL_OK")
</pallas_src>

<mosaic_0001>
module attributes {stable_mosaic.version = 11 : i64} {
  func.func @_bert_kernel(%arg0: i32, %arg1: memref<16x128xf32, #tpu.memory_space<vmem>>, %arg2: memref<16x16xf32, #tpu.memory_space<vmem>>, %arg3: memref<1x128xf32, #tpu.memory_space<vmem>>, %arg4: memref<1x128xf32, #tpu.memory_space<vmem>>, %arg5: memref<2x128x384xf32, #tpu.memory_space<vmem>>, %arg6: memref<2x1x384xf32, #tpu.memory_space<vmem>>, %arg7: memref<2x128x128xf32, #tpu.memory_space<vmem>>, %arg8: memref<2x1x128xf32, #tpu.memory_space<vmem>>, %arg9: memref<2x1x128xf32, #tpu.memory_space<vmem>>, %arg10: memref<2x1x128xf32, #tpu.memory_space<vmem>>, %arg11: memref<2x128x128xf32, #tpu.memory_space<vmem>>, %arg12: memref<2x1x128xf32, #tpu.memory_space<vmem>>, %arg13: memref<2x128x128xf32, #tpu.memory_space<vmem>>, %arg14: memref<2x1x128xf32, #tpu.memory_space<vmem>>, %arg15: memref<2x1x128xf32, #tpu.memory_space<vmem>>, %arg16: memref<2x1x128xf32, #tpu.memory_space<vmem>>, %arg17: memref<128x128xf32, #tpu.memory_space<vmem>>, %arg18: memref<1x128xf32, #tpu.memory_space<vmem>>, %arg19: memref<128x128xf32, #tpu.memory_space<vmem>>, %arg20: memref<1x128xf32, #tpu.memory_space<vmem>>, %arg21: memref<2x128xf32, #tpu.memory_space<vmem>>, %arg22: memref<2x128xf32, #tpu.memory_space<vmem>>) attributes {dimension_semantics = [#tpu.dimension_semantics<arbitrary>], iteration_bounds = array<i64: 1>, scalar_prefetch = 0 : i64, scratch_operands = 0 : i64, tpu.core_type = #tpu.core_type<tc>, window_params = [{pipeline_mode = #tpu.pipeline_mode<synchronous>, transform_indices = @transform_0, window_bounds = array<i64: 16, 128>}, {pipeline_mode = #tpu.pipeline_mode<synchronous>, transform_indices = @transform_1, window_bounds = array<i64: 16, 16>}, {pipeline_mode = #tpu.pipeline_mode<synchronous>, transform_indices = @transform_2, window_bounds = array<i64: 1, 128>}, {pipeline_mode = #tpu.pipeline_mode<synchronous>, transform_indices = @transform_3, window_bounds = array<i64: 1, 128>}, {pipeline_mode = #tpu.pipeline_mode<synchronous>, transform_indices = @transform_4, window_bounds = array<i64: 2, 128, 384>}, {pipeline_mode = #tpu.pipeline_mode<synchronous>, transform_indices = @transform_5, window_bounds = array<i64: 2, 1, 384>}, {pipeline_mode = #tpu.pipeline_mode<synchronous>, transform_indices = @transform_6, window_bounds = array<i64: 2, 128, 128>}, {pipeline_mode = #tpu.pipeline_mode<synchronous>, transform_indices = @transform_7, window_bounds = array<i64: 2, 1, 128>}, {pipeline_mode = #tpu.pipeline_mode<synchronous>, transform_indices = @transform_8, window_bounds = array<i64: 2, 1, 128>}, {pipeline_mode = #tpu.pipeline_mode<synchronous>, transform_indices = @transform_9, window_bounds = array<i64: 2, 1, 128>}, {pipeline_mode = #tpu.pipeline_mode<synchronous>, transform_indices = @transform_10, window_bounds = array<i64: 2, 128, 128>}, {pipeline_mode = #tpu.pipeline_mode<synchronous>, transform_indices = @transform_11, window_bounds = array<i64: 2, 1, 128>}, {pipeline_mode = #tpu.pipeline_mode<synchronous>, transform_indices = @transform_12, window_bounds = array<i64: 2, 128, 128>}, {pipeline_mode = #tpu.pipeline_mode<synchronous>, transform_indices = @transform_13, window_bounds = array<i64: 2, 1, 128>}, {pipeline_mode = #tpu.pipeline_mode<synchronous>, transform_indices = @transform_14, window_bounds = array<i64: 2, 1, 128>}, {pipeline_mode = #tpu.pipeline_mode<synchronous>, transform_indices = @transform_15, window_bounds = array<i64: 2, 1, 128>}, {pipeline_mode = #tpu.pipeline_mode<synchronous>, transform_indices = @transform_16, window_bounds = array<i64: 128, 128>}, {pipeline_mode = #tpu.pipeline_mode<synchronous>, transform_indices = @transform_17, window_bounds = array<i64: 1, 128>}, {pipeline_mode = #tpu.pipeline_mode<synchronous>, transform_indices = @transform_18, window_bounds = array<i64: 128, 128>}, {pipeline_mode = #tpu.pipeline_mode<synchronous>, transform_indices = @transform_19, window_bounds = array<i64: 1, 128>}, {pipeline_mode = #tpu.pipeline_mode<synchronous>, transform_indices = @transform_20, window_bounds = array<i64: 2, 128>}, {pipeline_mode = #tpu.pipeline_mode<synchronous>, transform_indices = @transform_21, window_bounds = array<i64: 2, 128>}]} {
    %0 = tpu.iota {dimensions = array<i32: 1>} : vector<1x128xi32>
    %c32_i32 = arith.constant 32 : i32
    %1 = vector.broadcast %c32_i32 : i32 to vector<1x128xi32>
    %2 = arith.cmpi slt, %0, %1 : vector<1x128xi32>
    %c0_i32 = arith.constant 0 : i32
    %3 = vector.broadcast %c0_i32 : i32 to vector<1x128xi32>
    %4 = arith.cmpi sge, %0, %3 : vector<1x128xi32>
    %c8_i32 = arith.constant 8 : i32
    %5 = vector.broadcast %c8_i32 : i32 to vector<1x128xi32>
    %6 = arith.cmpi slt, %0, %5 : vector<1x128xi32>
    %7 = arith.andi %4, %6 : vector<1x128xi1>
    %8 = arith.extui %7 : vector<1x128xi1> to vector<1x128xi32>
    %9 = arith.sitofp %8 : vector<1x128xi32> to vector<1x128xf32>
    %c8_i32_0 = arith.constant 8 : i32
    %10 = vector.broadcast %c8_i32_0 : i32 to vector<1x128xi32>
    %11 = arith.cmpi sge, %0, %10 : vector<1x128xi32>
    %c16_i32 = arith.constant 16 : i32
    %12 = vector.broadcast %c16_i32 : i32 to vector<1x128xi32>
    %13 = arith.cmpi slt, %0, %12 : vector<1x128xi32>
    %14 = arith.andi %11, %13 : vector<1x128xi1>
    %15 = arith.extui %14 : vector<1x128xi1> to vector<1x128xi32>
    %16 = arith.sitofp %15 : vector<1x128xi32> to vector<1x128xf32>
    %c16_i32_1 = arith.constant 16 : i32
    %17 = vector.broadcast %c16_i32_1 : i32 to vector<1x128xi32>
    %18 = arith.cmpi sge, %0, %17 : vector<1x128xi32>
    %c24_i32 = arith.constant 24 : i32
    %19 = vector.broadcast %c24_i32 : i32 to vector<1x128xi32>
    %20 = arith.cmpi slt, %0, %19 : vector<1x128xi32>
    %21 = arith.andi %18, %20 : vector<1x128xi1>
    %22 = arith.extui %21 : vector<1x128xi1> to vector<1x128xi32>
    %23 = arith.sitofp %22 : vector<1x128xi32> to vector<1x128xf32>
    %c24_i32_2 = arith.constant 24 : i32
    %24 = vector.broadcast %c24_i32_2 : i32 to vector<1x128xi32>
    %25 = arith.cmpi sge, %0, %24 : vector<1x128xi32>
    %c32_i32_3 = arith.constant 32 : i32
    %26 = vector.broadcast %c32_i32_3 : i32 to vector<1x128xi32>
    %27 = arith.cmpi slt, %0, %26 : vector<1x128xi32>
    %28 = arith.andi %25, %27 : vector<1x128xi1>
    %29 = arith.extui %28 : vector<1x128xi1> to vector<1x128xi32>
    %30 = arith.sitofp %29 : vector<1x128xi32> to vector<1x128xf32>
    %c0 = arith.constant 0 : index
    %c0_4 = arith.constant 0 : index
    %31 = vector.load %arg2[%c0, %c0_4] : memref<16x16xf32, #tpu.memory_space<vmem>>, vector<16x16xf32>
    %c0_5 = arith.constant 0 : index
    %c0_6 = arith.constant 0 : index
    %32 = vector.load %arg1[%c0_5, %c0_6] : memref<16x128xf32, #tpu.memory_space<vmem>>, vector<16x128xf32>
    %c0_7 = arith.constant 0 : index
    %c0_8 = arith.constant 0 : index
    %33 = vector.load %arg3[%c0_7, %c0_8] : memref<1x128xf32, #tpu.memory_space<vmem>>, vector<1x128xf32>
    %c0_9 = arith.constant 0 : index
    %c0_10 = arith.constant 0 : index
    %34 = vector.load %arg4[%c0_9, %c0_10] : memref<1x128xf32, #tpu.memory_space<vmem>>, vector<1x128xf32>
    %cst = arith.constant dense<0.000000e+00> : vector<16xf32>
    %35 = vector.multi_reduction <add>, %32, %cst [1] : vector<16x128xf32> to vector<16xf32>
    %36 = vector.shape_cast %35 : vector<16xf32> to vector<16x1xf32>
    %cst_11 = arith.constant 3.125000e-02 : f32
    %37 = vector.broadcast %cst_11 : f32 to vector<16x1xf32>
    %38 = arith.mulf %36, %37 : vector<16x1xf32>
    %39 = vector.broadcast %38 : vector<16x1xf32> to vector<16x128xf32>
    %40 = arith.subf %32, %39 : vector<16x128xf32>
    %cst_12 = arith.constant 0.000000e+00 : f32
    %41 = vector.shape_cast %2 : vector<1x128xi1> to vector<1x128xi1>
    %42 = vector.broadcast %41 : vector<1x128xi1> to vector<16x128xi1>
    %43 = vector.broadcast %cst_12 : f32 to vector<16x128xf32>
    %44 = arith.select %42, %40, %43 : vector<16x128xi1>, vector<16x128xf32>
    %45 = arith.mulf %44, %44 : vector<16x128xf32>
    %cst_13 = arith.constant dense<0.000000e+00> : vector<16xf32>
    %46 = vector.multi_reduction <add>, %45, %cst_13 [1] : vector<16x128xf32> to vector<16xf32>
    %47 = vector.shape_cast %46 : vector<16xf32> to vector<16x1xf32>
    %cst_14 = arith.constant 3.125000e-02 : f32
    %48 = vector.broadcast %cst_14 : f32 to vector<16x1xf32>
    %49 = arith.mulf %47, %48 : vector<16x1xf32>
    %cst_15 = arith.constant 9.99999996E-13 : f32
    %50 = vector.broadcast %cst_15 : f32 to vector<16x1xf32>
    %51 = arith.addf %49, %50 : vector<16x1xf32>
    %52 = math.rsqrt %51 : vector<16x1xf32>
    %53 = vector.broadcast %52 : vector<16x1xf32> to vector<16x128xf32>
    %54 = arith.mulf %44, %53 : vector<16x128xf32>
    %55 = vector.broadcast %33 : vector<1x128xf32> to vector<16x128xf32>
    %56 = arith.mulf %54, %55 : vector<16x128xf32>
    %57 = vector.broadcast %34 : vector<1x128xf32> to vector<16x128xf32>
    %58 = arith.addf %56, %57 : vector<16x128xf32>
    %c0_16 = arith.constant 0 : index
    %c0_17 = arith.constant 0 : index
    %c0_18 = arith.constant 0 : index
    %59 = vector.load %arg5[%c0_16, %c0_17, %c0_18] : memref<2x128x384xf32, #tpu.memory_space<vmem>>, vector<1x128x384xf32>
    %60 = vector.shape_cast %59 : vector<1x128x384xf32> to vector<128x384xf32>
    %cst_19 = arith.constant dense<0.000000e+00> : vector<16x384xf32>
    %61 = tpu.matmul %58, %60, %cst_19 {dimension_numbers = #tpu.dot_dimension_numbers<[1], [0], [0], [1], [0, 0, 1, 1], [], []>} : vector<16x128xf32>, vector<128x384xf32>, vector<16x384xf32> -> vector<16x384xf32>
    %c0_20 = arith.constant 0 : index
    %c0_21 = arith.constant 0 : index
    %c0_22 = arith.constant 0 : index
    %62 = vector.load %arg6[%c0_20, %c0_21, %c0_22] : memref<2x1x384xf32, #tpu.memory_space<vmem>>, vector<1x1x384xf32>
    %63 = vector.shape_cast %62 : vector<1x1x384xf32> to vector<1x384xf32>
    %64 = vector.broadcast %63 : vector<1x384xf32> to vector<16x384xf32>
    %65 = arith.addf %61, %64 : vector<16x384xf32>
    %66 = vector.extract_strided_slice %65 {offsets = [0, 0], sizes = [16, 128], strides = [1, 1]} : vector<16x384xf32> to vector<16x128xf32>
    %67 = vector.extract_strided_slice %65 {offsets = [0, 128], sizes = [16, 128], strides = [1, 1]} : vector<16x384xf32> to vector<16x128xf32>
    %68 = vector.extract_strided_slice %65 {offsets = [0, 256], sizes = [16, 128], strides = [1, 1]} : vector<16x384xf32> to vector<16x128xf32>
    %cst_23 = arith.constant 0.000000e+00 : f32
    %69 = vector.broadcast %cst_23 : f32 to vector<16x128xf32>
    %70 = vector.broadcast %9 : vector<1x128xf32> to vector<16x128xf32>
    %71 = arith.mulf %66, %70 : vector<16x128xf32>
    %cst_24 = arith.constant dense<0.000000e+00> : vector<16x16xf32>
    %72 = tpu.matmul %71, %67, %cst_24 {dimension_numbers = #tpu.dot_dimension_numbers<[1], [1], [0], [0], [0, 0, 1, 0], [], []>} : vector<16x128xf32>, vector<16x128xf32>, vector<16x16xf32> -> vector<16x16xf32>
    %cst_25 = arith.constant 0.353553385 : f32
    %73 = vector.broadcast %cst_25 : f32 to vector<16x16xf32>
    %74 = arith.mulf %72, %73 : vector<16x16xf32>
    %75 = arith.addf %74, %31 : vector<16x16xf32>
    %cst_26 = arith.constant dense<0xFF800000> : vector<16xf32>
    %76 = vector.multi_reduction <maximumf>, %75, %cst_26 [1] : vector<16x16xf32> to vector<16xf32>
    %77 = vector.shape_cast %76 : vector<16xf32> to vector<16x1xf32>
    %78 = vector.broadcast %77 : vector<16x1xf32> to vector<16x16xf32>
    %79 = arith.subf %75, %78 : vector<16x16xf32>
    %80 = math.exp %79 : vector<16x16xf32>
    %cst_27 = arith.constant dense<0.000000e+00> : vector<16xf32>
    %81 = vector.multi_reduction <add>, %80, %cst_27 [1] : vector<16x16xf32> to vector<16xf32>
    %82 = vector.shape_cast %81 : vector<16xf32> to vector<16x1xf32>
    %83 = vector.broadcast %82 : vector<16x1xf32> to vector<16x16xf32>
    %84 = arith.divf %80, %83 : vector<16x16xf32>
    %cst_28 = arith.constant dense<0.000000e+00> : vector<16x128xf32>
    %85 = tpu.matmul %84, %68, %cst_28 {dimension_numbers = #tpu.dot_dimension_numbers<[1], [0], [0], [1], [0, 0, 1, 1], [], []>} : vector<16x16xf32>, vector<16x128xf32>, vector<16x128xf32> -> vector<16x128xf32>
    %86 = vector.broadcast %9 : vector<1x128xf32> to vector<16x128xf32>
    %87 = arith.mulf %85, %86 : vector<16x128xf32>
    %88 = arith.addf %69, %87 : vector<16x128xf32>
    %89 = vector.broadcast %16 : vector<1x128xf32> to vector<16x128xf32>
    %90 = arith.mulf %66, %89 : vector<16x128xf32>
    %cst_29 = arith.constant dense<0.000000e+00> : vector<16x16xf32>
    %91 = tpu.matmul %90, %67, %cst_29 {dimension_numbers = #tpu.dot_dimension_numbers<[1], [1], [0], [0], [0, 0, 1, 0], [], []>} : vector<16x128xf32>, vector<16x128xf32>, vector<16x16xf32> -> vector<16x16xf32>
    %cst_30 = arith.constant 0.353553385 : f32
    %92 = vector.broadcast %cst_30 : f32 to vector<16x16xf32>
    %93 = arith.mulf %91, %92 : vector<16x16xf32>
    %94 = arith.addf %93, %31 : vector<16x16xf32>
    %cst_31 = arith.constant dense<0xFF800000> : vector<16xf32>
    %95 = vector.multi_reduction <maximumf>, %94, %cst_31 [1] : vector<16x16xf32> to vector<16xf32>
    %96 = vector.shape_cast %95 : vector<16xf32> to vector<16x1xf32>
    %97 = vector.broadcast %96 : vector<16x1xf32> to vector<16x16xf32>
    %98 = arith.subf %94, %97 : vector<16x16xf32>
    %99 = math.exp %98 : vector<16x16xf32>
    %cst_32 = arith.constant dense<0.000000e+00> : vector<16xf32>
    %100 = vector.multi_reduction <add>, %99, %cst_32 [1] : vector<16x16xf32> to vector<16xf32>
    %101 = vector.shape_cast %100 : vector<16xf32> to vector<16x1xf32>
    %102 = vector.broadcast %101 : vector<16x1xf32> to vector<16x16xf32>
    %103 = arith.divf %99, %102 : vector<16x16xf32>
    %cst_33 = arith.constant dense<0.000000e+00> : vector<16x128xf32>
    %104 = tpu.matmul %103, %68, %cst_33 {dimension_numbers = #tpu.dot_dimension_numbers<[1], [0], [0], [1], [0, 0, 1, 1], [], []>} : vector<16x16xf32>, vector<16x128xf32>, vector<16x128xf32> -> vector<16x128xf32>
    %105 = vector.broadcast %16 : vector<1x128xf32> to vector<16x128xf32>
    %106 = arith.mulf %104, %105 : vector<16x128xf32>
    %107 = arith.addf %88, %106 : vector<16x128xf32>
    %108 = vector.broadcast %23 : vector<1x128xf32> to vector<16x128xf32>
    %109 = arith.mulf %66, %108 : vector<16x128xf32>
    %cst_34 = arith.constant dense<0.000000e+00> : vector<16x16xf32>
    %110 = tpu.matmul %109, %67, %cst_34 {dimension_numbers = #tpu.dot_dimension_numbers<[1], [1], [0], [0], [0, 0, 1, 0], [], []>} : vector<16x128xf32>, vector<16x128xf32>, vector<16x16xf32> -> vector<16x16xf32>
    %cst_35 = arith.constant 0.353553385 : f32
    %111 = vector.broadcast %cst_35 : f32 to vector<16x16xf32>
    %112 = arith.mulf %110, %111 : vector<16x16xf32>
    %113 = arith.addf %112, %31 : vector<16x16xf32>
    %cst_36 = arith.constant dense<0xFF800000> : vector<16xf32>
    %114 = vector.multi_reduction <maximumf>, %113, %cst_36 [1] : vector<16x16xf32> to vector<16xf32>
    %115 = vector.shape_cast %114 : vector<16xf32> to vector<16x1xf32>
    %116 = vector.broadcast %115 : vector<16x1xf32> to vector<16x16xf32>
    %117 = arith.subf %113, %116 : vector<16x16xf32>
    %118 = math.exp %117 : vector<16x16xf32>
    %cst_37 = arith.constant dense<0.000000e+00> : vector<16xf32>
    %119 = vector.multi_reduction <add>, %118, %cst_37 [1] : vector<16x16xf32> to vector<16xf32>
    %120 = vector.shape_cast %119 : vector<16xf32> to vector<16x1xf32>
    %121 = vector.broadcast %120 : vector<16x1xf32> to vector<16x16xf32>
    %122 = arith.divf %118, %121 : vector<16x16xf32>
    %cst_38 = arith.constant dense<0.000000e+00> : vector<16x128xf32>
    %123 = tpu.matmul %122, %68, %cst_38 {dimension_numbers = #tpu.dot_dimension_numbers<[1], [0], [0], [1], [0, 0, 1, 1], [], []>} : vector<16x16xf32>, vector<16x128xf32>, vector<16x128xf32> -> vector<16x128xf32>
    %124 = vector.broadcast %23 : vector<1x128xf32> to vector<16x128xf32>
    %125 = arith.mulf %123, %124 : vector<16x128xf32>
    %126 = arith.addf %107, %125 : vector<16x128xf32>
    %127 = vector.broadcast %30 : vector<1x128xf32> to vector<16x128xf32>
    %128 = arith.mulf %66, %127 : vector<16x128xf32>
    %cst_39 = arith.constant dense<0.000000e+00> : vector<16x16xf32>
    %129 = tpu.matmul %128, %67, %cst_39 {dimension_numbers = #tpu.dot_dimension_numbers<[1], [1], [0], [0], [0, 0, 1, 0], [], []>} : vector<16x128xf32>, vector<16x128xf32>, vector<16x16xf32> -> vector<16x16xf32>
    %cst_40 = arith.constant 0.353553385 : f32
    %130 = vector.broadcast %cst_40 : f32 to vector<16x16xf32>
    %131 = arith.mulf %129, %130 : vector<16x16xf32>
    %132 = arith.addf %131, %31 : vector<16x16xf32>
    %cst_41 = arith.constant dense<0xFF800000> : vector<16xf32>
    %133 = vector.multi_reduction <maximumf>, %132, %cst_41 [1] : vector<16x16xf32> to vector<16xf32>
    %134 = vector.shape_cast %133 : vector<16xf32> to vector<16x1xf32>
    %135 = vector.broadcast %134 : vector<16x1xf32> to vector<16x16xf32>
    %136 = arith.subf %132, %135 : vector<16x16xf32>
    %137 = math.exp %136 : vector<16x16xf32>
    %cst_42 = arith.constant dense<0.000000e+00> : vector<16xf32>
    %138 = vector.multi_reduction <add>, %137, %cst_42 [1] : vector<16x16xf32> to vector<16xf32>
    %139 = vector.shape_cast %138 : vector<16xf32> to vector<16x1xf32>
    %140 = vector.broadcast %139 : vector<16x1xf32> to vector<16x16xf32>
    %141 = arith.divf %137, %140 : vector<16x16xf32>
    %cst_43 = arith.constant dense<0.000000e+00> : vector<16x128xf32>
    %142 = tpu.matmul %141, %68, %cst_43 {dimension_numbers = #tpu.dot_dimension_numbers<[1], [0], [0], [1], [0, 0, 1, 1], [], []>} : vector<16x16xf32>, vector<16x128xf32>, vector<16x128xf32> -> vector<16x128xf32>
    %143 = vector.broadcast %30 : vector<1x128xf32> to vector<16x128xf32>
    %144 = arith.mulf %142, %143 : vector<16x128xf32>
    %145 = arith.addf %126, %144 : vector<16x128xf32>
    %c0_44 = arith.constant 0 : index
    %c0_45 = arith.constant 0 : index
    %c0_46 = arith.constant 0 : index
    %146 = vector.load %arg7[%c0_44, %c0_45, %c0_46] : memref<2x128x128xf32, #tpu.memory_space<vmem>>, vector<1x128x128xf32>
    %147 = vector.shape_cast %146 : vector<1x128x128xf32> to vector<128x128xf32>
    %cst_47 = arith.constant dense<0.000000e+00> : vector<16x128xf32>
    %148 = tpu.matmul %145, %147, %cst_47 {dimension_numbers = #tpu.dot_dimension_numbers<[1], [0], [0], [1], [0, 0, 1, 1], [], []>} : vector<16x128xf32>, vector<128x128xf32>, vector<16x128xf32> -> vector<16x128xf32>
    %c0_48 = arith.constant 0 : index
    %c0_49 = arith.constant 0 : index
    %c0_50 = arith.constant 0 : index
    %149 = vector.load %arg8[%c0_48, %c0_49, %c0_50] : memref<2x1x128xf32, #tpu.memory_space<vmem>>, vector<1x1x128xf32>
    %150 = vector.shape_cast %149 : vector<1x1x128xf32> to vector<1x128xf32>
    %151 = vector.broadcast %150 : vector<1x128xf32> to vector<16x128xf32>
    %152 = arith.addf %148, %151 : vector<16x128xf32>
    %153 = arith.addf %152, %58 : vector<16x128xf32>
    %c0_51 = arith.constant 0 : index
    %c0_52 = arith.constant 0 : index
    %c0_53 = arith.constant 0 : index
    %154 = vector.load %arg9[%c0_51, %c0_52, %c0_53] : memref<2x1x128xf32, #tpu.memory_space<vmem>>, vector<1x1x128xf32>
    %155 = vector.shape_cast %154 : vector<1x1x128xf32> to vector<1x128xf32>
    %c0_54 = arith.constant 0 : index
    %c0_55 = arith.constant 0 : index
    %c0_56 = arith.constant 0 : index
    %156 = vector.load %arg10[%c0_54, %c0_55, %c0_56] : memref<2x1x128xf32, #tpu.memory_space<vmem>>, vector<1x1x128xf32>
    %157 = vector.shape_cast %156 : vector<1x1x128xf32> to vector<1x128xf32>
    %cst_57 = arith.constant dense<0.000000e+00> : vector<16xf32>
    %158 = vector.multi_reduction <add>, %153, %cst_57 [1] : vector<16x128xf32> to vector<16xf32>
    %159 = vector.shape_cast %158 : vector<16xf32> to vector<16x1xf32>
    %cst_58 = arith.constant 3.125000e-02 : f32
    %160 = vector.broadcast %cst_58 : f32 to vector<16x1xf32>
    %161 = arith.mulf %159, %160 : vector<16x1xf32>
    %162 = vector.broadcast %161 : vector<16x1xf32> to vector<16x128xf32>
    %163 = arith.subf %153, %162 : vector<16x128xf32>
    %cst_59 = arith.constant 0.000000e+00 : f32
    %164 = vector.shape_cast %2 : vector<1x128xi1> to vector<1x128xi1>
    %165 = vector.broadcast %164 : vector<1x128xi1> to vector<16x128xi1>
    %166 = vector.broadcast %cst_59 : f32 to vector<16x128xf32>
    %167 = arith.select %165, %163, %166 : vector<16x128xi1>, vector<16x128xf32>
    %168 = arith.mulf %167, %167 : vector<16x128xf32>
    %cst_60 = arith.constant dense<0.000000e+00> : vector<16xf32>
    %169 = vector.multi_reduction <add>, %168, %cst_60 [1] : vector<16x128xf32> to vector<16xf32>
    %170 = vector.shape_cast %169 : vector<16xf32> to vector<16x1xf32>
    %cst_61 = arith.constant 3.125000e-02 : f32
    %171 = vector.broadcast %cst_61 : f32 to vector<16x1xf32>
    %172 = arith.mulf %170, %171 : vector<16x1xf32>
    %cst_62 = arith.constant 9.99999996E-13 : f32
    %173 = vector.broadcast %cst_62 : f32 to vector<16x1xf32>
    %174 = arith.addf %172, %173 : vector<16x1xf32>
    %175 = math.rsqrt %174 : vector<16x1xf32>
    %176 = vector.broadcast %175 : vector<16x1xf32> to vector<16x128xf32>
    %177 = arith.mulf %167, %176 : vector<16x128xf32>
    %178 = vector.broadcast %155 : vector<1x128xf32> to vector<16x128xf32>
    %179 = arith.mulf %177, %178 : vector<16x128xf32>
    %180 = vector.broadcast %157 : vector<1x128xf32> to vector<16x128xf32>
    %181 = arith.addf %179, %180 : vector<16x128xf32>
    %c0_63 = arith.constant 0 : index
    %c0_64 = arith.constant 0 : index
    %c0_65 = arith.constant 0 : index
    %182 = vector.load %arg11[%c0_63, %c0_64, %c0_65] : memref<2x128x128xf32, #tpu.memory_space<vmem>>, vector<1x128x128xf32>
    %183 = vector.shape_cast %182 : vector<1x128x128xf32> to vector<128x128xf32>
    %cst_66 = arith.constant dense<0.000000e+00> : vector<16x128xf32>
    %184 = tpu.matmul %181, %183, %cst_66 {dimension_numbers = #tpu.dot_dimension_numbers<[1], [0], [0], [1], [0, 0, 1, 1], [], []>} : vector<16x128xf32>, vector<128x128xf32>, vector<16x128xf32> -> vector<16x128xf32>
    %c0_67 = arith.constant 0 : index
    %c0_68 = arith.constant 0 : index
    %c0_69 = arith.constant 0 : index
    %185 = vector.load %arg12[%c0_67, %c0_68, %c0_69] : memref<2x1x128xf32, #tpu.memory_space<vmem>>, vector<1x1x128xf32>
    %186 = vector.shape_cast %185 : vector<1x1x128xf32> to vector<1x128xf32>
    %187 = vector.broadcast %186 : vector<1x128xf32> to vector<16x128xf32>
    %188 = arith.addf %184, %187 : vector<16x128xf32>
    %cst_70 = arith.constant 5.000000e-01 : f32
    %189 = vector.broadcast %cst_70 : f32 to vector<16x128xf32>
    %190 = arith.mulf %189, %188 : vector<16x128xf32>
    %cst_71 = arith.constant 4.471500e-02 : f32
    %191 = vector.broadcast %cst_71 : f32 to vector<16x128xf32>
    %192 = arith.mulf %191, %188 : vector<16x128xf32>
    %193 = arith.mulf %192, %188 : vector<16x128xf32>
    %194 = arith.mulf %193, %188 : vector<16x128xf32>
    %195 = arith.addf %188, %194 : vector<16x128xf32>
    %cst_72 = arith.constant 0.797884583 : f32
    %196 = vector.broadcast %cst_72 : f32 to vector<16x128xf32>
    %197 = arith.mulf %196, %195 : vector<16x128xf32>
    %198 = math.tanh %197 : vector<16x128xf32>
    %cst_73 = arith.constant 1.000000e+00 : f32
    %199 = vector.broadcast %cst_73 : f32 to vector<16x128xf32>
    %200 = arith.addf %199, %198 : vector<16x128xf32>
    %201 = arith.mulf %190, %200 : vector<16x128xf32>
    %c0_74 = arith.constant 0 : index
    %c0_75 = arith.constant 0 : index
    %c0_76 = arith.constant 0 : index
    %202 = vector.load %arg13[%c0_74, %c0_75, %c0_76] : memref<2x128x128xf32, #tpu.memory_space<vmem>>, vector<1x128x128xf32>
    %203 = vector.shape_cast %202 : vector<1x128x128xf32> to vector<128x128xf32>
    %cst_77 = arith.constant dense<0.000000e+00> : vector<16x128xf32>
    %204 = tpu.matmul %201, %203, %cst_77 {dimension_numbers = #tpu.dot_dimension_numbers<[1], [0], [0], [1], [0, 0, 1, 1], [], []>} : vector<16x128xf32>, vector<128x128xf32>, vector<16x128xf32> -> vector<16x128xf32>
    %c0_78 = arith.constant 0 : index
    %c0_79 = arith.constant 0 : index
    %c0_80 = arith.constant 0 : index
    %205 = vector.load %arg14[%c0_78, %c0_79, %c0_80] : memref<2x1x128xf32, #tpu.memory_space<vmem>>, vector<1x1x128xf32>
    %206 = vector.shape_cast %205 : vector<1x1x128xf32> to vector<1x128xf32>
    %207 = vector.broadcast %206 : vector<1x128xf32> to vector<16x128xf32>
    %208 = arith.addf %204, %207 : vector<16x128xf32>
    %209 = arith.addf %208, %181 : vector<16x128xf32>
    %c0_81 = arith.constant 0 : index
    %c0_82 = arith.constant 0 : index
    %c0_83 = arith.constant 0 : index
    %210 = vector.load %arg15[%c0_81, %c0_82, %c0_83] : memref<2x1x128xf32, #tpu.memory_space<vmem>>, vector<1x1x128xf32>
    %211 = vector.shape_cast %210 : vector<1x1x128xf32> to vector<1x128xf32>
    %c0_84 = arith.constant 0 : index
    %c0_85 = arith.constant 0 : index
    %c0_86 = arith.constant 0 : index
    %212 = vector.load %arg16[%c0_84, %c0_85, %c0_86] : memref<2x1x128xf32, #tpu.memory_space<vmem>>, vector<1x1x128xf32>
    %213 = vector.shape_cast %212 : vector<1x1x128xf32> to vector<1x128xf32>
    %cst_87 = arith.constant dense<0.000000e+00> : vector<16xf32>
    %214 = vector.multi_reduction <add>, %209, %cst_87 [1] : vector<16x128xf32> to vector<16xf32>
    %215 = vector.shape_cast %214 : vector<16xf32> to vector<16x1xf32>
    %cst_88 = arith.constant 3.125000e-02 : f32
    %216 = vector.broadcast %cst_88 : f32 to vector<16x1xf32>
    %217 = arith.mulf %215, %216 : vector<16x1xf32>
    %218 = vector.broadcast %217 : vector<16x1xf32> to vector<16x128xf32>
    %219 = arith.subf %209, %218 : vector<16x128xf32>
    %cst_89 = arith.constant 0.000000e+00 : f32
    %220 = vector.shape_cast %2 : vector<1x128xi1> to vector<1x128xi1>
    %221 = vector.broadcast %220 : vector<1x128xi1> to vector<16x128xi1>
    %222 = vector.broadcast %cst_89 : f32 to vector<16x128xf32>
    %223 = arith.select %221, %219, %222 : vector<16x128xi1>, vector<16x128xf32>
    %224 = arith.mulf %223, %223 : vector<16x128xf32>
    %cst_90 = arith.constant dense<0.000000e+00> : vector<16xf32>
    %225 = vector.multi_reduction <add>, %224, %cst_90 [1] : vector<16x128xf32> to vector<16xf32>
    %226 = vector.shape_cast %225 : vector<16xf32> to vector<16x1xf32>
    %cst_91 = arith.constant 3.125000e-02 : f32
    %227 = vector.broadcast %cst_91 : f32 to vector<16x1xf32>
    %228 = arith.mulf %226, %227 : vector<16x1xf32>
    %cst_92 = arith.constant 9.99999996E-13 : f32
    %229 = vector.broadcast %cst_92 : f32 to vector<16x1xf32>
    %230 = arith.addf %228, %229 : vector<16x1xf32>
    %231 = math.rsqrt %230 : vector<16x1xf32>
    %232 = vector.broadcast %231 : vector<16x1xf32> to vector<16x128xf32>
    %233 = arith.mulf %223, %232 : vector<16x128xf32>
    %234 = vector.broadcast %211 : vector<1x128xf32> to vector<16x128xf32>
    %235 = arith.mulf %233, %234 : vector<16x128xf32>
    %236 = vector.broadcast %213 : vector<1x128xf32> to vector<16x128xf32>
    %237 = arith.addf %235, %236 : vector<16x128xf32>
    %c1 = arith.constant 1 : index
    %c0_93 = arith.constant 0 : index
    %c0_94 = arith.constant 0 : index
    %238 = vector.load %arg5[%c1, %c0_93, %c0_94] : memref<2x128x384xf32, #tpu.memory_space<vmem>>, vector<1x128x384xf32>
    %239 = vector.shape_cast %238 : vector<1x128x384xf32> to vector<128x384xf32>
    %cst_95 = arith.constant dense<0.000000e+00> : vector<16x384xf32>
    %240 = tpu.matmul %237, %239, %cst_95 {dimension_numbers = #tpu.dot_dimension_numbers<[1], [0], [0], [1], [0, 0, 1, 1], [], []>} : vector<16x128xf32>, vector<128x384xf32>, vector<16x384xf32> -> vector<16x384xf32>
    %c1_96 = arith.constant 1 : index
    %c0_97 = arith.constant 0 : index
    %c0_98 = arith.constant 0 : index
    %241 = vector.load %arg6[%c1_96, %c0_97, %c0_98] : memref<2x1x384xf32, #tpu.memory_space<vmem>>, vector<1x1x384xf32>
    %242 = vector.shape_cast %241 : vector<1x1x384xf32> to vector<1x384xf32>
    %243 = vector.broadcast %242 : vector<1x384xf32> to vector<16x384xf32>
    %244 = arith.addf %240, %243 : vector<16x384xf32>
    %245 = vector.extract_strided_slice %244 {offsets = [0, 0], sizes = [16, 128], strides = [1, 1]} : vector<16x384xf32> to vector<16x128xf32>
    %246 = vector.extract_strided_slice %244 {offsets = [0, 128], sizes = [16, 128], strides = [1, 1]} : vector<16x384xf32> to vector<16x128xf32>
    %247 = vector.extract_strided_slice %244 {offsets = [0, 256], sizes = [16, 128], strides = [1, 1]} : vector<16x384xf32> to vector<16x128xf32>
    %cst_99 = arith.constant 0.000000e+00 : f32
    %248 = vector.broadcast %cst_99 : f32 to vector<16x128xf32>
    %249 = vector.broadcast %9 : vector<1x128xf32> to vector<16x128xf32>
    %250 = arith.mulf %245, %249 : vector<16x128xf32>
    %cst_100 = arith.constant dense<0.000000e+00> : vector<16x16xf32>
    %251 = tpu.matmul %250, %246, %cst_100 {dimension_numbers = #tpu.dot_dimension_numbers<[1], [1], [0], [0], [0, 0, 1, 0], [], []>} : vector<16x128xf32>, vector<16x128xf32>, vector<16x16xf32> -> vector<16x16xf32>
    %cst_101 = arith.constant 0.353553385 : f32
    %252 = vector.broadcast %cst_101 : f32 to vector<16x16xf32>
    %253 = arith.mulf %251, %252 : vector<16x16xf32>
    %254 = arith.addf %253, %31 : vector<16x16xf32>
    %cst_102 = arith.constant dense<0xFF800000> : vector<16xf32>
    %255 = vector.multi_reduction <maximumf>, %254, %cst_102 [1] : vector<16x16xf32> to vector<16xf32>
    %256 = vector.shape_cast %255 : vector<16xf32> to vector<16x1xf32>
    %257 = vector.broadcast %256 : vector<16x1xf32> to vector<16x16xf32>
    %258 = arith.subf %254, %257 : vector<16x16xf32>
    %259 = math.exp %258 : vector<16x16xf32>
    %cst_103 = arith.constant dense<0.000000e+00> : vector<16xf32>
    %260 = vector.multi_reduction <add>, %259, %cst_103 [1] : vector<16x16xf32> to vector<16xf32>
    %261 = vector.shape_cast %260 : vector<16xf32> to vector<16x1xf32>
    %262 = vector.broadcast %261 : vector<16x1xf32> to vector<16x16xf32>
    %263 = arith.divf %259, %262 : vector<16x16xf32>
    %cst_104 = arith.constant dense<0.000000e+00> : vector<16x128xf32>
    %264 = tpu.matmul %263, %247, %cst_104 {dimension_numbers = #tpu.dot_dimension_numbers<[1], [0], [0], [1], [0, 0, 1, 1], [], []>} : vector<16x16xf32>, vector<16x128xf32>, vector<16x128xf32> -> vector<16x128xf32>
    %265 = vector.broadcast %9 : vector<1x128xf32> to vector<16x128xf32>
    %266 = arith.mulf %264, %265 : vector<16x128xf32>
    %267 = arith.addf %248, %266 : vector<16x128xf32>
    %268 = vector.broadcast %16 : vector<1x128xf32> to vector<16x128xf32>
    %269 = arith.mulf %245, %268 : vector<16x128xf32>
    %cst_105 = arith.constant dense<0.000000e+00> : vector<16x16xf32>
    %270 = tpu.matmul %269, %246, %cst_105 {dimension_numbers = #tpu.dot_dimension_numbers<[1], [1], [0], [0], [0, 0, 1, 0], [], []>} : vector<16x128xf32>, vector<16x128xf32>, vector<16x16xf32> -> vector<16x16xf32>
    %cst_106 = arith.constant 0.353553385 : f32
    %271 = vector.broadcast %cst_106 : f32 to vector<16x16xf32>
    %272 = arith.mulf %270, %271 : vector<16x16xf32>
    %273 = arith.addf %272, %31 : vector<16x16xf32>
    %cst_107 = arith.constant dense<0xFF800000> : vector<16xf32>
    %274 = vector.multi_reduction <maximumf>, %273, %cst_107 [1] : vector<16x16xf32> to vector<16xf32>
    %275 = vector.shape_cast %274 : vector<16xf32> to vector<16x1xf32>
    %276 = vector.broadcast %275 : vector<16x1xf32> to vector<16x16xf32>
    %277 = arith.subf %273, %276 : vector<16x16xf32>
    %278 = math.exp %277 : vector<16x16xf32>
    %cst_108 = arith.constant dense<0.000000e+00> : vector<16xf32>
    %279 = vector.multi_reduction <add>, %278, %cst_108 [1] : vector<16x16xf32> to vector<16xf32>
    %280 = vector.shape_cast %279 : vector<16xf32> to vector<16x1xf32>
    %281 = vector.broadcast %280 : vector<16x1xf32> to vector<16x16xf32>
    %282 = arith.divf %278, %281 : vector<16x16xf32>
    %cst_109 = arith.constant dense<0.000000e+00> : vector<16x128xf32>
    %283 = tpu.matmul %282, %247, %cst_109 {dimension_numbers = #tpu.dot_dimension_numbers<[1], [0], [0], [1], [0, 0, 1, 1], [], []>} : vector<16x16xf32>, vector<16x128xf32>, vector<16x128xf32> -> vector<16x128xf32>
    %284 = vector.broadcast %16 : vector<1x128xf32> to vector<16x128xf32>
    %285 = arith.mulf %283, %284 : vector<16x128xf32>
    %286 = arith.addf %267, %285 : vector<16x128xf32>
    %287 = vector.broadcast %23 : vector<1x128xf32> to vector<16x128xf32>
    %288 = arith.mulf %245, %287 : vector<16x128xf32>
    %cst_110 = arith.constant dense<0.000000e+00> : vector<16x16xf32>
    %289 = tpu.matmul %288, %246, %cst_110 {dimension_numbers = #tpu.dot_dimension_numbers<[1], [1], [0], [0], [0, 0, 1, 0], [], []>} : vector<16x128xf32>, vector<16x128xf32>, vector<16x16xf32> -> vector<16x16xf32>
    %cst_111 = arith.constant 0.353553385 : f32
    %290 = vector.broadcast %cst_111 : f32 to vector<16x16xf32>
    %291 = arith.mulf %289, %290 : vector<16x16xf32>
    %292 = arith.addf %291, %31 : vector<16x16xf32>
    %cst_112 = arith.constant dense<0xFF800000> : vector<16xf32>
    %293 = vector.multi_reduction <maximumf>, %292, %cst_112 [1] : vector<16x16xf32> to vector<16xf32>
    %294 = vector.shape_cast %293 : vector<16xf32> to vector<16x1xf32>
    %295 = vector.broadcast %294 : vector<16x1xf32> to vector<16x16xf32>
    %296 = arith.subf %292, %295 : vector<16x16xf32>
    %297 = math.exp %296 : vector<16x16xf32>
    %cst_113 = arith.constant dense<0.000000e+00> : vector<16xf32>
    %298 = vector.multi_reduction <add>, %297, %cst_113 [1] : vector<16x16xf32> to vector<16xf32>
    %299 = vector.shape_cast %298 : vector<16xf32> to vector<16x1xf32>
    %300 = vector.broadcast %299 : vector<16x1xf32> to vector<16x16xf32>
    %301 = arith.divf %297, %300 : vector<16x16xf32>
    %cst_114 = arith.constant dense<0.000000e+00> : vector<16x128xf32>
    %302 = tpu.matmul %301, %247, %cst_114 {dimension_numbers = #tpu.dot_dimension_numbers<[1], [0], [0], [1], [0, 0, 1, 1], [], []>} : vector<16x16xf32>, vector<16x128xf32>, vector<16x128xf32> -> vector<16x128xf32>
    %303 = vector.broadcast %23 : vector<1x128xf32> to vector<16x128xf32>
    %304 = arith.mulf %302, %303 : vector<16x128xf32>
    %305 = arith.addf %286, %304 : vector<16x128xf32>
    %306 = vector.broadcast %30 : vector<1x128xf32> to vector<16x128xf32>
    %307 = arith.mulf %245, %306 : vector<16x128xf32>
    %cst_115 = arith.constant dense<0.000000e+00> : vector<16x16xf32>
    %308 = tpu.matmul %307, %246, %cst_115 {dimension_numbers = #tpu.dot_dimension_numbers<[1], [1], [0], [0], [0, 0, 1, 0], [], []>} : vector<16x128xf32>, vector<16x128xf32>, vector<16x16xf32> -> vector<16x16xf32>
    %cst_116 = arith.constant 0.353553385 : f32
    %309 = vector.broadcast %cst_116 : f32 to vector<16x16xf32>
    %310 = arith.mulf %308, %309 : vector<16x16xf32>
    %311 = arith.addf %310, %31 : vector<16x16xf32>
    %cst_117 = arith.constant dense<0xFF800000> : vector<16xf32>
    %312 = vector.multi_reduction <maximumf>, %311, %cst_117 [1] : vector<16x16xf32> to vector<16xf32>
    %313 = vector.shape_cast %312 : vector<16xf32> to vector<16x1xf32>
    %314 = vector.broadcast %313 : vector<16x1xf32> to vector<16x16xf32>
    %315 = arith.subf %311, %314 : vector<16x16xf32>
    %316 = math.exp %315 : vector<16x16xf32>
    %cst_118 = arith.constant dense<0.000000e+00> : vector<16xf32>
    %317 = vector.multi_reduction <add>, %316, %cst_118 [1] : vector<16x16xf32> to vector<16xf32>
    %318 = vector.shape_cast %317 : vector<16xf32> to vector<16x1xf32>
    %319 = vector.broadcast %318 : vector<16x1xf32> to vector<16x16xf32>
    %320 = arith.divf %316, %319 : vector<16x16xf32>
    %cst_119 = arith.constant dense<0.000000e+00> : vector<16x128xf32>
    %321 = tpu.matmul %320, %247, %cst_119 {dimension_numbers = #tpu.dot_dimension_numbers<[1], [0], [0], [1], [0, 0, 1, 1], [], []>} : vector<16x16xf32>, vector<16x128xf32>, vector<16x128xf32> -> vector<16x128xf32>
    %322 = vector.broadcast %30 : vector<1x128xf32> to vector<16x128xf32>
    %323 = arith.mulf %321, %322 : vector<16x128xf32>
    %324 = arith.addf %305, %323 : vector<16x128xf32>
    %c1_120 = arith.constant 1 : index
    %c0_121 = arith.constant 0 : index
    %c0_122 = arith.constant 0 : index
    %325 = vector.load %arg7[%c1_120, %c0_121, %c0_122] : memref<2x128x128xf32, #tpu.memory_space<vmem>>, vector<1x128x128xf32>
    %326 = vector.shape_cast %325 : vector<1x128x128xf32> to vector<128x128xf32>
    %cst_123 = arith.constant dense<0.000000e+00> : vector<16x128xf32>
    %327 = tpu.matmul %324, %326, %cst_123 {dimension_numbers = #tpu.dot_dimension_numbers<[1], [0], [0], [1], [0, 0, 1, 1], [], []>} : vector<16x128xf32>, vector<128x128xf32>, vector<16x128xf32> -> vector<16x128xf32>
    %c1_124 = arith.constant 1 : index
    %c0_125 = arith.constant 0 : index
    %c0_126 = arith.constant 0 : index
    %328 = vector.load %arg8[%c1_124, %c0_125, %c0_126] : memref<2x1x128xf32, #tpu.memory_space<vmem>>, vector<1x1x128xf32>
    %329 = vector.shape_cast %328 : vector<1x1x128xf32> to vector<1x128xf32>
    %330 = vector.broadcast %329 : vector<1x128xf32> to vector<16x128xf32>
    %331 = arith.addf %327, %330 : vector<16x128xf32>
    %332 = arith.addf %331, %237 : vector<16x128xf32>
    %c1_127 = arith.constant 1 : index
    %c0_128 = arith.constant 0 : index
    %c0_129 = arith.constant 0 : index
    %333 = vector.load %arg9[%c1_127, %c0_128, %c0_129] : memref<2x1x128xf32, #tpu.memory_space<vmem>>, vector<1x1x128xf32>
    %334 = vector.shape_cast %333 : vector<1x1x128xf32> to vector<1x128xf32>
    %c1_130 = arith.constant 1 : index
    %c0_131 = arith.constant 0 : index
    %c0_132 = arith.constant 0 : index
    %335 = vector.load %arg10[%c1_130, %c0_131, %c0_132] : memref<2x1x128xf32, #tpu.memory_space<vmem>>, vector<1x1x128xf32>
    %336 = vector.shape_cast %335 : vector<1x1x128xf32> to vector<1x128xf32>
    %cst_133 = arith.constant dense<0.000000e+00> : vector<16xf32>
    %337 = vector.multi_reduction <add>, %332, %cst_133 [1] : vector<16x128xf32> to vector<16xf32>
    %338 = vector.shape_cast %337 : vector<16xf32> to vector<16x1xf32>
    %cst_134 = arith.constant 3.125000e-02 : f32
    %339 = vector.broadcast %cst_134 : f32 to vector<16x1xf32>
    %340 = arith.mulf %338, %339 : vector<16x1xf32>
    %341 = vector.broadcast %340 : vector<16x1xf32> to vector<16x128xf32>
    %342 = arith.subf %332, %341 : vector<16x128xf32>
    %cst_135 = arith.constant 0.000000e+00 : f32
    %343 = vector.shape_cast %2 : vector<1x128xi1> to vector<1x128xi1>
    %344 = vector.broadcast %343 : vector<1x128xi1> to vector<16x128xi1>
    %345 = vector.broadcast %cst_135 : f32 to vector<16x128xf32>
    %346 = arith.select %344, %342, %345 : vector<16x128xi1>, vector<16x128xf32>
    %347 = arith.mulf %346, %346 : vector<16x128xf32>
    %cst_136 = arith.constant dense<0.000000e+00> : vector<16xf32>
    %348 = vector.multi_reduction <add>, %347, %cst_136 [1] : vector<16x128xf32> to vector<16xf32>
    %349 = vector.shape_cast %348 : vector<16xf32> to vector<16x1xf32>
    %cst_137 = arith.constant 3.125000e-02 : f32
    %350 = vector.broadcast %cst_137 : f32 to vector<16x1xf32>
    %351 = arith.mulf %349, %350 : vector<16x1xf32>
    %cst_138 = arith.constant 9.99999996E-13 : f32
    %352 = vector.broadcast %cst_138 : f32 to vector<16x1xf32>
    %353 = arith.addf %351, %352 : vector<16x1xf32>
    %354 = math.rsqrt %353 : vector<16x1xf32>
    %355 = vector.broadcast %354 : vector<16x1xf32> to vector<16x128xf32>
    %356 = arith.mulf %346, %355 : vector<16x128xf32>
    %357 = vector.broadcast %334 : vector<1x128xf32> to vector<16x128xf32>
    %358 = arith.mulf %356, %357 : vector<16x128xf32>
    %359 = vector.broadcast %336 : vector<1x128xf32> to vector<16x128xf32>
    %360 = arith.addf %358, %359 : vector<16x128xf32>
    %c1_139 = arith.constant 1 : index
    %c0_140 = arith.constant 0 : index
    %c0_141 = arith.constant 0 : index
    %361 = vector.load %arg11[%c1_139, %c0_140, %c0_141] : memref<2x128x128xf32, #tpu.memory_space<vmem>>, vector<1x128x128xf32>
    %362 = vector.shape_cast %361 : vector<1x128x128xf32> to vector<128x128xf32>
    %cst_142 = arith.constant dense<0.000000e+00> : vector<16x128xf32>
    %363 = tpu.matmul %360, %362, %cst_142 {dimension_numbers = #tpu.dot_dimension_numbers<[1], [0], [0], [1], [0, 0, 1, 1], [], []>} : vector<16x128xf32>, vector<128x128xf32>, vector<16x128xf32> -> vector<16x128xf32>
    %c1_143 = arith.constant 1 : index
    %c0_144 = arith.constant 0 : index
    %c0_145 = arith.constant 0 : index
    %364 = vector.load %arg12[%c1_143, %c0_144, %c0_145] : memref<2x1x128xf32, #tpu.memory_space<vmem>>, vector<1x1x128xf32>
    %365 = vector.shape_cast %364 : vector<1x1x128xf32> to vector<1x128xf32>
    %366 = vector.broadcast %365 : vector<1x128xf32> to vector<16x128xf32>
    %367 = arith.addf %363, %366 : vector<16x128xf32>
    %cst_146 = arith.constant 5.000000e-01 : f32
    %368 = vector.broadcast %cst_146 : f32 to vector<16x128xf32>
    %369 = arith.mulf %368, %367 : vector<16x128xf32>
    %cst_147 = arith.constant 4.471500e-02 : f32
    %370 = vector.broadcast %cst_147 : f32 to vector<16x128xf32>
    %371 = arith.mulf %370, %367 : vector<16x128xf32>
    %372 = arith.mulf %371, %367 : vector<16x128xf32>
    %373 = arith.mulf %372, %367 : vector<16x128xf32>
    %374 = arith.addf %367, %373 : vector<16x128xf32>
    %cst_148 = arith.constant 0.797884583 : f32
    %375 = vector.broadcast %cst_148 : f32 to vector<16x128xf32>
    %376 = arith.mulf %375, %374 : vector<16x128xf32>
    %377 = math.tanh %376 : vector<16x128xf32>
    %cst_149 = arith.constant 1.000000e+00 : f32
    %378 = vector.broadcast %cst_149 : f32 to vector<16x128xf32>
    %379 = arith.addf %378, %377 : vector<16x128xf32>
    %380 = arith.mulf %369, %379 : vector<16x128xf32>
    %c1_150 = arith.constant 1 : index
    %c0_151 = arith.constant 0 : index
    %c0_152 = arith.constant 0 : index
    %381 = vector.load %arg13[%c1_150, %c0_151, %c0_152] : memref<2x128x128xf32, #tpu.memory_space<vmem>>, vector<1x128x128xf32>
    %382 = vector.shape_cast %381 : vector<1x128x128xf32> to vector<128x128xf32>
    %cst_153 = arith.constant dense<0.000000e+00> : vector<16x128xf32>
    %383 = tpu.matmul %380, %382, %cst_153 {dimension_numbers = #tpu.dot_dimension_numbers<[1], [0], [0], [1], [0, 0, 1, 1], [], []>} : vector<16x128xf32>, vector<128x128xf32>, vector<16x128xf32> -> vector<16x128xf32>
    %c1_154 = arith.constant 1 : index
    %c0_155 = arith.constant 0 : index
    %c0_156 = arith.constant 0 : index
    %384 = vector.load %arg14[%c1_154, %c0_155, %c0_156] : memref<2x1x128xf32, #tpu.memory_space<vmem>>, vector<1x1x128xf32>
    %385 = vector.shape_cast %384 : vector<1x1x128xf32> to vector<1x128xf32>
    %386 = vector.broadcast %385 : vector<1x128xf32> to vector<16x128xf32>
    %387 = arith.addf %383, %386 : vector<16x128xf32>
    %388 = arith.addf %387, %360 : vector<16x128xf32>
    %c1_157 = arith.constant 1 : index
    %c0_158 = arith.constant 0 : index
    %c0_159 = arith.constant 0 : index
    %389 = vector.load %arg15[%c1_157, %c0_158, %c0_159] : memref<2x1x128xf32, #tpu.memory_space<vmem>>, vector<1x1x128xf32>
    %390 = vector.shape_cast %389 : vector<1x1x128xf32> to vector<1x128xf32>
    %c1_160 = arith.constant 1 : index
    %c0_161 = arith.constant 0 : index
    %c0_162 = arith.constant 0 : index
    %391 = vector.load %arg16[%c1_160, %c0_161, %c0_162] : memref<2x1x128xf32, #tpu.memory_space<vmem>>, vector<1x1x128xf32>
    %392 = vector.shape_cast %391 : vector<1x1x128xf32> to vector<1x128xf32>
    %cst_163 = arith.constant dense<0.000000e+00> : vector<16xf32>
    %393 = vector.multi_reduction <add>, %388, %cst_163 [1] : vector<16x128xf32> to vector<16xf32>
    %394 = vector.shape_cast %393 : vector<16xf32> to vector<16x1xf32>
    %cst_164 = arith.constant 3.125000e-02 : f32
    %395 = vector.broadcast %cst_164 : f32 to vector<16x1xf32>
    %396 = arith.mulf %394, %395 : vector<16x1xf32>
    %397 = vector.broadcast %396 : vector<16x1xf32> to vector<16x128xf32>
    %398 = arith.subf %388, %397 : vector<16x128xf32>
    %cst_165 = arith.constant 0.000000e+00 : f32
    %399 = vector.shape_cast %2 : vector<1x128xi1> to vector<1x128xi1>
    %400 = vector.broadcast %399 : vector<1x128xi1> to vector<16x128xi1>
    %401 = vector.broadcast %cst_165 : f32 to vector<16x128xf32>
    %402 = arith.select %400, %398, %401 : vector<16x128xi1>, vector<16x128xf32>
    %403 = arith.mulf %402, %402 : vector<16x128xf32>
    %cst_166 = arith.constant dense<0.000000e+00> : vector<16xf32>
    %404 = vector.multi_reduction <add>, %403, %cst_166 [1] : vector<16x128xf32> to vector<16xf32>
    %405 = vector.shape_cast %404 : vector<16xf32> to vector<16x1xf32>
    %cst_167 = arith.constant 3.125000e-02 : f32
    %406 = vector.broadcast %cst_167 : f32 to vector<16x1xf32>
    %407 = arith.mulf %405, %406 : vector<16x1xf32>
    %cst_168 = arith.constant 9.99999996E-13 : f32
    %408 = vector.broadcast %cst_168 : f32 to vector<16x1xf32>
    %409 = arith.addf %407, %408 : vector<16x1xf32>
    %410 = math.rsqrt %409 : vector<16x1xf32>
    %411 = vector.broadcast %410 : vector<16x1xf32> to vector<16x128xf32>
    %412 = arith.mulf %402, %411 : vector<16x128xf32>
    %413 = vector.broadcast %390 : vector<1x128xf32> to vector<16x128xf32>
    %414 = arith.mulf %412, %413 : vector<16x128xf32>
    %415 = vector.broadcast %392 : vector<1x128xf32> to vector<16x128xf32>
    %416 = arith.addf %414, %415 : vector<16x128xf32>
    %417 = vector.extract_strided_slice %416 {offsets = [0, 0], sizes = [1, 128], strides = [1, 1]} : vector<16x128xf32> to vector<1x128xf32>
    %418 = vector.extract_strided_slice %416 {offsets = [8, 0], sizes = [1, 128], strides = [1, 1]} : vector<16x128xf32> to vector<1x128xf32>
    %419 = tpu.concatenate %417, %418 in 0 : vector<1x128xf32>, vector<1x128xf32> -> vector<2x128xf32>
    %c0_169 = arith.constant 0 : index
    %c0_170 = arith.constant 0 : index
    %420 = vector.load %arg17[%c0_169, %c0_170] : memref<128x128xf32, #tpu.memory_space<vmem>>, vector<128x128xf32>
    %cst_171 = arith.constant dense<0.000000e+00> : vector<2x128xf32>
    %421 = tpu.matmul %419, %420, %cst_171 {dimension_numbers = #tpu.dot_dimension_numbers<[1], [0], [0], [1], [0, 0, 1, 1], [], []>} : vector<2x128xf32>, vector<128x128xf32>, vector<2x128xf32> -> vector<2x128xf32>
    %c0_172 = arith.constant 0 : index
    %c0_173 = arith.constant 0 : index
    %422 = vector.load %arg18[%c0_172, %c0_173] : memref<1x128xf32, #tpu.memory_space<vmem>>, vector<1x128xf32>
    %423 = vector.broadcast %422 : vector<1x128xf32> to vector<2x128xf32>
    %424 = arith.addf %421, %423 : vector<2x128xf32>
    %425 = math.tanh %424 : vector<2x128xf32>
    %c0_174 = arith.constant 0 : index
    %c0_175 = arith.constant 0 : index
    %426 = vector.load %arg19[%c0_174, %c0_175] : memref<128x128xf32, #tpu.memory_space<vmem>>, vector<128x128xf32>
    %cst_176 = arith.constant dense<0.000000e+00> : vector<2x128xf32>
    %427 = tpu.matmul %425, %426, %cst_176 {dimension_numbers = #tpu.dot_dimension_numbers<[1], [0], [0], [1], [0, 0, 1, 1], [], []>} : vector<2x128xf32>, vector<128x128xf32>, vector<2x128xf32> -> vector<2x128xf32>
    %c0_177 = arith.constant 0 : index
    %c0_178 = arith.constant 0 : index
    %428 = vector.load %arg20[%c0_177, %c0_178] : memref<1x128xf32, #tpu.memory_space<vmem>>, vector<1x128xf32>
    %429 = vector.broadcast %428 : vector<1x128xf32> to vector<2x128xf32>
    %430 = arith.addf %427, %429 : vector<2x128xf32>
    %c2_i32 = arith.constant 2 : i32
    %431 = vector.broadcast %c2_i32 : i32 to vector<1x128xi32>
    %432 = arith.cmpi slt, %0, %431 : vector<1x128xi32>
    %cst_179 = arith.constant -1.000000e+30 : f32
    %433 = vector.shape_cast %432 : vector<1x128xi1> to vector<1x128xi1>
    %434 = vector.broadcast %433 : vector<1x128xi1> to vector<2x128xi1>
    %435 = vector.broadcast %cst_179 : f32 to vector<2x128xf32>
    %436 = arith.select %434, %430, %435 : vector<2x128xi1>, vector<2x128xf32>
    %cst_180 = arith.constant dense<0xFF800000> : vector<2xf32>
    %437 = vector.multi_reduction <maximumf>, %436, %cst_180 [1] : vector<2x128xf32> to vector<2xf32>
    %438 = vector.shape_cast %437 : vector<2xf32> to vector<2x1xf32>
    %439 = vector.broadcast %438 : vector<2x1xf32> to vector<2x128xf32>
    %440 = arith.subf %436, %439 : vector<2x128xf32>
    %441 = math.exp %440 : vector<2x128xf32>
    %cst_181 = arith.constant 0.000000e+00 : f32
    %442 = vector.shape_cast %432 : vector<1x128xi1> to vector<1x128xi1>
    %443 = vector.broadcast %442 : vector<1x128xi1> to vector<2x128xi1>
    %444 = vector.broadcast %cst_181 : f32 to vector<2x128xf32>
    %445 = arith.select %443, %441, %444 : vector<2x128xi1>, vector<2x128xf32>
    %cst_182 = arith.constant dense<0.000000e+00> : vector<2xf32>
    %446 = vector.multi_reduction <add>, %445, %cst_182 [1] : vector<2x128xf32> to vector<2xf32>
    %447 = vector.shape_cast %446 : vector<2xf32> to vector<2x1xf32>
    %448 = vector.broadcast %447 : vector<2x1xf32> to vector<2x128xf32>
    %449 = arith.divf %445, %448 : vector<2x128xf32>
    %c0_183 = arith.constant 0 : index
    %c0_184 = arith.constant 0 : index
    %450 = vector.load %arg21[%c0_183, %c0_184] : memref<2x128xf32, #tpu.memory_space<vmem>>, vector<2x128xf32>
    tpu.vector_store %arg21[%c0_183, %c0_184], %430 {strides = array<i32>} : memref<2x128xf32, #tpu.memory_space<vmem>>, vector<2x128xf32>,
    %c0_185 = arith.constant 0 : index
    %c0_186 = arith.constant 0 : index
    %451 = vector.load %arg22[%c0_185, %c0_186] : memref<2x128xf32, #tpu.memory_space<vmem>>, vector<2x128xf32>
    tpu.vector_store %arg22[%c0_185, %c0_186], %449 {strides = array<i32>} : memref<2x128xf32, #tpu.memory_space<vmem>>, vector<2x128xf32>,
    return
  }
  func.func @transform_0(%arg0: i32) -> (i32, i32) {
    %c0_i32 = arith.constant 0 : i32
    %c0_i32_0 = arith.constant 0 : i32
    %c0_i32_1 = arith.constant 0 : i32
    return %c0_i32, %c0_i32_0 : i32, i32
  }
  func.func @transform_1(%arg0: i32) -> (i32, i32) {
    %c0_i32 = arith.constant 0 : i32
    %c0_i32_0 = arith.constant 0 : i32
    %c0_i32_1 = arith.constant 0 : i32
    return %c0_i32, %c0_i32_0 : i32, i32
  }
  func.func @transform_2(%arg0: i32) -> (i32, i32) {
    %c0_i32 = arith.constant 0 : i32
    %c0_i32_0 = arith.constant 0 : i32
    %c0_i32_1 = arith.constant 0 : i32
    return %c0_i32, %c0_i32_0 : i32, i32
  }
  func.func @transform_3(%arg0: i32) -> (i32, i32) {
    %c0_i32 = arith.constant 0 : i32
    %c0_i32_0 = arith.constant 0 : i32
    %c0_i32_1 = arith.constant 0 : i32
    return %c0_i32, %c0_i32_0 : i32, i32
  }
  func.func @transform_4(%arg0: i32) -> (i32, i32, i32) {
    %c0_i32 = arith.constant 0 : i32
    %c0_i32_0 = arith.constant 0 : i32
    %c0_i32_1 = arith.constant 0 : i32
    %c0_i32_2 = arith.constant 0 : i32
    return %c0_i32, %c0_i32_0, %c0_i32_1 : i32, i32, i32
  }
  func.func @transform_5(%arg0: i32) -> (i32, i32, i32) {
    %c0_i32 = arith.constant 0 : i32
    %c0_i32_0 = arith.constant 0 : i32
    %c0_i32_1 = arith.constant 0 : i32
    %c0_i32_2 = arith.constant 0 : i32
    return %c0_i32, %c0_i32_0, %c0_i32_1 : i32, i32, i32
  }
  func.func @transform_6(%arg0: i32) -> (i32, i32, i32) {
    %c0_i32 = arith.constant 0 : i32
    %c0_i32_0 = arith.constant 0 : i32
    %c0_i32_1 = arith.constant 0 : i32
    %c0_i32_2 = arith.constant 0 : i32
    return %c0_i32, %c0_i32_0, %c0_i32_1 : i32, i32, i32
  }
  func.func @transform_7(%arg0: i32) -> (i32, i32, i32) {
    %c0_i32 = arith.constant 0 : i32
    %c0_i32_0 = arith.constant 0 : i32
    %c0_i32_1 = arith.constant 0 : i32
    %c0_i32_2 = arith.constant 0 : i32
    return %c0_i32, %c0_i32_0, %c0_i32_1 : i32, i32, i32
  }
  func.func @transform_8(%arg0: i32) -> (i32, i32, i32) {
    %c0_i32 = arith.constant 0 : i32
    %c0_i32_0 = arith.constant 0 : i32
    %c0_i32_1 = arith.constant 0 : i32
    %c0_i32_2 = arith.constant 0 : i32
    return %c0_i32, %c0_i32_0, %c0_i32_1 : i32, i32, i32
  }
  func.func @transform_9(%arg0: i32) -> (i32, i32, i32) {
    %c0_i32 = arith.constant 0 : i32
    %c0_i32_0 = arith.constant 0 : i32
    %c0_i32_1 = arith.constant 0 : i32
    %c0_i32_2 = arith.constant 0 : i32
    return %c0_i32, %c0_i32_0, %c0_i32_1 : i32, i32, i32
  }
  func.func @transform_10(%arg0: i32) -> (i32, i32, i32) {
    %c0_i32 = arith.constant 0 : i32
    %c0_i32_0 = arith.constant 0 : i32
    %c0_i32_1 = arith.constant 0 : i32
    %c0_i32_2 = arith.constant 0 : i32
    return %c0_i32, %c0_i32_0, %c0_i32_1 : i32, i32, i32
  }
  func.func @transform_11(%arg0: i32) -> (i32, i32, i32) {
    %c0_i32 = arith.constant 0 : i32
    %c0_i32_0 = arith.constant 0 : i32
    %c0_i32_1 = arith.constant 0 : i32
    %c0_i32_2 = arith.constant 0 : i32
    return %c0_i32, %c0_i32_0, %c0_i32_1 : i32, i32, i32
  }
  func.func @transform_12(%arg0: i32) -> (i32, i32, i32) {
    %c0_i32 = arith.constant 0 : i32
    %c0_i32_0 = arith.constant 0 : i32
    %c0_i32_1 = arith.constant 0 : i32
    %c0_i32_2 = arith.constant 0 : i32
    return %c0_i32, %c0_i32_0, %c0_i32_1 : i32, i32, i32
  }
  func.func @transform_13(%arg0: i32) -> (i32, i32, i32) {
    %c0_i32 = arith.constant 0 : i32
    %c0_i32_0 = arith.constant 0 : i32
    %c0_i32_1 = arith.constant 0 : i32
    %c0_i32_2 = arith.constant 0 : i32
    return %c0_i32, %c0_i32_0, %c0_i32_1 : i32, i32, i32
  }
  func.func @transform_14(%arg0: i32) -> (i32, i32, i32) {
    %c0_i32 = arith.constant 0 : i32
    %c0_i32_0 = arith.constant 0 : i32
    %c0_i32_1 = arith.constant 0 : i32
    %c0_i32_2 = arith.constant 0 : i32
    return %c0_i32, %c0_i32_0, %c0_i32_1 : i32, i32, i32
  }
  func.func @transform_15(%arg0: i32) -> (i32, i32, i32) {
    %c0_i32 = arith.constant 0 : i32
    %c0_i32_0 = arith.constant 0 : i32
    %c0_i32_1 = arith.constant 0 : i32
    %c0_i32_2 = arith.constant 0 : i32
    return %c0_i32, %c0_i32_0, %c0_i32_1 : i32, i32, i32
  }
  func.func @transform_16(%arg0: i32) -> (i32, i32) {
    %c0_i32 = arith.constant 0 : i32
    %c0_i32_0 = arith.constant 0 : i32
    %c0_i32_1 = arith.constant 0 : i32
    return %c0_i32, %c0_i32_0 : i32, i32
  }
  func.func @transform_17(%arg0: i32) -> (i32, i32) {
    %c0_i32 = arith.constant 0 : i32
    %c0_i32_0 = arith.constant 0 : i32
    %c0_i32_1 = arith.constant 0 : i32
    return %c0_i32, %c0_i32_0 : i32, i32
  }
  func.func @transform_18(%arg0: i32) -> (i32, i32) {
    %c0_i32 = arith.constant 0 : i32
    %c0_i32_0 = arith.constant 0 : i32
    %c0_i32_1 = arith.constant 0 : i32
    return %c0_i32, %c0_i32_0 : i32, i32
  }
  func.func @transform_19(%arg0: i32) -> (i32, i32) {
    %c0_i32 = arith.constant 0 : i32
    %c0_i32_0 = arith.constant 0 : i32
    %c0_i32_1 = arith.constant 0 : i32
    return %c0_i32, %c0_i32_0 : i32, i32
  }
  func.func @transform_20(%arg0: i32) -> (i32, i32) {
    %c0_i32 = arith.constant 0 : i32
    %c0_i32_0 = arith.constant 0 : i32
    %c0_i32_1 = arith.constant 0 : i32
    return %c0_i32, %c0_i32_0 : i32, i32
  }
  func.func @transform_21(%arg0: i32) -> (i32, i32) {
    %c0_i32 = arith.constant 0 : i32
    %c0_i32_0 = arith.constant 0 : i32
    %c0_i32_1 = arith.constant 0 : i32
    return %c0_i32, %c0_i32_0 : i32, i32
  }
}

</mosaic_0001>

<llo_original>
// kernel: bert_model_predict.1
$region0: #{bert_model_predict.1}
  #allocation0 [shape = 'u32[]', space=smem, size = 0x4, offset = 0x4, fixed_abs, tag = 'smem constant byte address 0x4 - core index']
  #allocation1 [shape = 'u32[144,128]{1,0:T(1,128)}', space=vmem, size = 0x12000, scoped, tag = 'internal scratch']
  %s0 = inlined_call_operand.vmem [shape: f32[16,128], index: 0, kind: input, shape index: {}]
  %s1 = inlined_call_operand.vmem [shape: f32[16,16], index: 1, kind: input, shape index: {}]
  %s2 = inlined_call_operand.vmem [shape: f32[1,128], index: 2, kind: input, shape index: {}]
  %s3 = inlined_call_operand.vmem [shape: f32[1,128], index: 3, kind: input, shape index: {}]
  %s4 = inlined_call_operand.hbm [shape: f32[2,128,384], index: 4, kind: input, shape index: {}]
  %s5 = inlined_call_operand.vmem [shape: f32[2,1,384], index: 5, kind: input, shape index: {}]
  %s6 = inlined_call_operand.vmem [shape: f32[2,128,128], index: 6, kind: input, shape index: {}]
  %s7 = inlined_call_operand.vmem [shape: f32[2,1,128], index: 7, kind: input, shape index: {}]
  %s8 = inlined_call_operand.vmem [shape: f32[2,1,128], index: 8, kind: input, shape index: {}]
  %s9 = inlined_call_operand.vmem [shape: f32[2,1,128], index: 9, kind: input, shape index: {}]
  %s10 = inlined_call_operand.hbm [shape: f32[2,128,128], index: 10, kind: input, shape index: {}]
  %s11 = inlined_call_operand.vmem [shape: f32[2,1,128], index: 11, kind: input, shape index: {}]
  %s12 = inlined_call_operand.hbm [shape: f32[2,128,128], index: 12, kind: input, shape index: {}]
  %s13 = inlined_call_operand.vmem [shape: f32[2,1,128], index: 13, kind: input, shape index: {}]
  %s14 = inlined_call_operand.vmem [shape: f32[2,1,128], index: 14, kind: input, shape index: {}]
  %s15 = inlined_call_operand.vmem [shape: f32[2,1,128], index: 15, kind: input, shape index: {}]
  %s16 = inlined_call_operand.vmem [shape: f32[128,128], index: 16, kind: input, shape index: {}]
  %s17 = inlined_call_operand.vmem [shape: f32[1,128], index: 17, kind: input, shape index: {}]
  %s18 = inlined_call_operand.hbm [shape: f32[128,128], index: 18, kind: input, shape index: {}]
  %s19 = inlined_call_operand.vmem [shape: f32[1,128], index: 19, kind: input, shape index: {}]
  %s20 = inlined_call_operand.hbm [shape: f32[2,128], index: 20, kind: output, shape index: {0}]
  %s21 = inlined_call_operand.hbm [shape: f32[2,128], index: 21, kind: output, shape index: {1}]
  %22 = xla_tuple %s20, %s21
  %s23 = sld [smem:[#allocation0]]
  $region114: #{bert_model_predict.1} parent=0
    _
  %s25 = ssub.s32 1, %s23
  %s26 = scalar_select 0, %s25, %s23
  $region1: #{bert_model_predict.1} parent=0
    #allocation2 [shape = 'u8[393216]{0}', space=vmem, size = 0x60000, scoped, tag = 'input window, operand 4, single buffered']
    #allocation3 [shape = 's32[1]{0}', space=sflag, size = 0x4, scoped, tag = 'scoped memory for bert_model_predict.1']
    #allocation4 [shape = 's32[1]{0}', space=sflag, size = 0x4, scoped, tag = 'scoped memory for bert_model_predict.1']
    #allocation5 [shape = 'u8[131072]{0}', space=vmem, size = 0x20000, scoped, tag = 'input window, operand 10, single buffered']
    #allocation6 [shape = 's32[1]{0}', space=sflag, size = 0x4, scoped, tag = 'scoped memory for bert_model_predict.1']
    #allocation7 [shape = 'u8[131072]{0}', space=vmem, size = 0x20000, scoped, tag = 'input window, operand 12, single buffered']
    #allocation8 [shape = 'u8[65536]{0}', space=vmem, size = 0x10000, scoped, tag = 'input window, operand 18, single buffered']
    #allocation9 [shape = 's32[1]{0}', space=sflag, size = 0x4, scoped, tag = 'scoped memory for bert_model_predict.1']
    #allocation10 [shape = 'u8[1024]{0}', space=vmem, size = 0x400, scoped, tag = 'output window, operand 0, single buffered']
    #allocation11 [shape = 'u8[1024]{0}', space=vmem, size = 0x400, scoped, tag = 'output window, operand 1, single buffered']
    #allocation12 [shape = 's32[1]{0}', space=sflag, size = 0x4, scoped, tag = 'scoped memory for bert_model_predict.1']
    %27 = vsyncpa [#allocation3], 0
    %28 = vsyncpa [#allocation6], 0
    %29 = vsyncpa [#allocation9], 0
    %30 = vsyncpa [#allocation4], 0
    %31 = vsyncpa [#allocation12], 0
    // Predicated region
    $region2: #{bert_model_predict.1} parent=1 // pred_check
      _
    $region3: #{bert_model_predict.1} parent=1 // pred_check_branch
      %33 = sbr.rel (0) target = $region5
    $region4: #{bert_model_predict.1} parent=1 // pred_region
      _
    $region5: #{bert_model_predict.1} parent=1 // pred_fallthru
      _
    // Predicated region
    $region6: #{bert_model_predict.1} parent=1 // pred_check
      _
    $region7: #{bert_model_predict.1} parent=1 // pred_check_branch
      %35 = sbr.rel (0) target = $region9
    $region8: #{bert_model_predict.1} parent=1 // pred_region
      _
    $region9: #{bert_model_predict.1} parent=1 // pred_fallthru
      _
    // Predicated region
    $region10: #{bert_model_predict.1} parent=1 // pred_check
      _
    $region11: #{bert_model_predict.1} parent=1 // pred_check_branch
      %37 = sbr.rel (0) target = $region13
    $region12: #{bert_model_predict.1} parent=1 // pred_region
      _
    $region13: #{bert_model_predict.1} parent=1 // pred_fallthru
      _
    // Predicated region
    $region14: #{bert_model_predict.1} parent=1 // pred_check
      _
    $region15: #{bert_model_predict.1} parent=1 // pred_check_branch
      %39 = sbr.rel (0) target = $region17
    $region16: #{bert_model_predict.1} parent=1 // pred_region
      _
    $region17: #{bert_model_predict.1} parent=1 // pred_fallthru
      _
    // Predicated region
    $region18: #{bert_model_predict.1} parent=1 // pred_check
      _
    $region19: #{bert_model_predict.1} parent=1 // pred_check_branch
      %41 = sbr.rel (0) target = $region21
    $region20: #{bert_model_predict.1} parent=1 // pred_region
      %s43 = ssub.s32 12288, 12288
      %44 = vsyncadd [#allocation3], %s43
      %s45 = sshll.u32 [#allocation2], 4
      %s46 = int_to_ptr.vmem [resolvable:$true] %s45
      %51 = dma.hbm_to_vmem [thread:$0]  %s4, 12288, %s46, [#allocation3], 384, 384, 24
    $region21: #{bert_model_predict.1} parent=1 // pred_fallthru
      _
    // Predicated region
    $region22: #{bert_model_predict.1} parent=1 // pred_check
      _
    $region23: #{bert_model_predict.1} parent=1 // pred_check_branch
      %53 = sbr.rel (0) target = $region25
    $region24: #{bert_model_predict.1} parent=1 // pred_region
      _
    $region25: #{bert_model_predict.1} parent=1 // pred_fallthru
      _
    // Predicated region
    $region26: #{bert_model_predict.1} parent=1 // pred_check
      _
    $region27: #{bert_model_predict.1} parent=1 // pred_check_branch
      %55 = sbr.rel (0) target = $region29
    $region28: #{bert_model_predict.1} parent=1 // pred_region
      _
    $region29: #{bert_model_predict.1} parent=1 // pred_fallthru
      _
    // Predicated region
    $region30: #{bert_model_predict.1} parent=1 // pred_check
      _
    $region31: #{bert_model_predict.1} parent=1 // pred_check_branch
      %57 = sbr.rel (0) target = $region33
    $region32: #{bert_model_predict.1} parent=1 // pred_region
      _
    $region33: #{bert_model_predict.1} parent=1 // pred_fallthru
      _
    // Predicated region
    $region34: #{bert_model_predict.1} parent=1 // pred_check
      _
    $region35: #{bert_model_predict.1} parent=1 // pred_check_branch
      %59 = sbr.rel (0) target = $region37
    $region36: #{bert_model_predict.1} parent=1 // pred_region
      _
    $region37: #{bert_model_predict.1} parent=1 // pred_fallthru
      _
    // Predicated region
    $region38: #{bert_model_predict.1} parent=1 // pred_check
      _
    $region39: #{bert_model_predict.1} parent=1 // pred_check_branch
      %61 = sbr.rel (0) target = $region41
    $region40: #{bert_model_predict.1} parent=1 // pred_region
      _
    $region41: #{bert_model_predict.1} parent=1 // pred_fallthru
      _
    // Predicated region
    $region42: #{bert_model_predict.1} parent=1 // pred_check
      _
    $region43: #{bert_model_predict.1} parent=1 // pred_check_branch
      %63 = sbr.rel (0) target = $region45
    $region44: #{bert_model_predict.1} parent=1 // pred_region
      %s65 = ssub.s32 4096, 4096
      %66 = vsyncadd [#allocation6], %s65
      %s67 = sshll.u32 [#allocation5], 4
      %s68 = int_to_ptr.vmem [resolvable:$true] %s67
      %73 = dma.hbm_to_vmem [thread:$0]  %s10, 4096, %s68, [#allocation6], 128, 128, 8
    $region45: #{bert_model_predict.1} parent=1 // pred_fallthru
      _
    // Predicated region
    $region46: #{bert_model_predict.1} parent=1 // pred_check
      _
    $region47: #{bert_model_predict.1} parent=1 // pred_check_branch
      %75 = sbr.rel (0) target = $region49
    $region48: #{bert_model_predict.1} parent=1 // pred_region
      _
    $region49: #{bert_model_predict.1} parent=1 // pred_fallthru
      _
    // Predicated region
    $region50: #{bert_model_predict.1} parent=1 // pred_check
      _
    $region51: #{bert_model_predict.1} parent=1 // pred_check_branch
      %77 = sbr.rel (0) target = $region53
    $region52: #{bert_model_predict.1} parent=1 // pred_region
      %s79 = ssub.s32 4096, 4096
      %80 = vsyncadd [#allocation6], %s79
      %s81 = sshll.u32 [#allocation7], 4
      %s82 = int_to_ptr.vmem [resolvable:$true] %s81
      %87 = dma.hbm_to_vmem [thread:$0]  %s12, 4096, %s82, [#allocation6], 128, 128, 8
    $region53: #{bert_model_predict.1} parent=1 // pred_fallthru
      _
    // Predicated region
    $region54: #{bert_model_predict.1} parent=1 // pred_check
      _
    $region55: #{bert_model_predict.1} parent=1 // pred_check_branch
      %89 = sbr.rel (0) target = $region57
    $region56: #{bert_model_predict.1} parent=1 // pred_region
      _
    $region57: #{bert_model_predict.1} parent=1 // pred_fallthru
      _
    // Predicated region
    $region58: #{bert_model_predict.1} parent=1 // pred_check
      _
    $region59: #{bert_model_predict.1} parent=1 // pred_check_branch
      %91 = sbr.rel (0) target = $region61
    $region60: #{bert_model_predict.1} parent=1 // pred_region
      _
    $region61: #{bert_model_predict.1} parent=1 // pred_fallthru
      _
    // Predicated region
    $region62: #{bert_model_predict.1} parent=1 // pred_check
      _
    $region63: #{bert_model_predict.1} parent=1 // pred_check_branch
      %93 = sbr.rel (0) target = $region65
    $region64: #{bert_model_predict.1} parent=1 // pred_region
      _
    $region65: #{bert_model_predict.1} parent=1 // pred_fallthru
      _
    // Predicated region
    $region66: #{bert_model_predict.1} parent=1 // pred_check
      _
    $region67: #{bert_model_predict.1} parent=1 // pred_check_branch
      %95 = sbr.rel (0) target = $region69
    $region68: #{bert_model_predict.1} parent=1 // pred_region
      _
    $region69: #{bert_model_predict.1} parent=1 // pred_fallthru
      _
    // Predicated region
    $region70: #{bert_model_predict.1} parent=1 // pred_check
      _
    $region71: #{bert_model_predict.1} parent=1 // pred_check_branch
      %97 = sbr.rel (0) target = $region73
    $region72: #{bert_model_predict.1} parent=1 // pred_region
      _
    $region73: #{bert_model_predict.1} parent=1 // pred_fallthru
      _
    // Predicated region
    $region74: #{bert_model_predict.1} parent=1 // pred_check
      _
    $region75: #{bert_model_predict.1} parent=1 // pred_check_branch
      %99 = sbr.rel (0) target = $region77
    $region76: #{bert_model_predict.1} parent=1 // pred_region
      %s101 = ssub.s32 2048, 2048
      %102 = vsyncadd [#allocation9], %s101
      %s103 = sshll.u32 [#allocation8], 4
      %s104 = int_to_ptr.vmem [resolvable:$true] %s103
      %109 = dma.hbm_to_vmem [thread:$0]  %s18, 2048, %s104, [#allocation9], 128, 128, 8
    $region77: #{bert_model_predict.1} parent=1 // pred_fallthru
      _
    // Predicated region
    $region78: #{bert_model_predict.1} parent=1 // pred_check
      _
    $region79: #{bert_model_predict.1} parent=1 // pred_check_branch
      %111 = sbr.rel (0) target = $region81
    $region80: #{bert_model_predict.1} parent=1 // pred_region
      _
    $region81: #{bert_model_predict.1} parent=1 // pred_fallthru
      _
    // Predicated region
    $region82: #{bert_model_predict.1} parent=1 // pred_check
      _
    $region83: #{bert_model_predict.1} parent=1 // pred_check_branch
      %113 = sbr.rel (0) target = $region85
    $region84: #{bert_model_predict.1} parent=1 // pred_region
      %114 = dma.done [#allocation3], 12288
    $region85: #{bert_model_predict.1} parent=1 // pred_fallthru
      _
    // Predicated region
    $region86: #{bert_model_predict.1} parent=1 // pred_check
      _
    $region87: #{bert_model_predict.1} parent=1 // pred_check_branch
      %116 = sbr.rel (0) target = $region89
    $region88: #{bert_model_predict.1} parent=1 // pred_region
      %117 = dma.done [#allocation6], 4096
    $region89: #{bert_model_predict.1} parent=1 // pred_fallthru
      _
    // Predicated region
    $region90: #{bert_model_predict.1} parent=1 // pred_check
      _
    $region91: #{bert_model_predict.1} parent=1 // pred_check_branch
      %119 = sbr.rel (0) target = $region93
    $region92: #{bert_model_predict.1} parent=1 // pred_region
      %120 = dma.done [#allocation6], 4096
    $region93: #{bert_model_predict.1} parent=1 // pred_fallthru
      _
    // Predicated region
    $region94: #{bert_model_predict.1} parent=1 // pred_check
      _
    $region95: #{bert_model_predict.1} parent=1 // pred_check_branch
      %122 = sbr.rel (0) target = $region97
    $region96: #{bert_model_predict.1} parent=1 // pred_region
      %123 = dma.done [#allocation9], 2048
    $region97: #{bert_model_predict.1} parent=1 // pred_fallthru
      _
    %v124 = vlaneseq
    %v125 = vand.u32 %v124, 127
    %vm126 = vcmp.lt.s32.totalorder %v125, 32
    %vm127 = vcmp.ge.s32.totalorder %v125, 0
    %vm128 = vcmp.lt.s32.totalorder %v125, 8
    %vm129 = vmand %vm127, %vm128
    %v130 = vsel %vm129, 1, 0
    %v131 = vcvt.s32.f32 %v130
    %vm132 = vcmp.ge.s32.totalorder %v125, 8
    %vm133 = vcmp.lt.s32.totalorder %v125, 16
    %vm134 = vmand %vm132, %vm133
    %v135 = vsel %vm134, 1, 0
    %v136 = vcvt.s32.f32 %v135
    %vm137 = vcmp.ge.s32.totalorder %v125, 16
    %vm138 = vcmp.lt.s32.totalorder %v125, 24
    %vm139 = vmand %vm137, %vm138
    %v140 = vsel %vm139, 1, 0
    %v141 = vcvt.s32.f32 %v140
    %vm142 = vcmp.ge.s32.totalorder %v125, 24
    %vm143 = vmand %vm142, %vm126
    %v144 = vsel %vm143, 1, 0
    %v145 = vcvt.s32.f32 %v144
    %v146 = vld [vmem:[%s1] sm:$0xff]
    %v147 = vld [vmem:[%s1 + $0x8] sm:$0xff]
    %v148 = vld [vmem:[%s0] sm:$0xff]
    %v149 = vld [vmem:[%s0 + $0x8] sm:$0xff]
    %v150 = vld [vmem:[%s2] sm:$0x1]
    %v151 = vld [vmem:[%s3] sm:$0x1]
    %152 = vadd.xlane.f32.xlu0 %v148
    %v153 = vpop.xlane.xlu0 %152
    %154 = vadd.xlane.f32.xlu0 %v149
    %v155 = vpop.xlane.xlu0 %154
    %v156 = vmul.f32 %v153, 0.03125
    %v157 = vmul.f32 %v155, 0.03125
    %v158 = vsub.f32 %v148, %v156
    %v159 = vsub.f32 %v149, %v157
    %v160 = vsel %vm126, 1, 0
    %vm161 = vcmp.eq.s32.totalorder %v160, 1
    %v162 = vsel %vm161, %v158, 0.0
    %v163 = vsel %vm161, %v159, 0.0
    %v164 = vmul.f32 %v162, %v162
    %v165 = vmul.f32 %v163, %v163
    %166 = vadd.xlane.f32.xlu0 %v164
    %v167 = vpop.xlane.xlu0 %166
    %168 = vadd.xlane.f32.xlu0 %v165
    %v169 = vpop.xlane.xlu0 %168
    %v170 = vmul.f32 %v167, 0.03125
    %v171 = vmul.f32 %v169, 0.03125
    %v172 = vadd.f32 %v170, 1e-12
    %v173 = vadd.f32 %v171, 1e-12
    %v174 = vrsqrt.pop %v172
    %v175 = vrsqrt.pop %v173
    %v176 = vmul.f32 %v162, %v174
    %v177 = vmul.f32 %v163, %v175
    %v179 = vlaneseq
    %v180 = vshrl.u32 %v179, 7
    %v181 = vsub.s32 0, %v180
    %v182 = vrot.slane %v150, %v181
    %v184 = vmul.f32 %v176, %v182
    %v185 = vmul.f32 %v177, %v182
    %v187 = vlaneseq
    %v188 = vshrl.u32 %v187, 7
    %v189 = vsub.s32 0, %v188
    %v190 = vrot.slane %v151, %v189
    %v192 = vadd.f32 %v184, %v190
    %v193 = vadd.f32 %v185, %v190
    %v194 = vld [vmem:[#allocation2] sm:$0xff]
    %v195 = vld [vmem:[#allocation2 + $0x8] sm:$0xff]
    %v196 = vld [vmem:[#allocation2 + $0x10] sm:$0xff]
    %v197 = vld [vmem:[#allocation2 + $0x18] sm:$0xff]
    %v198 = vld [vmem:[#allocation2 + $0x20] sm:$0xff]
    %v199 = vld [vmem:[#allocation2 + $0x28] sm:$0xff]
    %v200 = vld [vmem:[#allocation2 + $0x30] sm:$0xff]
    %v201 = vld [vmem:[#allocation2 + $0x38] sm:$0xff]
    %v202 = vld [vmem:[#allocation2 + $0x40] sm:$0xff]
    %v203 = vld [vmem:[#allocation2 + $0x48] sm:$0xff]
    %v204 = vld [vmem:[#allocation2 + $0x50] sm:$0xff]
    %v205 = vld [vmem:[#allocation2 + $0x58] sm:$0xff]
    %v206 = vld [vmem:[#allocation2 + $0x60] sm:$0xff]
    %v207 = vld [vmem:[#allocation2 + $0x68] sm:$0xff]
    %v208 = vld [vmem:[#allocation2 + $0x70] sm:$0xff]
    %v209 = vld [vmem:[#allocation2 + $0x78] sm:$0xff]
    %v210 = vld [vmem:[#allocation2 + $0x80] sm:$0xff]
    %v211 = vld [vmem:[#allocation2 + $0x88] sm:$0xff]
    %v212 = vld [vmem:[#allocation2 + $0x90] sm:$0xff]
    %v213 = vld [vmem:[#allocation2 + $0x98] sm:$0xff]
    %v214 = vld [vmem:[#allocation2 + $0xa0] sm:$0xff]
    %v215 = vld [vmem:[#allocation2 + $0xa8] sm:$0xff]
    %v216 = vld [vmem:[#allocation2 + $0xb0] sm:$0xff]
    %v217 = vld [vmem:[#allocation2 + $0xb8] sm:$0xff]
    %v218 = vld [vmem:[#allocation2 + $0xc0] sm:$0xff]
    %v219 = vld [vmem:[#allocation2 + $0xc8] sm:$0xff]
    %v220 = vld [vmem:[#allocation2 + $0xd0] sm:$0xff]
    %v221 = vld [vmem:[#allocation2 + $0xd8] sm:$0xff]
    %v222 = vld [vmem:[#allocation2 + $0xe0] sm:$0xff]
    %v223 = vld [vmem:[#allocation2 + $0xe8] sm:$0xff]
    %v224 = vld [vmem:[#allocation2 + $0xf0] sm:$0xff]
    %v225 = vld [vmem:[#allocation2 + $0xf8] sm:$0xff]
    %v226 = vld [vmem:[#allocation2 + $0x100] sm:$0xff]
    %v227 = vld [vmem:[#allocation2 + $0x108] sm:$0xff]
    %v228 = vld [vmem:[#allocation2 + $0x110] sm:$0xff]
    %v229 = vld [vmem:[#allocation2 + $0x118] sm:$0xff]
    %v230 = vld [vmem:[#allocation2 + $0x120] sm:$0xff]
    %v231 = vld [vmem:[#allocation2 + $0x128] sm:$0xff]
    %v232 = vld [vmem:[#allocation2 + $0x130] sm:$0xff]
    %v233 = vld [vmem:[#allocation2 + $0x138] sm:$0xff]
    %v234 = vld [vmem:[#allocation2 + $0x140] sm:$0xff]
    %v235 = vld [vmem:[#allocation2 + $0x148] sm:$0xff]
    %v236 = vld [vmem:[#allocation2 + $0x150] sm:$0xff]
    %v237 = vld [vmem:[#allocation2 + $0x158] sm:$0xff]
    %v238 = vld [vmem:[#allocation2 + $0x160] sm:$0xff]
    %v239 = vld [vmem:[#allocation2 + $0x168] sm:$0xff]
    %v240 = vld [vmem:[#allocation2 + $0x170] sm:$0xff]
    %v241 = vld [vmem:[#allocation2 + $0x178] sm:$0xff]
    %v242 = vld [vmem:[%s5] sm:$0x7]
    %v244 = vlaneseq
    %v245 = vshrl.u32 %v244, 7
    %v246 = vsub.s32 0, %v245
    %v247 = vrot.slane %v242, %v246
    %v248 = vlaneseq
    %v249 = vshrl.u32 %v248, 7
    %v250 = vsub.s32 1, %v249
    %v251 = vrot.slane %v242, %v250
    %v252 = vlaneseq
    %v253 = vshrl.u32 %v252, 7
    %v254 = vsub.s32 2, %v253
    %v255 = vrot.slane %v242, %v254
    %259 = vmatprep.subr.mxu0 %v240
    %260 = vmatpush1.msra.mxu0 %v239
    %261 = vmatprep.subr.mxu0 %v237
    %262 = vmatpush1.msra.mxu0 %v236
    %263 = vmatprep.subr.mxu0 %v234
    %264 = vmatpush1.msra.mxu0 %v233
    %265 = vmatprep.subr.mxu0 %v231
    %266 = vmatpush1.msra.mxu0 %v230
    %267 = vmatprep.subr.mxu0 %v228
    %268 = vmatpush1.msra.mxu0 %v227
    %269 = vmatprep.subr.mxu0 %v225
    %270 = vmatpush1.msra.mxu0 %v224
    %271 = vmatprep.subr.mxu0 %v222
    %272 = vmatpush1.msra.mxu0 %v221
    %273 = vmatprep.subr.mxu0 %v219
    %274 = vmatpush1.msra.mxu0 %v218
    %275 = vmatprep.subr.mxu0 %v216
    %276 = vmatpush1.msra.mxu0 %v215
    %277 = vmatprep.subr.mxu0 %v213
    %278 = vmatpush1.msra.mxu0 %v212
    %279 = vmatprep.subr.mxu0 %v210
    %280 = vmatpush1.msra.mxu0 %v209
    %281 = vmatprep.subr.mxu0 %v207
    %282 = vmatpush1.msra.mxu0 %v206
    %283 = vmatprep.subr.mxu0 %v204
    %284 = vmatpush1.msra.mxu0 %v203
    %285 = vmatprep.subr.mxu0 %v201
    %286 = vmatpush1.msra.mxu0 %v200
    %287 = vmatprep.subr.mxu0 %v198
    %288 = vmatpush1.msra.mxu0 %v197
    %289 = vmatprep.subr.mxu0 %v195
    %290 = vmatpush1.msra.mxu0 %v194
    %291 = vmatprep.subr.mxu0 0.0
    %292 = vmatpush2.msra.mxu0 0.0
    %293 = vmatprep.subr.mxu0 0.0
    %294 = vmatpush2.msra.mxu0 0.0
    %295 = vmatprep.subr.mxu0 0.0
    %296 = vmatpush2.msra.mxu0 0.0
    %297 = vmatprep.subr.mxu0 0.0
    %298 = vmatpush2.msra.mxu0 0.0
    %299 = vmatprep.subr.mxu0 0.0
    %300 = vmatpush2.msra.mxu0 0.0
    %301 = vmatprep.subr.mxu0 0.0
    %302 = vmatpush2.msra.mxu0 0.0
    %303 = vmatprep.subr.mxu0 0.0
    %304 = vmatpush2.msra.mxu0 0.0
    %305 = vmatprep.subr.mxu0 0.0
    %306 = vmatpush2.msra.mxu0 0.0
    %307 = vmatprep.subr.mxu0 0.0
    %308 = vmatpush2.msra.mxu0 0.0
    %309 = vmatprep.subr.mxu0 0.0
    %310 = vmatpush2.msra.mxu0 0.0
    %311 = vmatprep.subr.mxu0 0.0
    %312 = vmatpush2.msra.mxu0 0.0
    %313 = vmatprep.subr.mxu0 0.0
    %314 = vmatpush2.msra.mxu0 0.0
    %315 = vmatprep.subr.mxu0 0.0
    %316 = vmatpush2.msra.mxu0 0.0
    %317 = vmatprep.subr.mxu0 0.0
    %318 = vmatpush2.msra.mxu0 0.0
    %319 = vmatprep.subr.mxu0 0.0
    %320 = vmatpush2.msra.mxu0 0.0
    %321 = vmatprep.subr.mxu0 0.0
    %322 = vmatpush2.msra.mxu0 0.0
    %323 = vmatprep.mubr.f32.mxu0 0.0
    %324 = vmatmul.mubr.f32.gmra.mxu0 %v192
    %v325 = vpop.f32.mrf.mxu0
    %v326 = vadd.f32 %v247, %v325
    %v327 = vpop.f32.mrf.mxu0
    %v328 = vadd.f32 %v251, %v327
    %329 = vmatprep.mubr.f32.mxu0 0.0
    %330 = vmatmul.mubr.f32.gmra.mxu0 %v193
    %v331 = vpop.f32.mrf.mxu0
    %v332 = vadd.f32 %v247, %v331
    %v333 = vpop.f32.mrf.mxu0
    %v334 = vadd.f32 %v251, %v333
    %335 = vdwg.mxu0
    %336 = vmatprep.subr.mxu0 0.0
    %337 = vmatpush1.msra.mxu0 %v241
    %338 = vmatprep.subr.mxu0 0.0
    %339 = vmatpush1.msra.mxu0 %v238
    %340 = vmatprep.subr.mxu0 0.0
    %341 = vmatpush1.msra.mxu0 %v235
    %342 = vmatprep.subr.mxu0 0.0
    %343 = vmatpush1.msra.mxu0 %v232
    %344 = vmatprep.subr.mxu0 0.0
    %345 = vmatpush1.msra.mxu0 %v229
    %346 = vmatprep.subr.mxu0 0.0
    %347 = vmatpush1.msra.mxu0 %v226
    %348 = vmatprep.subr.mxu0 0.0
    %349 = vmatpush1.msra.mxu0 %v223
    %350 = vmatprep.subr.mxu0 0.0
    %351 = vmatpush1.msra.mxu0 %v220
    %352 = vmatprep.subr.mxu0 0.0
    %353 = vmatpush1.msra.mxu0 %v217
    %354 = vmatprep.subr.mxu0 0.0
    %355 = vmatpush1.msra.mxu0 %v214
    %356 = vmatprep.subr.mxu0 0.0
    %357 = vmatpush1.msra.mxu0 %v211
    %358 = vmatprep.subr.mxu0 0.0
    %359 = vmatpush1.msra.mxu0 %v208
    %360 = vmatprep.subr.mxu0 0.0
    %361 = vmatpush1.msra.mxu0 %v205
    %362 = vmatprep.subr.mxu0 0.0
    %363 = vmatpush1.msra.mxu0 %v202
    %364 = vmatprep.subr.mxu0 0.0
    %365 = vmatpush1.msra.mxu0 %v199
    %366 = vmatprep.subr.mxu0 0.0
    %367 = vmatpush1.msra.mxu0 %v196
    %368 = vmatprep.subr.mxu0 0.0
    %369 = vmatpush2.msra.mxu0 0.0
    %370 = vmatprep.subr.mxu0 0.0
    %371 = vmatpush2.msra.mxu0 0.0
    %372 = vmatprep.subr.mxu0 0.0
    %373 = vmatpush2.msra.mxu0 0.0
    %374 = vmatprep.subr.mxu0 0.0
    %375 = vmatpush2.msra.mxu0 0.0
    %376 = vmatprep.subr.mxu0 0.0
    %377 = vmatpush2.msra.mxu0 0.0
    %378 = vmatprep.subr.mxu0 0.0
    %379 = vmatpush2.msra.mxu0 0.0
    %380 = vmatprep.subr.mxu0 0.0
    %381 = vmatpush2.msra.mxu0 0.0
    %382 = vmatprep.subr.mxu0 0.0
    %383 = vmatpush2.msra.mxu0 0.0
    %384 = vmatprep.subr.mxu0 0.0
    %385 = vmatpush2.msra.mxu0 0.0
    %386 = vmatprep.subr.mxu0 0.0
    %387 = vmatpush2.msra.mxu0 0.0
    %388 = vmatprep.subr.mxu0 0.0
    %389 = vmatpush2.msra.mxu0 0.0
    %390 = vmatprep.subr.mxu0 0.0
    %391 = vmatpush2.msra.mxu0 0.0
    %392 = vmatprep.subr.mxu0 0.0
    %393 = vmatpush2.msra.mxu0 0.0
    %394 = vmatprep.subr.mxu0 0.0
    %395 = vmatpush2.msra.mxu0 0.0
    %396 = vmatprep.subr.mxu0 0.0
    %397 = vmatpush2.msra.mxu0 0.0
    %398 = vmatprep.subr.mxu0 0.0
    %399 = vmatpush2.msra.mxu0 0.0
    %400 = vmatprep.mubr.f32.mxu0 0.0
    %401 = vmatmul.mubr.f32.gmra.mxu0 %v192
    %v402 = vpop.f32.mrf.mxu0
    %v403 = vadd.f32 %v255, %v402
    %v404 = vpop.f32.mrf.mxu0
    %405 = vmatprep.mubr.f32.mxu0 0.0
    %406 = vmatmul.mubr.f32.gmra.mxu0 %v193
    %v407 = vpop.f32.mrf.mxu0
    %v408 = vadd.f32 %v255, %v407
    %v409 = vpop.f32.mrf.mxu0
    %410 = vdwg.mxu0
    %v411 = vmul.f32 %v326, %v131
    %v412 = vmul.f32 %v332, %v131
    %413 = vmatprep.subr.mxu0 0.0
    %414 = vmatpush1.xpose.msra.mxu0 0.0
    %415 = vmatprep.subr.mxu0 0.0
    %416 = vmatpush1.xpose.msra.mxu0 0.0
    %417 = vmatprep.subr.mxu0 0.0
    %418 = vmatpush1.xpose.msra.mxu0 0.0
    %419 = vmatprep.subr.mxu0 0.0
    %420 = vmatpush1.xpose.msra.mxu0 0.0
    %421 = vmatprep.subr.mxu0 0.0
    %422 = vmatpush1.xpose.msra.mxu0 0.0
    %423 = vmatprep.subr.mxu0 0.0
    %424 = vmatpush1.xpose.msra.mxu0 0.0
    %425 = vmatprep.subr.mxu0 0.0
    %426 = vmatpush1.xpose.msra.mxu0 0.0
    %427 = vmatprep.subr.mxu0 0.0
    %428 = vmatpush1.xpose.msra.mxu0 0.0
    %429 = vmatprep.subr.mxu0 0.0
    %430 = vmatpush1.xpose.msra.mxu0 0.0
    %431 = vmatprep.subr.mxu0 0.0
    %432 = vmatpush1.xpose.msra.mxu0 0.0
    %433 = vmatprep.subr.mxu0 0.0
    %434 = vmatpush1.xpose.msra.mxu0 0.0
    %435 = vmatprep.subr.mxu0 0.0
    %436 = vmatpush1.xpose.msra.mxu0 0.0
    %437 = vmatprep.subr.mxu0 0.0
    %438 = vmatpush1.xpose.msra.mxu0 0.0
    %439 = vmatprep.subr.mxu0 0.0
    %440 = vmatpush1.xpose.msra.mxu0 0.0
    %441 = vmatprep.subr.mxu0 0.0
    %442 = vmatpush1.xpose.msra.mxu0 %v334
    %443 = vmatprep.subr.mxu0 0.0
    %444 = vmatpush1.xpose.msra.mxu0 %v328
    %445 = vmatprep.subr.mxu0 0.0
    %446 = vmatpush2.xpose.msra.mxu0 0.0
    %447 = vmatprep.subr.mxu0 0.0
    %448 = vmatpush2.xpose.msra.mxu0 0.0
    %449 = vmatprep.subr.mxu0 0.0
    %450 = vmatpush2.xpose.msra.mxu0 0.0
    %451 = vmatprep.subr.mxu0 0.0
    %452 = vmatpush2.xpose.msra.mxu0 0.0
    %453 = vmatprep.subr.mxu0 0.0
    %454 = vmatpush2.xpose.msra.mxu0 0.0
    %455 = vmatprep.subr.mxu0 0.0
    %456 = vmatpush2.xpose.msra.mxu0 0.0
    %457 = vmatprep.subr.mxu0 0.0
    %458 = vmatpush2.xpose.msra.mxu0 0.0
    %459 = vmatprep.subr.mxu0 0.0
    %460 = vmatpush2.xpose.msra.mxu0 0.0
    %461 = vmatprep.subr.mxu0 0.0
    %462 = vmatpush2.xpose.msra.mxu0 0.0
    %463 = vmatprep.subr.mxu0 0.0
    %464 = vmatpush2.xpose.msra.mxu0 0.0
    %465 = vmatprep.subr.mxu0 0.0
    %466 = vmatpush2.xpose.msra.mxu0 0.0
    %467 = vmatprep.subr.mxu0 0.0
    %468 = vmatpush2.xpose.msra.mxu0 0.0
    %469 = vmatprep.subr.mxu0 0.0
    %470 = vmatpush2.xpose.msra.mxu0 0.0
    %471 = vmatprep.subr.mxu0 0.0
    %472 = vmatpush2.xpose.msra.mxu0 0.0
    %473 = vmatprep.subr.mxu0 0.0
    %474 = vmatpush2.xpose.msra.mxu0 0.0
    %475 = vmatprep.subr.mxu0 0.0
    %476 = vmatpush2.xpose.msra.mxu0 0.0
    %477 = vmatprep.mubr.f32.mxu0 0.0
    %478 = vmatmul.mubr.f32.gmra.mxu0 %v411
    %v479 = vpop.f32.mrf.mxu0
    %v480 = vadd.f32 0.0, %v479
    %v481 = vpop.f32.mrf.mxu0
    %482 = vmatprep.mubr.f32.mxu0 0.0
    %483 = vmatmul.mubr.f32.gmra.mxu0 %v412
    %v484 = vpop.f32.mrf.mxu0
    %v485 = vadd.f32 0.0, %v484
    %v486 = vpop.f32.mrf.mxu0
    %487 = vdwg.mxu0
    %v488 = vmul.f32 %v480, 0.35355338
    %v489 = vmul.f32 %v485, 0.35355338
    %v490 = vadd.f32 %v488, %v146
    %v491 = vadd.f32 %v489, %v147
    %vm492 = vcmask 130048
    %v493 = vsel %vm492, %v490, -inf
    %494 = vmax.xlane.f32.xlu0 %v493
    %v495 = vpop.xlane.xlu0 %494
    %v496 = vsel %vm492, %v491, -inf
    %497 = vmax.xlane.f32.xlu0 %v496
    %v498 = vpop.xlane.xlu0 %497
    %v499 = vsub.f32 %v490, %v495
    %v500 = vsub.f32 %v491, %v498
    %v501 = vmul.f32 %v499, 1.442695
    %v502 = vpow.pop %v501
    %v503 = vmul.f32 %v500, 1.442695
    %v504 = vpow.pop %v503
    %v505 = vsel %vm492, %v502, 0.0
    %506 = vadd.xlane.f32.xlu0 %v505
    %v507 = vpop.xlane.xlu0 %506
    %v508 = vsel %vm492, %v504, 0.0
    %509 = vadd.xlane.f32.xlu0 %v508
    %v510 = vpop.xlane.xlu0 %509
    %v511 = vrcp.pop %v507
    %v512 = vmul.f32 %v502, %v511
    %v513 = vrcp.pop %v510
    %v514 = vmul.f32 %v504, %v513
    %v516 = vsel %vm492, %v512, 0
    %v519 = vsel %vm492, %v514, 0
    %521 = vmatprep.subr.mxu0 0.0
    %522 = vmatpush1.msra.mxu0 0.0
    %523 = vmatprep.subr.mxu0 0.0
    %524 = vmatpush1.msra.mxu0 0.0
    %525 = vmatprep.subr.mxu0 0.0
    %526 = vmatpush1.msra.mxu0 0.0
    %527 = vmatprep.subr.mxu0 0.0
    %528 = vmatpush1.msra.mxu0 0.0
    %529 = vmatprep.subr.mxu0 0.0
    %530 = vmatpush1.msra.mxu0 0.0
    %531 = vmatprep.subr.mxu0 0.0
    %532 = vmatpush1.msra.mxu0 0.0
    %533 = vmatprep.subr.mxu0 0.0
    %534 = vmatpush1.msra.mxu0 0.0
    %535 = vmatprep.subr.mxu0 0.0
    %536 = vmatpush1.msra.mxu0 0.0
    %537 = vmatprep.subr.mxu0 0.0
    %538 = vmatpush1.msra.mxu0 0.0
    %539 = vmatprep.subr.mxu0 0.0
    %540 = vmatpush1.msra.mxu0 0.0
    %541 = vmatprep.subr.mxu0 0.0
    %542 = vmatpush1.msra.mxu0 0.0
    %543 = vmatprep.subr.mxu0 0.0
    %544 = vmatpush1.msra.mxu0 0.0
    %545 = vmatprep.subr.mxu0 0.0
    %546 = vmatpush1.msra.mxu0 0.0
    %547 = vmatprep.subr.mxu0 0.0
    %548 = vmatpush1.msra.mxu0 0.0
    %549 = vmatprep.subr.mxu0 0.0
    %550 = vmatpush1.msra.mxu0 %v408
    %551 = vmatprep.subr.mxu0 0.0
    %552 = vmatpush1.msra.mxu0 %v403
    %553 = vmatprep.subr.mxu0 0.0
    %554 = vmatpush2.msra.mxu0 0.0
    %555 = vmatprep.subr.mxu0 0.0
    %556 = vmatpush2.msra.mxu0 0.0
    %557 = vmatprep.subr.mxu0 0.0
    %558 = vmatpush2.msra.mxu0 0.0
    %559 = vmatprep.subr.mxu0 0.0
    %560 = vmatpush2.msra.mxu0 0.0
    %561 = vmatprep.subr.mxu0 0.0
    %562 = vmatpush2.msra.mxu0 0.0
    %563 = vmatprep.subr.mxu0 0.0
    %564 = vmatpush2.msra.mxu0 0.0
    %565 = vmatprep.subr.mxu0 0.0
    %566 = vmatpush2.msra.mxu0 0.0
    %567 = vmatprep.subr.mxu0 0.0
    %568 = vmatpush2.msra.mxu0 0.0
    %569 = vmatprep.subr.mxu0 0.0
    %570 = vmatpush2.msra.mxu0 0.0
    %571 = vmatprep.subr.mxu0 0.0
    %572 = vmatpush2.msra.mxu0 0.0
    %573 = vmatprep.subr.mxu0 0.0
    %574 = vmatpush2.msra.mxu0 0.0
    %575 = vmatprep.subr.mxu0 0.0
    %576 = vmatpush2.msra.mxu0 0.0
    %577 = vmatprep.subr.mxu0 0.0
    %578 = vmatpush2.msra.mxu0 0.0
    %579 = vmatprep.subr.mxu0 0.0
    %580 = vmatpush2.msra.mxu0 0.0
    %581 = vmatprep.subr.mxu0 0.0
    %582 = vmatpush2.msra.mxu0 0.0
    %583 = vmatprep.subr.mxu0 0.0
    %584 = vmatpush2.msra.mxu0 0.0
    %585 = vmatprep.mubr.f32.mxu0 0.0
    %586 = vmatmul.mubr.f32.gmra.mxu0 %v516
    %v587 = vpop.f32.mrf.mxu0
    %v588 = vadd.f32 0.0, %v587
    %v589 = vpop.f32.mrf.mxu0
    %590 = vmatprep.mubr.f32.mxu0 0.0
    %591 = vmatmul.mubr.f32.gmra.mxu0 %v519
    %v592 = vpop.f32.mrf.mxu0
    %v593 = vadd.f32 0.0, %v592
    %v594 = vpop.f32.mrf.mxu0
    %595 = vdwg.mxu0
    %v596 = vmul.f32 %v588, %v131
    %v597 = vmul.f32 %v593, %v131
    %v598 = vadd.f32 %v596, 0.0
    %v599 = vadd.f32 %v597, 0.0
    %v600 = vmul.f32 %v326, %v136
    %v601 = vmul.f32 %v332, %v136
    %602 = vmatprep.subr.mxu0 0.0
    %603 = vmatpush1.xpose.msra.mxu0 0.0
    %604 = vmatprep.subr.mxu0 0.0
    %605 = vmatpush1.xpose.msra.mxu0 0.0
    %606 = vmatprep.subr.mxu0 0.0
    %607 = vmatpush1.xpose.msra.mxu0 0.0
    %608 = vmatprep.subr.mxu0 0.0
    %609 = vmatpush1.xpose.msra.mxu0 0.0
    %610 = vmatprep.subr.mxu0 0.0
    %611 = vmatpush1.xpose.msra.mxu0 0.0
    %612 = vmatprep.subr.mxu0 0.0
    %613 = vmatpush1.xpose.msra.mxu0 0.0
    %614 = vmatprep.subr.mxu0 0.0
    %615 = vmatpush1.xpose.msra.mxu0 0.0
    %616 = vmatprep.subr.mxu0 0.0
    %617 = vmatpush1.xpose.msra.mxu0 0.0
    %618 = vmatprep.subr.mxu0 0.0
    %619 = vmatpush1.xpose.msra.mxu0 0.0
    %620 = vmatprep.subr.mxu0 0.0
    %621 = vmatpush1.xpose.msra.mxu0 0.0
    %622 = vmatprep.subr.mxu0 0.0
    %623 = vmatpush1.xpose.msra.mxu0 0.0
    %624 = vmatprep.subr.mxu0 0.0
    %625 = vmatpush1.xpose.msra.mxu0 0.0
    %626 = vmatprep.subr.mxu0 0.0
    %627 = vmatpush1.xpose.msra.mxu0 0.0
    %628 = vmatprep.subr.mxu0 0.0
    %629 = vmatpush1.xpose.msra.mxu0 0.0
    %630 = vmatprep.subr.mxu0 0.0
    %631 = vmatpush1.xpose.msra.mxu0 %v334
    %632 = vmatprep.subr.mxu0 0.0
    %633 = vmatpush1.xpose.msra.mxu0 %v328
    %634 = vmatprep.subr.mxu0 0.0
    %635 = vmatpush2.xpose.msra.mxu0 0.0
    %636 = vmatprep.subr.mxu0 0.0
    %637 = vmatpush2.xpose.msra.mxu0 0.0
    %638 = vmatprep.subr.mxu0 0.0
    %639 = vmatpush2.xpose.msra.mxu0 0.0
    %640 = vmatprep.subr.mxu0 0.0
    %641 = vmatpush2.xpose.msra.mxu0 0.0
    %642 = vmatprep.subr.mxu0 0.0
    %643 = vmatpush2.xpose.msra.mxu0 0.0
    %644 = vmatprep.subr.mxu0 0.0
    %645 = vmatpush2.xpose.msra.mxu0 0.0
    %646 = vmatprep.subr.mxu0 0.0
    %647 = vmatpush2.xpose.msra.mxu0 0.0
    %648 = vmatprep.subr.mxu0 0.0
    %649 = vmatpush2.xpose.msra.mxu0 0.0
    %650 = vmatprep.subr.mxu0 0.0
    %651 = vmatpush2.xpose.msra.mxu0 0.0
    %652 = vmatprep.subr.mxu0 0.0
    %653 = vmatpush2.xpose.msra.mxu0 0.0
    %654 = vmatprep.subr.mxu0 0.0
    %655 = vmatpush2.xpose.msra.mxu0 0.0
    %656 = vmatprep.subr.mxu0 0.0
    %657 = vmatpush2.xpose.msra.mxu0 0.0
    %658 = vmatprep.subr.mxu0 0.0
    %659 = vmatpush2.xpose.msra.mxu0 0.0
    %660 = vmatprep.subr.mxu0 0.0
    %661 = vmatpush2.xpose.msra.mxu0 0.0
    %662 = vmatprep.subr.mxu0 0.0
    %663 = vmatpush2.xpose.msra.mxu0 0.0
    %664 = vmatprep.subr.mxu0 0.0
    %665 = vmatpush2.xpose.msra.mxu0 0.0
    %666 = vmatprep.mubr.f32.mxu0 0.0
    %667 = vmatmul.mubr.f32.gmra.mxu0 %v600
    %v668 = vpop.f32.mrf.mxu0
    %v669 = vadd.f32 0.0, %v668
    %v670 = vpop.f32.mrf.mxu0
    %671 = vmatprep.mubr.f32.mxu0 0.0
    %672 = vmatmul.mubr.f32.gmra.mxu0 %v601
    %v673 = vpop.f32.mrf.mxu0
    %v674 = vadd.f32 0.0, %v673
    %v675 = vpop.f32.mrf.mxu0
    %676 = vdwg.mxu0
    %v677 = vmul.f32 %v669, 0.35355338
    %v678 = vmul.f32 %v674, 0.35355338
    %v679 = vadd.f32 %v677, %v146
    %v680 = vadd.f32 %v678, %v147
    %v681 = vsel %vm492, %v679, -inf
    %682 = vmax.xlane.f32.xlu0 %v681
    %v683 = vpop.xlane.xlu0 %682
    %v684 = vsel %vm492, %v680, -inf
    %685 = vmax.xlane.f32.xlu0 %v684
    %v686 = vpop.xlane.xlu0 %685
    %v687 = vsub.f32 %v679, %v683
    %v688 = vsub.f32 %v680, %v686
    %v689 = vmul.f32 %v687, 1.442695
    %v690 = vpow.pop %v689
    %v691 = vmul.f32 %v688, 1.442695
    %v692 = vpow.pop %v691
    %v693 = vsel %vm492, %v690, 0.0
    %694 = vadd.xlane.f32.xlu0 %v693
    %v695 = vpop.xlane.xlu0 %694
    %v696 = vsel %vm492, %v692, 0.0
    %697 = vadd.xlane.f32.xlu0 %v696
    %v698 = vpop.xlane.xlu0 %697
    %v699 = vrcp.pop %v695
    %v700 = vmul.f32 %v690, %v699
    %v701 = vrcp.pop %v698
    %v702 = vmul.f32 %v692, %v701
    %v704 = vsel %vm492, %v700, 0
    %v707 = vsel %vm492, %v702, 0
    %709 = vmatprep.subr.mxu0 0.0
    %710 = vmatpush1.msra.mxu0 0.0
    %711 = vmatprep.subr.mxu0 0.0
    %712 = vmatpush1.msra.mxu0 0.0
    %713 = vmatprep.subr.mxu0 0.0
    %714 = vmatpush1.msra.mxu0 0.0
    %715 = vmatprep.subr.mxu0 0.0
    %716 = vmatpush1.msra.mxu0 0.0
    %717 = vmatprep.subr.mxu0 0.0
    %718 = vmatpush1.msra.mxu0 0.0
    %719 = vmatprep.subr.mxu0 0.0
    %720 = vmatpush1.msra.mxu0 0.0
    %721 = vmatprep.subr.mxu0 0.0
    %722 = vmatpush1.msra.mxu0 0.0
    %723 = vmatprep.subr.mxu0 0.0
    %724 = vmatpush1.msra.mxu0 0.0
    %725 = vmatprep.subr.mxu0 0.0
    %726 = vmatpush1.msra.mxu0 0.0
    %727 = vmatprep.subr.mxu0 0.0
    %728 = vmatpush1.msra.mxu0 0.0
    %729 = vmatprep.subr.mxu0 0.0
    %730 = vmatpush1.msra.mxu0 0.0
    %731 = vmatprep.subr.mxu0 0.0
    %732 = vmatpush1.msra.mxu0 0.0
    %733 = vmatprep.subr.mxu0 0.0
    %734 = vmatpush1.msra.mxu0 0.0
    %735 = vmatprep.subr.mxu0 0.0
    %736 = vmatpush1.msra.mxu0 0.0
    %737 = vmatprep.subr.mxu0 0.0
    %738 = vmatpush1.msra.mxu0 %v408
    %739 = vmatprep.subr.mxu0 0.0
    %740 = vmatpush1.msra.mxu0 %v403
    %741 = vmatprep.subr.mxu0 0.0
    %742 = vmatpush2.msra.mxu0 0.0
    %743 = vmatprep.subr.mxu0 0.0
    %744 = vmatpush2.msra.mxu0 0.0
    %745 = vmatprep.subr.mxu0 0.0
    %746 = vmatpush2.msra.mxu0 0.0
    %747 = vmatprep.subr.mxu0 0.0
    %748 = vmatpush2.msra.mxu0 0.0
    %749 = vmatprep.subr.mxu0 0.0
    %750 = vmatpush2.msra.mxu0 0.0
    %751 = vmatprep.subr.mxu0 0.0
    %752 = vmatpush2.msra.mxu0 0.0
    %753 = vmatprep.subr.mxu0 0.0
    %754 = vmatpush2.msra.mxu0 0.0
    %755 = vmatprep.subr.mxu0 0.0
    %756 = vmatpush2.msra.mxu0 0.0
    %757 = vmatprep.subr.mxu0 0.0
    %758 = vmatpush2.msra.mxu0 0.0
    %759 = vmatprep.subr.mxu0 0.0
    %760 = vmatpush2.msra.mxu0 0.0
    %761 = vmatprep.subr.mxu0 0.0
    %762 = vmatpush2.msra.mxu0 0.0
    %763 = vmatprep.subr.mxu0 0.0
    %764 = vmatpush2.msra.mxu0 0.0
    %765 = vmatprep.subr.mxu0 0.0
    %766 = vmatpush2.msra.mxu0 0.0
    %767 = vmatprep.subr.mxu0 0.0
    %768 = vmatpush2.msra.mxu0 0.0
    %769 = vmatprep.subr.mxu0 0.0
    %770 = vmatpush2.msra.mxu0 0.0
    %771 = vmatprep.subr.mxu0 0.0
    %772 = vmatpush2.msra.mxu0 0.0
    %773 = vmatprep.mubr.f32.mxu0 0.0
    %774 = vmatmul.mubr.f32.gmra.mxu0 %v704
    %v775 = vpop.f32.mrf.mxu0
    %v776 = vadd.f32 0.0, %v775
    %v777 = vpop.f32.mrf.mxu0
    %778 = vmatprep.mubr.f32.mxu0 0.0
    %779 = vmatmul.mubr.f32.gmra.mxu0 %v707
    %v780 = vpop.f32.mrf.mxu0
    %v781 = vadd.f32 0.0, %v780
    %v782 = vpop.f32.mrf.mxu0
    %783 = vdwg.mxu0
    %v784 = vmul.f32 %v776, %v136
    %v785 = vmul.f32 %v781, %v136
    %v786 = vadd.f32 %v598, %v784
    %v787 = vadd.f32 %v599, %v785
    %v788 = vmul.f32 %v326, %v141
    %v789 = vmul.f32 %v332, %v141
    %790 = vmatprep.subr.mxu0 0.0
    %791 = vmatpush1.xpose.msra.mxu0 0.0
    %792 = vmatprep.subr.mxu0 0.0
    %793 = vmatpush1.xpose.msra.mxu0 0.0
    %794 = vmatprep.subr.mxu0 0.0
    %795 = vmatpush1.xpose.msra.mxu0 0.0
    %796 = vmatprep.subr.mxu0 0.0
    %797 = vmatpush1.xpose.msra.mxu0 0.0
    %798 = vmatprep.subr.mxu0 0.0
    %799 = vmatpush1.xpose.msra.mxu0 0.0
    %800 = vmatprep.subr.mxu0 0.0
    %801 = vmatpush1.xpose.msra.mxu0 0.0
    %802 = vmatprep.subr.mxu0 0.0
    %803 = vmatpush1.xpose.msra.mxu0 0.0
    %804 = vmatprep.subr.mxu0 0.0
    %805 = vmatpush1.xpose.msra.mxu0 0.0
    %806 = vmatprep.subr.mxu0 0.0
    %807 = vmatpush1.xpose.msra.mxu0 0.0
    %808 = vmatprep.subr.mxu0 0.0
    %809 = vmatpush1.xpose.msra.mxu0 0.0
    %810 = vmatprep.subr.mxu0 0.0
    %811 = vmatpush1.xpose.msra.mxu0 0.0
    %812 = vmatprep.subr.mxu0 0.0
    %813 = vmatpush1.xpose.msra.mxu0 0.0
    %814 = vmatprep.subr.mxu0 0.0
    %815 = vmatpush1.xpose.msra.mxu0 0.0
    %816 = vmatprep.subr.mxu0 0.0
    %817 = vmatpush1.xpose.msra.mxu0 0.0
    %818 = vmatprep.subr.mxu0 0.0
    %819 = vmatpush1.xpose.msra.mxu0 %v334
    %820 = vmatprep.subr.mxu0 0.0
    %821 = vmatpush1.xpose.msra.mxu0 %v328
    %822 = vmatprep.subr.mxu0 0.0
    %823 = vmatpush2.xpose.msra.mxu0 0.0
    %824 = vmatprep.subr.mxu0 0.0
    %825 = vmatpush2.xpose.msra.mxu0 0.0
    %826 = vmatprep.subr.mxu0 0.0
    %827 = vmatpush2.xpose.msra.mxu0 0.0
    %828 = vmatprep.subr.mxu0 0.0
    %829 = vmatpush2.xpose.msra.mxu0 0.0
    %830 = vmatprep.subr.mxu0 0.0
    %831 = vmatpush2.xpose.msra.mxu0 0.0
    %832 = vmatprep.subr.mxu0 0.0
    %833 = vmatpush2.xpose.msra.mxu0 0.0
    %834 = vmatprep.subr.mxu0 0.0
    %835 = vmatpush2.xpose.msra.mxu0 0.0
    %836 = vmatprep.subr.mxu0 0.0
    %837 = vmatpush2.xpose.msra.mxu0 0.0
    %838 = vmatprep.subr.mxu0 0.0
    %839 = vmatpush2.xpose.msra.mxu0 0.0
    %840 = vmatprep.subr.mxu0 0.0
    %841 = vmatpush2.xpose.msra.mxu0 0.0
    %842 = vmatprep.subr.mxu0 0.0
    %843 = vmatpush2.xpose.msra.mxu0 0.0
    %844 = vmatprep.subr.mxu0 0.0
    %845 = vmatpush2.xpose.msra.mxu0 0.0
    %846 = vmatprep.subr.mxu0 0.0
    %847 = vmatpush2.xpose.msra.mxu0 0.0
    %848 = vmatprep.subr.mxu0 0.0
    %849 = vmatpush2.xpose.msra.mxu0 0.0
    %850 = vmatprep.subr.mxu0 0.0
    %851 = vmatpush2.xpose.msra.mxu0 0.0
    %852 = vmatprep.subr.mxu0 0.0
    %853 = vmatpush2.xpose.msra.mxu0 0.0
    %854 = vmatprep.mubr.f32.mxu0 0.0
    %855 = vmatmul.mubr.f32.gmra.mxu0 %v788
    %v856 = vpop.f32.mrf.mxu0
    %v857 = vadd.f32 0.0, %v856
    %v858 = vpop.f32.mrf.mxu0
    %859 = vmatprep.mubr.f32.mxu0 0.0
    %860 = vmatmul.mubr.f32.gmra.mxu0 %v789
    %v861 = vpop.f32.mrf.mxu0
    %v862 = vadd.f32 0.0, %v861
    %v863 = vpop.f32.mrf.mxu0
    %864 = vdwg.mxu0
    %v865 = vmul.f32 %v857, 0.35355338
    %v866 = vmul.f32 %v862, 0.35355338
    %v867 = vadd.f32 %v865, %v146
    %v868 = vadd.f32 %v866, %v147
    %v869 = vsel %vm492, %v867, -inf
    %870 = vmax.xlane.f32.xlu0 %v869
    %v871 = vpop.xlane.xlu0 %870
    %v872 = vsel %vm492, %v868, -inf
    %873 = vmax.xlane.f32.xlu0 %v872
    %v874 = vpop.xlane.xlu0 %873
    %v875 = vsub.f32 %v867, %v871
    %v876 = vsub.f32 %v868, %v874
    %v877 = vmul.f32 %v875, 1.442695
    %v878 = vpow.pop %v877
    %v879 = vmul.f32 %v876, 1.442695
    %v880 = vpow.pop %v879
    %v881 = vsel %vm492, %v878, 0.0
    %882 = vadd.xlane.f32.xlu0 %v881
    %v883 = vpop.xlane.xlu0 %882
    %v884 = vsel %vm492, %v880, 0.0
    %885 = vadd.xlane.f32.xlu0 %v884
    %v886 = vpop.xlane.xlu0 %885
    %v887 = vrcp.pop %v883
    %v888 = vmul.f32 %v878, %v887
    %v889 = vrcp.pop %v886
    %v890 = vmul.f32 %v880, %v889
    %v892 = vsel %vm492, %v888, 0
    %v895 = vsel %vm492, %v890, 0
    %897 = vmatprep.subr.mxu0 0.0
    %898 = vmatpush1.msra.mxu0 0.0
    %899 = vmatprep.subr.mxu0 0.0
    %900 = vmatpush1.msra.mxu0 0.0
    %901 = vmatprep.subr.mxu0 0.0
    %902 = vmatpush1.msra.mxu0 0.0
    %903 = vmatprep.subr.mxu0 0.0
    %904 = vmatpush1.msra.mxu0 0.0
    %905 = vmatprep.subr.mxu0 0.0
    %906 = vmatpush1.msra.mxu0 0.0
    %907 = vmatprep.subr.mxu0 0.0
    %908 = vmatpush1.msra.mxu0 0.0
    %909 = vmatprep.subr.mxu0 0.0
    %910 = vmatpush1.msra.mxu0 0.0
    %911 = vmatprep.subr.mxu0 0.0
    %912 = vmatpush1.msra.mxu0 0.0
    %913 = vmatprep.subr.mxu0 0.0
    %914 = vmatpush1.msra.mxu0 0.0
    %915 = vmatprep.subr.mxu0 0.0
    %916 = vmatpush1.msra.mxu0 0.0
    %917 = vmatprep.subr.mxu0 0.0
    %918 = vmatpush1.msra.mxu0 0.0
    %919 = vmatprep.subr.mxu0 0.0
    %920 = vmatpush1.msra.mxu0 0.0
    %921 = vmatprep.subr.mxu0 0.0
    %922 = vmatpush1.msra.mxu0 0.0
    %923 = vmatprep.subr.mxu0 0.0
    %924 = vmatpush1.msra.mxu0 0.0
    %925 = vmatprep.subr.mxu0 0.0
    %926 = vmatpush1.msra.mxu0 %v408
    %927 = vmatprep.subr.mxu0 0.0
    %928 = vmatpush1.msra.mxu0 %v403
    %929 = vmatprep.subr.mxu0 0.0
    %930 = vmatpush2.msra.mxu0 0.0
    %931 = vmatprep.subr.mxu0 0.0
    %932 = vmatpush2.msra.mxu0 0.0
    %933 = vmatprep.subr.mxu0 0.0
    %934 = vmatpush2.msra.mxu0 0.0
    %935 = vmatprep.subr.mxu0 0.0
    %936 = vmatpush2.msra.mxu0 0.0
    %937 = vmatprep.subr.mxu0 0.0
    %938 = vmatpush2.msra.mxu0 0.0
    %939 = vmatprep.subr.mxu0 0.0
    %940 = vmatpush2.msra.mxu0 0.0
    %941 = vmatprep.subr.mxu0 0.0
    %942 = vmatpush2.msra.mxu0 0.0
    %943 = vmatprep.subr.mxu0 0.0
    %944 = vmatpush2.msra.mxu0 0.0
    %945 = vmatprep.subr.mxu0 0.0
    %946 = vmatpush2.msra.mxu0 0.0
    %947 = vmatprep.subr.mxu0 0.0
    %948 = vmatpush2.msra.mxu0 0.0
    %949 = vmatprep.subr.mxu0 0.0
    %950 = vmatpush2.msra.mxu0 0.0
    %951 = vmatprep.subr.mxu0 0.0
    %952 = vmatpush2.msra.mxu0 0.0
    %953 = vmatprep.subr.mxu0 0.0
    %954 = vmatpush2.msra.mxu0 0.0
    %955 = vmatprep.subr.mxu0 0.0
    %956 = vmatpush2.msra.mxu0 0.0
    %957 = vmatprep.subr.mxu0 0.0
    %958 = vmatpush2.msra.mxu0 0.0
    %959 = vmatprep.subr.mxu0 0.0
    %960 = vmatpush2.msra.mxu0 0.0
    %961 = vmatprep.mubr.f32.mxu0 0.0
    %962 = vmatmul.mubr.f32.gmra.mxu0 %v892
    %v963 = vpop.f32.mrf.mxu0
    %v964 = vadd.f32 0.0, %v963
    %v965 = vpop.f32.mrf.mxu0
    %966 = vmatprep.mubr.f32.mxu0 0.0
    %967 = vmatmul.mubr.f32.gmra.mxu0 %v895
    %v968 = vpop.f32.mrf.mxu0
    %v969 = vadd.f32 0.0, %v968
    %v970 = vpop.f32.mrf.mxu0
    %971 = vdwg.mxu0
    %v972 = vmul.f32 %v964, %v141
    %v973 = vmul.f32 %v969, %v141
    %v974 = vadd.f32 %v786, %v972
    %v975 = vadd.f32 %v787, %v973
    %v976 = vmul.f32 %v326, %v145
    %v977 = vmul.f32 %v332, %v145
    %978 = vmatprep.subr.mxu0 0.0
    %979 = vmatpush1.xpose.msra.mxu0 0.0
    %980 = vmatprep.subr.mxu0 0.0
    %981 = vmatpush1.xpose.msra.mxu0 0.0
    %982 = vmatprep.subr.mxu0 0.0
    %983 = vmatpush1.xpose.msra.mxu0 0.0
    %984 = vmatprep.subr.mxu0 0.0
    %985 = vmatpush1.xpose.msra.mxu0 0.0
    %986 = vmatprep.subr.mxu0 0.0
    %987 = vmatpush1.xpose.msra.mxu0 0.0
    %988 = vmatprep.subr.mxu0 0.0
    %989 = vmatpush1.xpose.msra.mxu0 0.0
    %990 = vmatprep.subr.mxu0 0.0
    %991 = vmatpush1.xpose.msra.mxu0 0.0
    %992 = vmatprep.subr.mxu0 0.0
    %993 = vmatpush1.xpose.msra.mxu0 0.0
    %994 = vmatprep.subr.mxu0 0.0
    %995 = vmatpush1.xpose.msra.mxu0 0.0
    %996 = vmatprep.subr.mxu0 0.0
    %997 = vmatpush1.xpose.msra.mxu0 0.0
    %998 = vmatprep.subr.mxu0 0.0
    %999 = vmatpush1.xpose.msra.mxu0 0.0
    %1000 = vmatprep.subr.mxu0 0.0
    %1001 = vmatpush1.xpose.msra.mxu0 0.0
    %1002 = vmatprep.subr.mxu0 0.0
    %1003 = vmatpush1.xpose.msra.mxu0 0.0
    %1004 = vmatprep.subr.mxu0 0.0
    %1005 = vmatpush1.xpose.msra.mxu0 0.0
    %1006 = vmatprep.subr.mxu0 0.0
    %1007 = vmatpush1.xpose.msra.mxu0 %v334
    %1008 = vmatprep.subr.mxu0 0.0
    %1009 = vmatpush1.xpose.msra.mxu0 %v328
    %1010 = vmatprep.subr.mxu0 0.0
    %1011 = vmatpush2.xpose.msra.mxu0 0.0
    %1012 = vmatprep.subr.mxu0 0.0
    %1013 = vmatpush2.xpose.msra.mxu0 0.0
    %1014 = vmatprep.subr.mxu0 0.0
    %1015 = vmatpush2.xpose.msra.mxu0 0.0
    %1016 = vmatprep.subr.mxu0 0.0
    %1017 = vmatpush2.xpose.msra.mxu0 0.0
    %1018 = vmatprep.subr.mxu0 0.0
    %1019 = vmatpush2.xpose.msra.mxu0 0.0
    %1020 = vmatprep.subr.mxu0 0.0
    %1021 = vmatpush2.xpose.msra.mxu0 0.0
    %1022 = vmatprep.subr.mxu0 0.0
    %1023 = vmatpush2.xpose.msra.mxu0 0.0
    %1024 = vmatprep.subr.mxu0 0.0
    %1025 = vmatpush2.xpose.msra.mxu0 0.0
    %1026 = vmatprep.subr.mxu0 0.0
    %1027 = vmatpush2.xpose.msra.mxu0 0.0
    %1028 = vmatprep.subr.mxu0 0.0
    %1029 = vmatpush2.xpose.msra.mxu0 0.0
    %1030 = vmatprep.subr.mxu0 0.0
    %1031 = vmatpush2.xpose.msra.mxu0 0.0
    %1032 = vmatprep.subr.mxu0 0.0
    %1033 = vmatpush2.xpose.msra.mxu0 0.0
    %1034 = vmatprep.subr.mxu0 0.0
    %1035 = vmatpush2.xpose.msra.mxu0 0.0
    %1036 = vmatprep.subr.mxu0 0.0
    %1037 = vmatpush2.xpose.msra.mxu0 0.0
    %1038 = vmatprep.subr.mxu0 0.0
    %1039 = vmatpush2.xpose.msra.mxu0 0.0
    %1040 = vmatprep.subr.mxu0 0.0
    %1041 = vmatpush2.xpose.msra.mxu0 0.0
    %1042 = vmatprep.mubr.f32.mxu0 0.0
    %1043 = vmatmul.mubr.f32.gmra.mxu0 %v976
    %v1044 = vpop.f32.mrf.mxu0
    %v1045 = vadd.f32 0.0, %v1044
    %v1046 = vpop.f32.mrf.mxu0
    %1047 = vmatprep.mubr.f32.mxu0 0.0
    %1048 = vmatmul.mubr.f32.gmra.mxu0 %v977
    %v1049 = vpop.f32.mrf.mxu0
    %v1050 = vadd.f32 0.0, %v1049
    %v1051 = vpop.f32.mrf.mxu0
    %1052 = vdwg.mxu0
    %v1053 = vmul.f32 %v1045, 0.35355338
    %v1054 = vmul.f32 %v1050, 0.35355338
    %v1055 = vadd.f32 %v1053, %v146
    %v1056 = vadd.f32 %v1054, %v147
    %v1057 = vsel %vm492, %v1055, -inf
    %1058 = vmax.xlane.f32.xlu0 %v1057
    %v1059 = vpop.xlane.xlu0 %1058
    %v1060 = vsel %vm492, %v1056, -inf
    %1061 = vmax.xlane.f32.xlu0 %v1060
    %v1062 = vpop.xlane.xlu0 %1061
    %v1063 = vsub.f32 %v1055, %v1059
    %v1064 = vsub.f32 %v1056, %v1062
    %v1065 = vmul.f32 %v1063, 1.442695
    %v1066 = vpow.pop %v1065
    %v1067 = vmul.f32 %v1064, 1.442695
    %v1068 = vpow.pop %v1067
    %v1069 = vsel %vm492, %v1066, 0.0
    %1070 = vadd.xlane.f32.xlu0 %v1069
    %v1071 = vpop.xlane.xlu0 %1070
    %v1072 = vsel %vm492, %v1068, 0.0
    %1073 = vadd.xlane.f32.xlu0 %v1072
    %v1074 = vpop.xlane.xlu0 %1073
    %v1075 = vrcp.pop %v1071
    %v1076 = vmul.f32 %v1066, %v1075
    %v1077 = vrcp.pop %v1074
    %v1078 = vmul.f32 %v1068, %v1077
    %v1080 = vsel %vm492, %v1076, 0
    %v1083 = vsel %vm492, %v1078, 0
    %1085 = vmatprep.subr.mxu0 0.0
    %1086 = vmatpush1.msra.mxu0 0.0
    %1087 = vmatprep.subr.mxu0 0.0
    %1088 = vmatpush1.msra.mxu0 0.0
    %1089 = vmatprep.subr.mxu0 0.0
    %1090 = vmatpush1.msra.mxu0 0.0
    %1091 = vmatprep.subr.mxu0 0.0
    %1092 = vmatpush1.msra.mxu0 0.0
    %1093 = vmatprep.subr.mxu0 0.0
    %1094 = vmatpush1.msra.mxu0 0.0
    %1095 = vmatprep.subr.mxu0 0.0
    %1096 = vmatpush1.msra.mxu0 0.0
    %1097 = vmatprep.subr.mxu0 0.0
    %1098 = vmatpush1.msra.mxu0 0.0
    %1099 = vmatprep.subr.mxu0 0.0
    %1100 = vmatpush1.msra.mxu0 0.0
    %1101 = vmatprep.subr.mxu0 0.0
    %1102 = vmatpush1.msra.mxu0 0.0
    %1103 = vmatprep.subr.mxu0 0.0
    %1104 = vmatpush1.msra.mxu0 0.0
    %1105 = vmatprep.subr.mxu0 0.0
    %1106 = vmatpush1.msra.mxu0 0.0
    %1107 = vmatprep.subr.mxu0 0.0
    %1108 = vmatpush1.msra.mxu0 0.0
    %1109 = vmatprep.subr.mxu0 0.0
    %1110 = vmatpush1.msra.mxu0 0.0
    %1111 = vmatprep.subr.mxu0 0.0
    %1112 = vmatpush1.msra.mxu0 0.0
    %1113 = vmatprep.subr.mxu0 0.0
    %1114 = vmatpush1.msra.mxu0 %v408
    %1115 = vmatprep.subr.mxu0 0.0
    %1116 = vmatpush1.msra.mxu0 %v403
    %1117 = vmatprep.subr.mxu0 0.0
    %1118 = vmatpush2.msra.mxu0 0.0
    %1119 = vmatprep.subr.mxu0 0.0
    %1120 = vmatpush2.msra.mxu0 0.0
    %1121 = vmatprep.subr.mxu0 0.0
    %1122 = vmatpush2.msra.mxu0 0.0
    %1123 = vmatprep.subr.mxu0 0.0
    %1124 = vmatpush2.msra.mxu0 0.0
    %1125 = vmatprep.subr.mxu0 0.0
    %1126 = vmatpush2.msra.mxu0 0.0
    %1127 = vmatprep.subr.mxu0 0.0
    %1128 = vmatpush2.msra.mxu0 0.0
    %1129 = vmatprep.subr.mxu0 0.0
    %1130 = vmatpush2.msra.mxu0 0.0
    %1131 = vmatprep.subr.mxu0 0.0
    %1132 = vmatpush2.msra.mxu0 0.0
    %1133 = vmatprep.subr.mxu0 0.0
    %1134 = vmatpush2.msra.mxu0 0.0
    %1135 = vmatprep.subr.mxu0 0.0
    %1136 = vmatpush2.msra.mxu0 0.0
    %1137 = vmatprep.subr.mxu0 0.0
    %1138 = vmatpush2.msra.mxu0 0.0
    %1139 = vmatprep.subr.mxu0 0.0
    %1140 = vmatpush2.msra.mxu0 0.0
    %1141 = vmatprep.subr.mxu0 0.0
    %1142 = vmatpush2.msra.mxu0 0.0
    %1143 = vmatprep.subr.mxu0 0.0
    %1144 = vmatpush2.msra.mxu0 0.0
    %1145 = vmatprep.subr.mxu0 0.0
    %1146 = vmatpush2.msra.mxu0 0.0
    %1147 = vmatprep.subr.mxu0 0.0
    %1148 = vmatpush2.msra.mxu0 0.0
    %1149 = vmatprep.mubr.f32.mxu0 0.0
    %1150 = vmatmul.mubr.f32.gmra.mxu0 %v1080
    %v1151 = vpop.f32.mrf.mxu0
    %v1152 = vadd.f32 0.0, %v1151
    %v1153 = vpop.f32.mrf.mxu0
    %1154 = vmatprep.mubr.f32.mxu0 0.0
    %1155 = vmatmul.mubr.f32.gmra.mxu0 %v1083
    %v1156 = vpop.f32.mrf.mxu0
    %v1157 = vadd.f32 0.0, %v1156
    %v1158 = vpop.f32.mrf.mxu0
    %1159 = vdwg.mxu0
    %v1160 = vmul.f32 %v1152, %v145
    %v1161 = vmul.f32 %v1157, %v145
    %v1162 = vadd.f32 %v974, %v1160
    %v1163 = vadd.f32 %v975, %v1161
    %v1164 = vld [vmem:[%s6] sm:$0xff]
    %v1165 = vld [vmem:[%s6 + $0x8] sm:$0xff]
    %v1166 = vld [vmem:[%s6 + $0x10] sm:$0xff]
    %v1167 = vld [vmem:[%s6 + $0x18] sm:$0xff]
    %v1168 = vld [vmem:[%s6 + $0x20] sm:$0xff]
    %v1169 = vld [vmem:[%s6 + $0x28] sm:$0xff]
    %v1170 = vld [vmem:[%s6 + $0x30] sm:$0xff]
    %v1171 = vld [vmem:[%s6 + $0x38] sm:$0xff]
    %v1172 = vld [vmem:[%s6 + $0x40] sm:$0xff]
    %v1173 = vld [vmem:[%s6 + $0x48] sm:$0xff]
    %v1174 = vld [vmem:[%s6 + $0x50] sm:$0xff]
    %v1175 = vld [vmem:[%s6 + $0x58] sm:$0xff]
    %v1176 = vld [vmem:[%s6 + $0x60] sm:$0xff]
    %v1177 = vld [vmem:[%s6 + $0x68] sm:$0xff]
    %v1178 = vld [vmem:[%s6 + $0x70] sm:$0xff]
    %v1179 = vld [vmem:[%s6 + $0x78] sm:$0xff]
    %v1180 = vld [vmem:[%s7] sm:$0x1]
    %v1182 = vlaneseq
    %v1183 = vshrl.u32 %v1182, 7
    %v1184 = vsub.s32 0, %v1183
    %v1185 = vrot.slane %v1180, %v1184
    %1187 = vmatprep.subr.mxu0 0.0
    %1188 = vmatpush1.msra.mxu0 %v1179
    %1189 = vmatprep.subr.mxu0 0.0
    %1190 = vmatpush1.msra.mxu0 %v1178
    %1191 = vmatprep.subr.mxu0 0.0
    %1192 = vmatpush1.msra.mxu0 %v1177
    %1193 = vmatprep.subr.mxu0 0.0
    %1194 = vmatpush1.msra.mxu0 %v1176
    %1195 = vmatprep.subr.mxu0 0.0
    %1196 = vmatpush1.msra.mxu0 %v1175
    %1197 = vmatprep.subr.mxu0 0.0
    %1198 = vmatpush1.msra.mxu0 %v1174
    %1199 = vmatprep.subr.mxu0 0.0
    %1200 = vmatpush1.msra.mxu0 %v1173
    %1201 = vmatprep.subr.mxu0 0.0
    %1202 = vmatpush1.msra.mxu0 %v1172
    %1203 = vmatprep.subr.mxu0 0.0
    %1204 = vmatpush1.msra.mxu0 %v1171
    %1205 = vmatprep.subr.mxu0 0.0
    %1206 = vmatpush1.msra.mxu0 %v1170
    %1207 = vmatprep.subr.mxu0 0.0
    %1208 = vmatpush1.msra.mxu0 %v1169
    %1209 = vmatprep.subr.mxu0 0.0
    %1210 = vmatpush1.msra.mxu0 %v1168
    %1211 = vmatprep.subr.mxu0 0.0
    %1212 = vmatpush1.msra.mxu0 %v1167
    %1213 = vmatprep.subr.mxu0 0.0
    %1214 = vmatpush1.msra.mxu0 %v1166
    %1215 = vmatprep.subr.mxu0 0.0
    %1216 = vmatpush1.msra.mxu0 %v1165
    %1217 = vmatprep.subr.mxu0 0.0
    %1218 = vmatpush1.msra.mxu0 %v1164
    %1219 = vmatprep.subr.mxu0 0.0
    %1220 = vmatpush2.msra.mxu0 0.0
    %1221 = vmatprep.subr.mxu0 0.0
    %1222 = vmatpush2.msra.mxu0 0.0
    %1223 = vmatprep.subr.mxu0 0.0
    %1224 = vmatpush2.msra.mxu0 0.0
    %1225 = vmatprep.subr.mxu0 0.0
    %1226 = vmatpush2.msra.mxu0 0.0
    %1227 = vmatprep.subr.mxu0 0.0
    %1228 = vmatpush2.msra.mxu0 0.0
    %1229 = vmatprep.subr.mxu0 0.0
    %1230 = vmatpush2.msra.mxu0 0.0
    %1231 = vmatprep.subr.mxu0 0.0
    %1232 = vmatpush2.msra.mxu0 0.0
    %1233 = vmatprep.subr.mxu0 0.0
    %1234 = vmatpush2.msra.mxu0 0.0
    %1235 = vmatprep.subr.mxu0 0.0
    %1236 = vmatpush2.msra.mxu0 0.0
    %1237 = vmatprep.subr.mxu0 0.0
    %1238 = vmatpush2.msra.mxu0 0.0
    %1239 = vmatprep.subr.mxu0 0.0
    %1240 = vmatpush2.msra.mxu0 0.0
    %1241 = vmatprep.subr.mxu0 0.0
    %1242 = vmatpush2.msra.mxu0 0.0
    %1243 = vmatprep.subr.mxu0 0.0
    %1244 = vmatpush2.msra.mxu0 0.0
    %1245 = vmatprep.subr.mxu0 0.0
    %1246 = vmatpush2.msra.mxu0 0.0
    %1247 = vmatprep.subr.mxu0 0.0
    %1248 = vmatpush2.msra.mxu0 0.0
    %1249 = vmatprep.subr.mxu0 0.0
    %1250 = vmatpush2.msra.mxu0 0.0
    %1251 = vmatprep.mubr.f32.mxu0 0.0
    %1252 = vmatmul.mubr.f32.gmra.mxu0 %v1162
    %v1253 = vpop.f32.mrf.mxu0
    %v1254 = vadd.f32 %v1185, %v1253
    %v1255 = vpop.f32.mrf.mxu0
    %1256 = vmatprep.mubr.f32.mxu0 0.0
    %1257 = vmatmul.mubr.f32.gmra.mxu0 %v1163
    %v1258 = vpop.f32.mrf.mxu0
    %v1259 = vadd.f32 %v1185, %v1258
    %v1260 = vpop.f32.mrf.mxu0
    %1261 = vdwg.mxu0
    %v1262 = vadd.f32 %v1254, %v192
    %v1263 = vadd.f32 %v1259, %v193
    %v1264 = vld [vmem:[%s8] sm:$0x1]
    %v1265 = vld [vmem:[%s9] sm:$0x1]
    %1266 = vadd.xlane.f32.xlu0 %v1262
    %v1267 = vpop.xlane.xlu0 %1266
    %1268 = vadd.xlane.f32.xlu0 %v1263
    %v1269 = vpop.xlane.xlu0 %1268
    %v1270 = vmul.f32 %v1267, 0.03125
    %v1271 = vmul.f32 %v1269, 0.03125
    %v1272 = vsub.f32 %v1262, %v1270
    %v1273 = vsub.f32 %v1263, %v1271
    %v1274 = vsel %vm161, %v1272, 0.0
    %v1275 = vsel %vm161, %v1273, 0.0
    %v1276 = vmul.f32 %v1274, %v1274
    %v1277 = vmul.f32 %v1275, %v1275
    %1278 = vadd.xlane.f32.xlu0 %v1276
    %v1279 = vpop.xlane.xlu0 %1278
    %1280 = vadd.xlane.f32.xlu0 %v1277
    %v1281 = vpop.xlane.xlu0 %1280
    %v1282 = vmul.f32 %v1279, 0.03125
    %v1283 = vmul.f32 %v1281, 0.03125
    %v1284 = vadd.f32 %v1282, 1e-12
    %v1285 = vadd.f32 %v1283, 1e-12
    %v1286 = vrsqrt.pop %v1284
    %v1287 = vrsqrt.pop %v1285
    %v1288 = vmul.f32 %v1274, %v1286
    %v1289 = vmul.f32 %v1275, %v1287
    %v1291 = vlaneseq
    %v1292 = vshrl.u32 %v1291, 7
    %v1293 = vsub.s32 0, %v1292
    %v1294 = vrot.slane %v1264, %v1293
    %v1296 = vmul.f32 %v1288, %v1294
    %v1297 = vmul.f32 %v1289, %v1294
    %v1299 = vlaneseq
    %v1300 = vshrl.u32 %v1299, 7
    %v1301 = vsub.s32 0, %v1300
    %v1302 = vrot.slane %v1265, %v1301
    %v1304 = vadd.f32 %v1296, %v1302
    %v1305 = vadd.f32 %v1297, %v1302
    %v1306 = vld [vmem:[#allocation5] sm:$0xff]
    %v1307 = vld [vmem:[#allocation5 + $0x8] sm:$0xff]
    %v1308 = vld [vmem:[#allocation5 + $0x10] sm:$0xff]
    %v1309 = vld [vmem:[#allocation5 + $0x18] sm:$0xff]
    %v1310 = vld [vmem:[#allocation5 + $0x20] sm:$0xff]
    %v1311 = vld [vmem:[#allocation5 + $0x28] sm:$0xff]
    %v1312 = vld [vmem:[#allocation5 + $0x30] sm:$0xff]
    %v1313 = vld [vmem:[#allocation5 + $0x38] sm:$0xff]
    %v1314 = vld [vmem:[#allocation5 + $0x40] sm:$0xff]
    %v1315 = vld [vmem:[#allocation5 + $0x48] sm:$0xff]
    %v1316 = vld [vmem:[#allocation5 + $0x50] sm:$0xff]
    %v1317 = vld [vmem:[#allocation5 + $0x58] sm:$0xff]
    %v1318 = vld [vmem:[#allocation5 + $0x60] sm:$0xff]
    %v1319 = vld [vmem:[#allocation5 + $0x68] sm:$0xff]
    %v1320 = vld [vmem:[#allocation5 + $0x70] sm:$0xff]
    %v1321 = vld [vmem:[#allocation5 + $0x78] sm:$0xff]
    %v1322 = vld [vmem:[%s11] sm:$0x1]
    %v1324 = vlaneseq
    %v1325 = vshrl.u32 %v1324, 7
    %v1326 = vsub.s32 0, %v1325
    %v1327 = vrot.slane %v1322, %v1326
    %1329 = vmatprep.subr.mxu0 0.0
    %1330 = vmatpush1.msra.mxu0 %v1321
    %1331 = vmatprep.subr.mxu0 0.0
    %1332 = vmatpush1.msra.mxu0 %v1320
    %1333 = vmatprep.subr.mxu0 0.0
    %1334 = vmatpush1.msra.mxu0 %v1319
    %1335 = vmatprep.subr.mxu0 0.0
    %1336 = vmatpush1.msra.mxu0 %v1318
    %1337 = vmatprep.subr.mxu0 0.0
    %1338 = vmatpush1.msra.mxu0 %v1317
    %1339 = vmatprep.subr.mxu0 0.0
    %1340 = vmatpush1.msra.mxu0 %v1316
    %1341 = vmatprep.subr.mxu0 0.0
    %1342 = vmatpush1.msra.mxu0 %v1315
    %1343 = vmatprep.subr.mxu0 0.0
    %1344 = vmatpush1.msra.mxu0 %v1314
    %1345 = vmatprep.subr.mxu0 0.0
    %1346 = vmatpush1.msra.mxu0 %v1313
    %1347 = vmatprep.subr.mxu0 0.0
    %1348 = vmatpush1.msra.mxu0 %v1312
    %1349 = vmatprep.subr.mxu0 0.0
    %1350 = vmatpush1.msra.mxu0 %v1311
    %1351 = vmatprep.subr.mxu0 0.0
    %1352 = vmatpush1.msra.mxu0 %v1310
    %1353 = vmatprep.subr.mxu0 0.0
    %1354 = vmatpush1.msra.mxu0 %v1309
    %1355 = vmatprep.subr.mxu0 0.0
    %1356 = vmatpush1.msra.mxu0 %v1308
    %1357 = vmatprep.subr.mxu0 0.0
    %1358 = vmatpush1.msra.mxu0 %v1307
    %1359 = vmatprep.subr.mxu0 0.0
    %1360 = vmatpush1.msra.mxu0 %v1306
    %1361 = vmatprep.subr.mxu0 0.0
    %1362 = vmatpush2.msra.mxu0 0.0
    %1363 = vmatprep.subr.mxu0 0.0
    %1364 = vmatpush2.msra.mxu0 0.0
    %1365 = vmatprep.subr.mxu0 0.0
    %1366 = vmatpush2.msra.mxu0 0.0
    %1367 = vmatprep.subr.mxu0 0.0
    %1368 = vmatpush2.msra.mxu0 0.0
    %1369 = vmatprep.subr.mxu0 0.0
    %1370 = vmatpush2.msra.mxu0 0.0
    %1371 = vmatprep.subr.mxu0 0.0
    %1372 = vmatpush2.msra.mxu0 0.0
    %1373 = vmatprep.subr.mxu0 0.0
    %1374 = vmatpush2.msra.mxu0 0.0
    %1375 = vmatprep.subr.mxu0 0.0
    %1376 = vmatpush2.msra.mxu0 0.0
    %1377 = vmatprep.subr.mxu0 0.0
    %1378 = vmatpush2.msra.mxu0 0.0
    %1379 = vmatprep.subr.mxu0 0.0
    %1380 = vmatpush2.msra.mxu0 0.0
    %1381 = vmatprep.subr.mxu0 0.0
    %1382 = vmatpush2.msra.mxu0 0.0
    %1383 = vmatprep.subr.mxu0 0.0
    %1384 = vmatpush2.msra.mxu0 0.0
    %1385 = vmatprep.subr.mxu0 0.0
    %1386 = vmatpush2.msra.mxu0 0.0
    %1387 = vmatprep.subr.mxu0 0.0
    %1388 = vmatpush2.msra.mxu0 0.0
    %1389 = vmatprep.subr.mxu0 0.0
    %1390 = vmatpush2.msra.mxu0 0.0
    %1391 = vmatprep.subr.mxu0 0.0
    %1392 = vmatpush2.msra.mxu0 0.0
    %1393 = vmatprep.mubr.f32.mxu0 0.0
    %1394 = vmatmul.mubr.f32.gmra.mxu0 %v1304
    %v1395 = vpop.f32.mrf.mxu0
    %v1396 = vadd.f32 %v1327, %v1395
    %v1397 = vpop.f32.mrf.mxu0
    %1398 = vmatprep.mubr.f32.mxu0 0.0
    %1399 = vmatmul.mubr.f32.gmra.mxu0 %v1305
    %v1400 = vpop.f32.mrf.mxu0
    %v1401 = vadd.f32 %v1327, %v1400
    %v1402 = vpop.f32.mrf.mxu0
    %1403 = vdwg.mxu0
    %v1404 = vmul.f32 %v1396, 0.5
    %v1405 = vmul.f32 %v1401, 0.5
    %v1406 = vmul.f32 %v1396, 0.044715
    %v1407 = vmul.f32 %v1401, 0.044715
    %v1408 = vmul.f32 %v1406, %v1396
    %v1409 = vmul.f32 %v1407, %v1401
    %v1410 = vmul.f32 %v1408, %v1396
    %v1411 = vmul.f32 %v1409, %v1401
    %v1412 = vadd.f32 %v1396, %v1410
    %v1413 = vadd.f32 %v1401, %v1411
    %v1414 = vmul.f32 %v1412, 0.7978846
    %v1415 = vmul.f32 %v1413, 0.7978846
    %v1416 = vtanh.pop %v1414
    %v1417 = vtanh.pop %v1415
    %v1418 = vadd.f32 %v1416, 1.0
    %v1419 = vadd.f32 %v1417, 1.0
    %v1420 = vmul.f32 %v1404, %v1418
    %v1421 = vmul.f32 %v1405, %v1419
    %v1422 = vld [vmem:[#allocation7] sm:$0xff]
    %v1423 = vld [vmem:[#allocation7 + $0x8] sm:$0xff]
    %v1424 = vld [vmem:[#allocation7 + $0x10] sm:$0xff]
    %v1425 = vld [vmem:[#allocation7 + $0x18] sm:$0xff]
    %v1426 = vld [vmem:[#allocation7 + $0x20] sm:$0xff]
    %v1427 = vld [vmem:[#allocation7 + $0x28] sm:$0xff]
    %v1428 = vld [vmem:[#allocation7 + $0x30] sm:$0xff]
    %v1429 = vld [vmem:[#allocation7 + $0x38] sm:$0xff]
    %v1430 = vld [vmem:[#allocation7 + $0x40] sm:$0xff]
    %v1431 = vld [vmem:[#allocation7 + $0x48] sm:$0xff]
    %v1432 = vld [vmem:[#allocation7 + $0x50] sm:$0xff]
    %v1433 = vld [vmem:[#allocation7 + $0x58] sm:$0xff]
    %v1434 = vld [vmem:[#allocation7 + $0x60] sm:$0xff]
    %v1435 = vld [vmem:[#allocation7 + $0x68] sm:$0xff]
    %v1436 = vld [vmem:[#allocation7 + $0x70] sm:$0xff]
    %v1437 = vld [vmem:[#allocation7 + $0x78] sm:$0xff]
    %v1438 = vld [vmem:[%s13] sm:$0x1]
    %v1440 = vlaneseq
    %v1441 = vshrl.u32 %v1440, 7
    %v1442 = vsub.s32 0, %v1441
    %v1443 = vrot.slane %v1438, %v1442
    %1445 = vmatprep.subr.mxu0 0.0
    %1446 = vmatpush1.msra.mxu0 %v1437
    %1447 = vmatprep.subr.mxu0 0.0
    %1448 = vmatpush1.msra.mxu0 %v1436
    %1449 = vmatprep.subr.mxu0 0.0
    %1450 = vmatpush1.msra.mxu0 %v1435
    %1451 = vmatprep.subr.mxu0 0.0
    %1452 = vmatpush1.msra.mxu0 %v1434
    %1453 = vmatprep.subr.mxu0 0.0
    %1454 = vmatpush1.msra.mxu0 %v1433
    %1455 = vmatprep.subr.mxu0 0.0
    %1456 = vmatpush1.msra.mxu0 %v1432
    %1457 = vmatprep.subr.mxu0 0.0
    %1458 = vmatpush1.msra.mxu0 %v1431
    %1459 = vmatprep.subr.mxu0 0.0
    %1460 = vmatpush1.msra.mxu0 %v1430
    %1461 = vmatprep.subr.mxu0 0.0
    %1462 = vmatpush1.msra.mxu0 %v1429
    %1463 = vmatprep.subr.mxu0 0.0
    %1464 = vmatpush1.msra.mxu0 %v1428
    %1465 = vmatprep.subr.mxu0 0.0
    %1466 = vmatpush1.msra.mxu0 %v1427
    %1467 = vmatprep.subr.mxu0 0.0
    %1468 = vmatpush1.msra.mxu0 %v1426
    %1469 = vmatprep.subr.mxu0 0.0
    %1470 = vmatpush1.msra.mxu0 %v1425
    %1471 = vmatprep.subr.mxu0 0.0
    %1472 = vmatpush1.msra.mxu0 %v1424
    %1473 = vmatprep.subr.mxu0 0.0
    %1474 = vmatpush1.msra.mxu0 %v1423
    %1475 = vmatprep.subr.mxu0 0.0
    %1476 = vmatpush1.msra.mxu0 %v1422
    %1477 = vmatprep.subr.mxu0 0.0
    %1478 = vmatpush2.msra.mxu0 0.0
    %1479 = vmatprep.subr.mxu0 0.0
    %1480 = vmatpush2.msra.mxu0 0.0
    %1481 = vmatprep.subr.mxu0 0.0
    %1482 = vmatpush2.msra.mxu0 0.0
    %1483 = vmatprep.subr.mxu0 0.0
    %1484 = vmatpush2.msra.mxu0 0.0
    %1485 = vmatprep.subr.mxu0 0.0
    %1486 = vmatpush2.msra.mxu0 0.0
    %1487 = vmatprep.subr.mxu0 0.0
    %1488 = vmatpush2.msra.mxu0 0.0
    %1489 = vmatprep.subr.mxu0 0.0
    %1490 = vmatpush2.msra.mxu0 0.0
    %1491 = vmatprep.subr.mxu0 0.0
    %1492 = vmatpush2.msra.mxu0 0.0
    %1493 = vmatprep.subr.mxu0 0.0
    %1494 = vmatpush2.msra.mxu0 0.0
    %1495 = vmatprep.subr.mxu0 0.0
    %1496 = vmatpush2.msra.mxu0 0.0
    %1497 = vmatprep.subr.mxu0 0.0
    %1498 = vmatpush2.msra.mxu0 0.0
    %1499 = vmatprep.subr.mxu0 0.0
    %1500 = vmatpush2.msra.mxu0 0.0
    %1501 = vmatprep.subr.mxu0 0.0
    %1502 = vmatpush2.msra.mxu0 0.0
    %1503 = vmatprep.subr.mxu0 0.0
    %1504 = vmatpush2.msra.mxu0 0.0
    %1505 = vmatprep.subr.mxu0 0.0
    %1506 = vmatpush2.msra.mxu0 0.0
    %1507 = vmatprep.subr.mxu0 0.0
    %1508 = vmatpush2.msra.mxu0 0.0
    %1509 = vmatprep.mubr.f32.mxu0 0.0
    %1510 = vmatmul.mubr.f32.gmra.mxu0 %v1420
    %v1511 = vpop.f32.mrf.mxu0
    %v1512 = vadd.f32 %v1443, %v1511
    %v1513 = vpop.f32.mrf.mxu0
    %1514 = vmatprep.mubr.f32.mxu0 0.0
    %1515 = vmatmul.mubr.f32.gmra.mxu0 %v1421
    %v1516 = vpop.f32.mrf.mxu0
    %v1517 = vadd.f32 %v1443, %v1516
    %v1518 = vpop.f32.mrf.mxu0
    %1519 = vdwg.mxu0
    %v1520 = vadd.f32 %v1512, %v1304
    %v1521 = vadd.f32 %v1517, %v1305
    %v1522 = vld [vmem:[%s14] sm:$0x1]
    %v1523 = vld [vmem:[%s15] sm:$0x1]
    %1524 = vadd.xlane.f32.xlu0 %v1520
    %v1525 = vpop.xlane.xlu0 %1524
    %1526 = vadd.xlane.f32.xlu0 %v1521
    %v1527 = vpop.xlane.xlu0 %1526
    %v1528 = vmul.f32 %v1525, 0.03125
    %v1529 = vmul.f32 %v1527, 0.03125
    %v1530 = vsub.f32 %v1520, %v1528
    %v1531 = vsub.f32 %v1521, %v1529
    %v1532 = vsel %vm161, %v1530, 0.0
    %v1533 = vsel %vm161, %v1531, 0.0
    %v1534 = vmul.f32 %v1532, %v1532
    %v1535 = vmul.f32 %v1533, %v1533
    %1536 = vadd.xlane.f32.xlu0 %v1534
    %v1537 = vpop.xlane.xlu0 %1536
    %1538 = vadd.xlane.f32.xlu0 %v1535
    %v1539 = vpop.xlane.xlu0 %1538
    %v1540 = vmul.f32 %v1537, 0.03125
    %v1541 = vmul.f32 %v1539, 0.03125
    %v1542 = vadd.f32 %v1540, 1e-12
    %v1543 = vadd.f32 %v1541, 1e-12
    %v1544 = vrsqrt.pop %v1542
    %v1545 = vrsqrt.pop %v1543
    %v1546 = vmul.f32 %v1532, %v1544
    %v1547 = vmul.f32 %v1533, %v1545
    %v1549 = vlaneseq
    %v1550 = vshrl.u32 %v1549, 7
    %v1551 = vsub.s32 0, %v1550
    %v1552 = vrot.slane %v1522, %v1551
    %v1554 = vmul.f32 %v1546, %v1552
    %v1555 = vmul.f32 %v1547, %v1552
    %v1557 = vlaneseq
    %v1558 = vshrl.u32 %v1557, 7
    %v1559 = vsub.s32 0, %v1558
    %v1560 = vrot.slane %v1523, %v1559
    %v1562 = vadd.f32 %v1554, %v1560
    %v1563 = vadd.f32 %v1555, %v1560
    %s1564 = scalar_lea.vmem [#allocation2], 384
    %v1565 = vld [vmem:[%s1564] sm:$0xff]
    %v1566 = vld [vmem:[%s1564 + $0x8] sm:$0xff]
    %v1567 = vld [vmem:[%s1564 + $0x10] sm:$0xff]
    %v1568 = vld [vmem:[%s1564 + $0x18] sm:$0xff]
    %v1569 = vld [vmem:[%s1564 + $0x20] sm:$0xff]
    %v1570 = vld [vmem:[%s1564 + $0x28] sm:$0xff]
    %v1571 = vld [vmem:[%s1564 + $0x30] sm:$0xff]
    %v1572 = vld [vmem:[%s1564 + $0x38] sm:$0xff]
    %v1573 = vld [vmem:[%s1564 + $0x40] sm:$0xff]
    %v1574 = vld [vmem:[%s1564 + $0x48] sm:$0xff]
    %v1575 = vld [vmem:[%s1564 + $0x50] sm:$0xff]
    %v1576 = vld [vmem:[%s1564 + $0x58] sm:$0xff]
    %v1577 = vld [vmem:[%s1564 + $0x60] sm:$0xff]
    %v1578 = vld [vmem:[%s1564 + $0x68] sm:$0xff]
    %v1579 = vld [vmem:[%s1564 + $0x70] sm:$0xff]
    %v1580 = vld [vmem:[%s1564 + $0x78] sm:$0xff]
    %v1581 = vld [vmem:[%s1564 + $0x80] sm:$0xff]
    %v1582 = vld [vmem:[%s1564 + $0x88] sm:$0xff]
    %v1583 = vld [vmem:[%s1564 + $0x90] sm:$0xff]
    %v1584 = vld [vmem:[%s1564 + $0x98] sm:$0xff]
    %v1585 = vld [vmem:[%s1564 + $0xa0] sm:$0xff]
    %v1586 = vld [vmem:[%s1564 + $0xa8] sm:$0xff]
    %v1587 = vld [vmem:[%s1564 + $0xb0] sm:$0xff]
    %v1588 = vld [vmem:[%s1564 + $0xb8] sm:$0xff]
    %v1589 = vld [vmem:[%s1564 + $0xc0] sm:$0xff]
    %v1590 = vld [vmem:[%s1564 + $0xc8] sm:$0xff]
    %v1591 = vld [vmem:[%s1564 + $0xd0] sm:$0xff]
    %v1592 = vld [vmem:[%s1564 + $0xd8] sm:$0xff]
    %v1593 = vld [vmem:[%s1564 + $0xe0] sm:$0xff]
    %v1594 = vld [vmem:[%s1564 + $0xe8] sm:$0xff]
    %v1595 = vld [vmem:[%s1564 + $0xf0] sm:$0xff]
    %v1596 = vld [vmem:[%s1564 + $0xf8] sm:$0xff]
    %v1597 = vld [vmem:[%s1564 + $0x100] sm:$0xff]
    %v1598 = vld [vmem:[%s1564 + $0x108] sm:$0xff]
    %v1599 = vld [vmem:[%s1564 + $0x110] sm:$0xff]
    %v1600 = vld [vmem:[%s1564 + $0x118] sm:$0xff]
    %v1601 = vld [vmem:[%s1564 + $0x120] sm:$0xff]
    %v1602 = vld [vmem:[%s1564 + $0x128] sm:$0xff]
    %v1603 = vld [vmem:[%s1564 + $0x130] sm:$0xff]
    %v1604 = vld [vmem:[%s1564 + $0x138] sm:$0xff]
    %v1605 = vld [vmem:[%s1564 + $0x140] sm:$0xff]
    %v1606 = vld [vmem:[%s1564 + $0x148] sm:$0xff]
    %v1607 = vld [vmem:[%s1564 + $0x150] sm:$0xff]
    %v1608 = vld [vmem:[%s1564 + $0x158] sm:$0xff]
    %v1609 = vld [vmem:[%s1564 + $0x160] sm:$0xff]
    %v1610 = vld [vmem:[%s1564 + $0x168] sm:$0xff]
    %v1611 = vld [vmem:[%s1564 + $0x170] sm:$0xff]
    %v1612 = vld [vmem:[%s1564 + $0x178] sm:$0xff]
    %s1613 = scalar_lea.vmem %s5, 3
    %v1614 = vld [vmem:[%s1613] sm:$0x7]
    %v1616 = vlaneseq
    %v1617 = vshrl.u32 %v1616, 7
    %v1618 = vsub.s32 0, %v1617
    %v1619 = vrot.slane %v1614, %v1618
    %v1620 = vlaneseq
    %v1621 = vshrl.u32 %v1620, 7
    %v1622 = vsub.s32 1, %v1621
    %v1623 = vrot.slane %v1614, %v1622
    %v1624 = vlaneseq
    %v1625 = vshrl.u32 %v1624, 7
    %v1626 = vsub.s32 2, %v1625
    %v1627 = vrot.slane %v1614, %v1626
    %1631 = vmatprep.subr.mxu0 %v1611
    %1632 = vmatpush1.msra.mxu0 %v1610
    %1633 = vmatprep.subr.mxu0 %v1608
    %1634 = vmatpush1.msra.mxu0 %v1607
    %1635 = vmatprep.subr.mxu0 %v1605
    %1636 = vmatpush1.msra.mxu0 %v1604
    %1637 = vmatprep.subr.mxu0 %v1602
    %1638 = vmatpush1.msra.mxu0 %v1601
    %1639 = vmatprep.subr.mxu0 %v1599
    %1640 = vmatpush1.msra.mxu0 %v1598
    %1641 = vmatprep.subr.mxu0 %v1596
    %1642 = vmatpush1.msra.mxu0 %v1595
    %1643 = vmatprep.subr.mxu0 %v1593
    %1644 = vmatpush1.msra.mxu0 %v1592
    %1645 = vmatprep.subr.mxu0 %v1590
    %1646 = vmatpush1.msra.mxu0 %v1589
    %1647 = vmatprep.subr.mxu0 %v1587
    %1648 = vmatpush1.msra.mxu0 %v1586
    %1649 = vmatprep.subr.mxu0 %v1584
    %1650 = vmatpush1.msra.mxu0 %v1583
    %1651 = vmatprep.subr.mxu0 %v1581
    %1652 = vmatpush1.msra.mxu0 %v1580
    %1653 = vmatprep.subr.mxu0 %v1578
    %1654 = vmatpush1.msra.mxu0 %v1577
    %1655 = vmatprep.subr.mxu0 %v1575
    %1656 = vmatpush1.msra.mxu0 %v1574
    %1657 = vmatprep.subr.mxu0 %v1572
    %1658 = vmatpush1.msra.mxu0 %v1571
    %1659 = vmatprep.subr.mxu0 %v1569
    %1660 = vmatpush1.msra.mxu0 %v1568
    %1661 = vmatprep.subr.mxu0 %v1566
    %1662 = vmatpush1.msra.mxu0 %v1565
    %1663 = vmatprep.subr.mxu0 0.0
    %1664 = vmatpush2.msra.mxu0 0.0
    %1665 = vmatprep.subr.mxu0 0.0
    %1666 = vmatpush2.msra.mxu0 0.0
    %1667 = vmatprep.subr.mxu0 0.0
    %1668 = vmatpush2.msra.mxu0 0.0
    %1669 = vmatprep.subr.mxu0 0.0
    %1670 = vmatpush2.msra.mxu0 0.0
    %1671 = vmatprep.subr.mxu0 0.0
    %1672 = vmatpush2.msra.mxu0 0.0
    %1673 = vmatprep.subr.mxu0 0.0
    %1674 = vmatpush2.msra.mxu0 0.0
    %1675 = vmatprep.subr.mxu0 0.0
    %1676 = vmatpush2.msra.mxu0 0.0
    %1677 = vmatprep.subr.mxu0 0.0
    %1678 = vmatpush2.msra.mxu0 0.0
    %1679 = vmatprep.subr.mxu0 0.0
    %1680 = vmatpush2.msra.mxu0 0.0
    %1681 = vmatprep.subr.mxu0 0.0
    %1682 = vmatpush2.msra.mxu0 0.0
    %1683 = vmatprep.subr.mxu0 0.0
    %1684 = vmatpush2.msra.mxu0 0.0
    %1685 = vmatprep.subr.mxu0 0.0
    %1686 = vmatpush2.msra.mxu0 0.0
    %1687 = vmatprep.subr.mxu0 0.0
    %1688 = vmatpush2.msra.mxu0 0.0
    %1689 = vmatprep.subr.mxu0 0.0
    %1690 = vmatpush2.msra.mxu0 0.0
    %1691 = vmatprep.subr.mxu0 0.0
    %1692 = vmatpush2.msra.mxu0 0.0
    %1693 = vmatprep.subr.mxu0 0.0
    %1694 = vmatpush2.msra.mxu0 0.0
    %1695 = vmatprep.mubr.f32.mxu0 0.0
    %1696 = vmatmul.mubr.f32.gmra.mxu0 %v1562
    %v1697 = vpop.f32.mrf.mxu0
    %v1698 = vadd.f32 %v1619, %v1697
    %v1699 = vpop.f32.mrf.mxu0
    %v1700 = vadd.f32 %v1623, %v1699
    %1701 = vmatprep.mubr.f32.mxu0 0.0
    %1702 = vmatmul.mubr.f32.gmra.mxu0 %v1563
    %v1703 = vpop.f32.mrf.mxu0
    %v1704 = vadd.f32 %v1619, %v1703
    %v1705 = vpop.f32.mrf.mxu0
    %v1706 = vadd.f32 %v1623, %v1705
    %1707 = vdwg.mxu0
    %1708 = vmatprep.subr.mxu0 0.0
    %1709 = vmatpush1.msra.mxu0 %v1612
    %1710 = vmatprep.subr.mxu0 0.0
    %1711 = vmatpush1.msra.mxu0 %v1609
    %1712 = vmatprep.subr.mxu0 0.0
    %1713 = vmatpush1.msra.mxu0 %v1606
    %1714 = vmatprep.subr.mxu0 0.0
    %1715 = vmatpush1.msra.mxu0 %v1603
    %1716 = vmatprep.subr.mxu0 0.0
    %1717 = vmatpush1.msra.mxu0 %v1600
    %1718 = vmatprep.subr.mxu0 0.0
    %1719 = vmatpush1.msra.mxu0 %v1597
    %1720 = vmatprep.subr.mxu0 0.0
    %1721 = vmatpush1.msra.mxu0 %v1594
    %1722 = vmatprep.subr.mxu0 0.0
    %1723 = vmatpush1.msra.mxu0 %v1591
    %1724 = vmatprep.subr.mxu0 0.0
    %1725 = vmatpush1.msra.mxu0 %v1588
    %1726 = vmatprep.subr.mxu0 0.0
    %1727 = vmatpush1.msra.mxu0 %v1585
    %1728 = vmatprep.subr.mxu0 0.0
    %1729 = vmatpush1.msra.mxu0 %v1582
    %1730 = vmatprep.subr.mxu0 0.0
    %1731 = vmatpush1.msra.mxu0 %v1579
    %1732 = vmatprep.subr.mxu0 0.0
    %1733 = vmatpush1.msra.mxu0 %v1576
    %1734 = vmatprep.subr.mxu0 0.0
    %1735 = vmatpush1.msra.mxu0 %v1573
    %1736 = vmatprep.subr.mxu0 0.0
    %1737 = vmatpush1.msra.mxu0 %v1570
    %1738 = vmatprep.subr.mxu0 0.0
    %1739 = vmatpush1.msra.mxu0 %v1567
    %1740 = vmatprep.subr.mxu0 0.0
    %1741 = vmatpush2.msra.mxu0 0.0
    %1742 = vmatprep.subr.mxu0 0.0
    %1743 = vmatpush2.msra.mxu0 0.0
    %1744 = vmatprep.subr.mxu0 0.0
    %1745 = vmatpush2.msra.mxu0 0.0
    %1746 = vmatprep.subr.mxu0 0.0
    %1747 = vmatpush2.msra.mxu0 0.0
    %1748 = vmatprep.subr.mxu0 0.0
    %1749 = vmatpush2.msra.mxu0 0.0
    %1750 = vmatprep.subr.mxu0 0.0
    %1751 = vmatpush2.msra.mxu0 0.0
    %1752 = vmatprep.subr.mxu0 0.0
    %1753 = vmatpush2.msra.mxu0 0.0
    %1754 = vmatprep.subr.mxu0 0.0
    %1755 = vmatpush2.msra.mxu0 0.0
    %1756 = vmatprep.subr.mxu0 0.0
    %1757 = vmatpush2.msra.mxu0 0.0
    %1758 = vmatprep.subr.mxu0 0.0
    %1759 = vmatpush2.msra.mxu0 0.0
    %1760 = vmatprep.subr.mxu0 0.0
    %1761 = vmatpush2.msra.mxu0 0.0
    %1762 = vmatprep.subr.mxu0 0.0
    %1763 = vmatpush2.msra.mxu0 0.0
    %1764 = vmatprep.subr.mxu0 0.0
    %1765 = vmatpush2.msra.mxu0 0.0
    %1766 = vmatprep.subr.mxu0 0.0
    %1767 = vmatpush2.msra.mxu0 0.0
    %1768 = vmatprep.subr.mxu0 0.0
    %1769 = vmatpush2.msra.mxu0 0.0
    %1770 = vmatprep.subr.mxu0 0.0
    %1771 = vmatpush2.msra.mxu0 0.0
    %1772 = vmatprep.mubr.f32.mxu0 0.0
    %1773 = vmatmul.mubr.f32.gmra.mxu0 %v1562
    %v1774 = vpop.f32.mrf.mxu0
    %v1775 = vadd.f32 %v1627, %v1774
    %v1776 = vpop.f32.mrf.mxu0
    %1777 = vmatprep.mubr.f32.mxu0 0.0
    %1778 = vmatmul.mubr.f32.gmra.mxu0 %v1563
    %v1779 = vpop.f32.mrf.mxu0
    %v1780 = vadd.f32 %v1627, %v1779
    %v1781 = vpop.f32.mrf.mxu0
    %1782 = vdwg.mxu0
    %v1783 = vmul.f32 %v1698, %v131
    %v1784 = vmul.f32 %v1704, %v131
    %1785 = vmatprep.subr.mxu0 0.0
    %1786 = vmatpush1.xpose.msra.mxu0 0.0
    %1787 = vmatprep.subr.mxu0 0.0
    %1788 = vmatpush1.xpose.msra.mxu0 0.0
    %1789 = vmatprep.subr.mxu0 0.0
    %1790 = vmatpush1.xpose.msra.mxu0 0.0
    %1791 = vmatprep.subr.mxu0 0.0
    %1792 = vmatpush1.xpose.msra.mxu0 0.0
    %1793 = vmatprep.subr.mxu0 0.0
    %1794 = vmatpush1.xpose.msra.mxu0 0.0
    %1795 = vmatprep.subr.mxu0 0.0
    %1796 = vmatpush1.xpose.msra.mxu0 0.0
    %1797 = vmatprep.subr.mxu0 0.0
    %1798 = vmatpush1.xpose.msra.mxu0 0.0
    %1799 = vmatprep.subr.mxu0 0.0
    %1800 = vmatpush1.xpose.msra.mxu0 0.0
    %1801 = vmatprep.subr.mxu0 0.0
    %1802 = vmatpush1.xpose.msra.mxu0 0.0
    %1803 = vmatprep.subr.mxu0 0.0
    %1804 = vmatpush1.xpose.msra.mxu0 0.0
    %1805 = vmatprep.subr.mxu0 0.0
    %1806 = vmatpush1.xpose.msra.mxu0 0.0
    %1807 = vmatprep.subr.mxu0 0.0
    %1808 = vmatpush1.xpose.msra.mxu0 0.0
    %1809 = vmatprep.subr.mxu0 0.0
    %1810 = vmatpush1.xpose.msra.mxu0 0.0
    %1811 = vmatprep.subr.mxu0 0.0
    %1812 = vmatpush1.xpose.msra.mxu0 0.0
    %1813 = vmatprep.subr.mxu0 0.0
    %1814 = vmatpush1.xpose.msra.mxu0 %v1706
    %1815 = vmatprep.subr.mxu0 0.0
    %1816 = vmatpush1.xpose.msra.mxu0 %v1700
    %1817 = vmatprep.subr.mxu0 0.0
    %1818 = vmatpush2.xpose.msra.mxu0 0.0
    %1819 = vmatprep.subr.mxu0 0.0
    %1820 = vmatpush2.xpose.msra.mxu0 0.0
    %1821 = vmatprep.subr.mxu0 0.0
    %1822 = vmatpush2.xpose.msra.mxu0 0.0
    %1823 = vmatprep.subr.mxu0 0.0
    %1824 = vmatpush2.xpose.msra.mxu0 0.0
    %1825 = vmatprep.subr.mxu0 0.0
    %1826 = vmatpush2.xpose.msra.mxu0 0.0
    %1827 = vmatprep.subr.mxu0 0.0
    %1828 = vmatpush2.xpose.msra.mxu0 0.0
    %1829 = vmatprep.subr.mxu0 0.0
    %1830 = vmatpush2.xpose.msra.mxu0 0.0
    %1831 = vmatprep.subr.mxu0 0.0
    %1832 = vmatpush2.xpose.msra.mxu0 0.0
    %1833 = vmatprep.subr.mxu0 0.0
    %1834 = vmatpush2.xpose.msra.mxu0 0.0
    %1835 = vmatprep.subr.mxu0 0.0
    %1836 = vmatpush2.xpose.msra.mxu0 0.0
    %1837 = vmatprep.subr.mxu0 0.0
    %1838 = vmatpush2.xpose.msra.mxu0 0.0
    %1839 = vmatprep.subr.mxu0 0.0
    %1840 = vmatpush2.xpose.msra.mxu0 0.0
    %1841 = vmatprep.subr.mxu0 0.0
    %1842 = vmatpush2.xpose.msra.mxu0 0.0
    %1843 = vmatprep.subr.mxu0 0.0
    %1844 = vmatpush2.xpose.msra.mxu0 0.0
    %1845 = vmatprep.subr.mxu0 0.0
    %1846 = vmatpush2.xpose.msra.mxu0 0.0
    %1847 = vmatprep.subr.mxu0 0.0
    %1848 = vmatpush2.xpose.msra.mxu0 0.0
    %1849 = vmatprep.mubr.f32.mxu0 0.0
    %1850 = vmatmul.mubr.f32.gmra.mxu0 %v1783
    %v1851 = vpop.f32.mrf.mxu0
    %v1852 = vadd.f32 0.0, %v1851
    %v1853 = vpop.f32.mrf.mxu0
    %1854 = vmatprep.mubr.f32.mxu0 0.0
    %1855 = vmatmul.mubr.f32.gmra.mxu0 %v1784
    %v1856 = vpop.f32.mrf.mxu0
    %v1857 = vadd.f32 0.0, %v1856
    %v1858 = vpop.f32.mrf.mxu0
    %1859 = vdwg.mxu0
    %v1860 = vmul.f32 %v1852, 0.35355338
    %v1861 = vmul.f32 %v1857, 0.35355338
    %v1862 = vadd.f32 %v1860, %v146
    %v1863 = vadd.f32 %v1861, %v147
    %v1864 = vsel %vm492, %v1862, -inf
    %1865 = vmax.xlane.f32.xlu0 %v1864
    %v1866 = vpop.xlane.xlu0 %1865
    %v1867 = vsel %vm492, %v1863, -inf
    %1868 = vmax.xlane.f32.xlu0 %v1867
    %v1869 = vpop.xlane.xlu0 %1868
    %v1870 = vsub.f32 %v1862, %v1866
    %v1871 = vsub.f32 %v1863, %v1869
    %v1872 = vmul.f32 %v1870, 1.442695
    %v1873 = vpow.pop %v1872
    %v1874 = vmul.f32 %v1871, 1.442695
    %v1875 = vpow.pop %v1874
    %v1876 = vsel %vm492, %v1873, 0.0
    %1877 = vadd.xlane.f32.xlu0 %v1876
    %v1878 = vpop.xlane.xlu0 %1877
    %v1879 = vsel %vm492, %v1875, 0.0
    %1880 = vadd.xlane.f32.xlu0 %v1879
    %v1881 = vpop.xlane.xlu0 %1880
    %v1882 = vrcp.pop %v1878
    %v1883 = vmul.f32 %v1873, %v1882
    %v1884 = vrcp.pop %v1881
    %v1885 = vmul.f32 %v1875, %v1884
    %v1887 = vsel %vm492, %v1883, 0
    %v1890 = vsel %vm492, %v1885, 0
    %1892 = vmatprep.subr.mxu0 0.0
    %1893 = vmatpush1.msra.mxu0 0.0
    %1894 = vmatprep.subr.mxu0 0.0
    %1895 = vmatpush1.msra.mxu0 0.0
    %1896 = vmatprep.subr.mxu0 0.0
    %1897 = vmatpush1.msra.mxu0 0.0
    %1898 = vmatprep.subr.mxu0 0.0
    %1899 = vmatpush1.msra.mxu0 0.0
    %1900 = vmatprep.subr.mxu0 0.0
    %1901 = vmatpush1.msra.mxu0 0.0
    %1902 = vmatprep.subr.mxu0 0.0
    %1903 = vmatpush1.msra.mxu0 0.0
    %1904 = vmatprep.subr.mxu0 0.0
    %1905 = vmatpush1.msra.mxu0 0.0
    %1906 = vmatprep.subr.mxu0 0.0
    %1907 = vmatpush1.msra.mxu0 0.0
    %1908 = vmatprep.subr.mxu0 0.0
    %1909 = vmatpush1.msra.mxu0 0.0
    %1910 = vmatprep.subr.mxu0 0.0
    %1911 = vmatpush1.msra.mxu0 0.0
    %1912 = vmatprep.subr.mxu0 0.0
    %1913 = vmatpush1.msra.mxu0 0.0
    %1914 = vmatprep.subr.mxu0 0.0
    %1915 = vmatpush1.msra.mxu0 0.0
    %1916 = vmatprep.subr.mxu0 0.0
    %1917 = vmatpush1.msra.mxu0 0.0
    %1918 = vmatprep.subr.mxu0 0.0
    %1919 = vmatpush1.msra.mxu0 0.0
    %1920 = vmatprep.subr.mxu0 0.0
    %1921 = vmatpush1.msra.mxu0 %v1780
    %1922 = vmatprep.subr.mxu0 0.0
    %1923 = vmatpush1.msra.mxu0 %v1775
    %1924 = vmatprep.subr.mxu0 0.0
    %1925 = vmatpush2.msra.mxu0 0.0
    %1926 = vmatprep.subr.mxu0 0.0
    %1927 = vmatpush2.msra.mxu0 0.0
    %1928 = vmatprep.subr.mxu0 0.0
    %1929 = vmatpush2.msra.mxu0 0.0
    %1930 = vmatprep.subr.mxu0 0.0
    %1931 = vmatpush2.msra.mxu0 0.0
    %1932 = vmatprep.subr.mxu0 0.0
    %1933 = vmatpush2.msra.mxu0 0.0
    %1934 = vmatprep.subr.mxu0 0.0
    %1935 = vmatpush2.msra.mxu0 0.0
    %1936 = vmatprep.subr.mxu0 0.0
    %1937 = vmatpush2.msra.mxu0 0.0
    %1938 = vmatprep.subr.mxu0 0.0
    %1939 = vmatpush2.msra.mxu0 0.0
    %1940 = vmatprep.subr.mxu0 0.0
    %1941 = vmatpush2.msra.mxu0 0.0
    %1942 = vmatprep.subr.mxu0 0.0
    %1943 = vmatpush2.msra.mxu0 0.0
    %1944 = vmatprep.subr.mxu0 0.0
    %1945 = vmatpush2.msra.mxu0 0.0
    %1946 = vmatprep.subr.mxu0 0.0
    %1947 = vmatpush2.msra.mxu0 0.0
    %1948 = vmatprep.subr.mxu0 0.0
    %1949 = vmatpush2.msra.mxu0 0.0
    %1950 = vmatprep.subr.mxu0 0.0
    %1951 = vmatpush2.msra.mxu0 0.0
    %1952 = vmatprep.subr.mxu0 0.0
    %1953 = vmatpush2.msra.mxu0 0.0
    %1954 = vmatprep.subr.mxu0 0.0
    %1955 = vmatpush2.msra.mxu0 0.0
    %1956 = vmatprep.mubr.f32.mxu0 0.0
    %1957 = vmatmul.mubr.f32.gmra.mxu0 %v1887
    %v1958 = vpop.f32.mrf.mxu0
    %v1959 = vadd.f32 0.0, %v1958
    %v1960 = vpop.f32.mrf.mxu0
    %1961 = vmatprep.mubr.f32.mxu0 0.0
    %1962 = vmatmul.mubr.f32.gmra.mxu0 %v1890
    %v1963 = vpop.f32.mrf.mxu0
    %v1964 = vadd.f32 0.0, %v1963
    %v1965 = vpop.f32.mrf.mxu0
    %1966 = vdwg.mxu0
    %v1967 = vmul.f32 %v1959, %v131
    %v1968 = vmul.f32 %v1964, %v131
    %v1969 = vadd.f32 %v1967, 0.0
    %v1970 = vadd.f32 %v1968, 0.0
    %v1971 = vmul.f32 %v1698, %v136
    %v1972 = vmul.f32 %v1704, %v136
    %1973 = vmatprep.subr.mxu0 0.0
    %1974 = vmatpush1.xpose.msra.mxu0 0.0
    %1975 = vmatprep.subr.mxu0 0.0
    %1976 = vmatpush1.xpose.msra.mxu0 0.0
    %1977 = vmatprep.subr.mxu0 0.0
    %1978 = vmatpush1.xpose.msra.mxu0 0.0
    %1979 = vmatprep.subr.mxu0 0.0
    %1980 = vmatpush1.xpose.msra.mxu0 0.0
    %1981 = vmatprep.subr.mxu0 0.0
    %1982 = vmatpush1.xpose.msra.mxu0 0.0
    %1983 = vmatprep.subr.mxu0 0.0
    %1984 = vmatpush1.xpose.msra.mxu0 0.0
    %1985 = vmatprep.subr.mxu0 0.0
    %1986 = vmatpush1.xpose.msra.mxu0 0.0
    %1987 = vmatprep.subr.mxu0 0.0
    %1988 = vmatpush1.xpose.msra.mxu0 0.0
    %1989 = vmatprep.subr.mxu0 0.0
    %1990 = vmatpush1.xpose.msra.mxu0 0.0
    %1991 = vmatprep.subr.mxu0 0.0
    %1992 = vmatpush1.xpose.msra.mxu0 0.0
    %1993 = vmatprep.subr.mxu0 0.0
    %1994 = vmatpush1.xpose.msra.mxu0 0.0
    %1995 = vmatprep.subr.mxu0 0.0
    %1996 = vmatpush1.xpose.msra.mxu0 0.0
    %1997 = vmatprep.subr.mxu0 0.0
    %1998 = vmatpush1.xpose.msra.mxu0 0.0
    %1999 = vmatprep.subr.mxu0 0.0
    %2000 = vmatpush1.xpose.msra.mxu0 0.0
    %2001 = vmatprep.subr.mxu0 0.0
    %2002 = vmatpush1.xpose.msra.mxu0 %v1706
    %2003 = vmatprep.subr.mxu0 0.0
    %2004 = vmatpush1.xpose.msra.mxu0 %v1700
    %2005 = vmatprep.subr.mxu0 0.0
    %2006 = vmatpush2.xpose.msra.mxu0 0.0
    %2007 = vmatprep.subr.mxu0 0.0
    %2008 = vmatpush2.xpose.msra.mxu0 0.0
    %2009 = vmatprep.subr.mxu0 0.0
    %2010 = vmatpush2.xpose.msra.mxu0 0.0
    %2011 = vmatprep.subr.mxu0 0.0
    %2012 = vmatpush2.xpose.msra.mxu0 0.0
    %2013 = vmatprep.subr.mxu0 0.0
    %2014 = vmatpush2.xpose.msra.mxu0 0.0
    %2015 = vmatprep.subr.mxu0 0.0
    %2016 = vmatpush2.xpose.msra.mxu0 0.0
    %2017 = vmatprep.subr.mxu0 0.0
    %2018 = vmatpush2.xpose.msra.mxu0 0.0
    %2019 = vmatprep.subr.mxu0 0.0
    %2020 = vmatpush2.xpose.msra.mxu0 0.0
    %2021 = vmatprep.subr.mxu0 0.0
    %2022 = vmatpush2.xpose.msra.mxu0 0.0
    %2023 = vmatprep.subr.mxu0 0.0
    %2024 = vmatpush2.xpose.msra.mxu0 0.0
    %2025 = vmatprep.subr.mxu0 0.0
    %2026 = vmatpush2.xpose.msra.mxu0 0.0
    %2027 = vmatprep.subr.mxu0 0.0
    %2028 = vmatpush2.xpose.msra.mxu0 0.0
    %2029 = vmatprep.subr.mxu0 0.0
    %2030 = vmatpush2.xpose.msra.mxu0 0.0
    %2031 = vmatprep.subr.mxu0 0.0
    %2032 = vmatpush2.xpose.msra.mxu0 0.0
    %2033 = vmatprep.subr.mxu0 0.0
    %2034 = vmatpush2.xpose.msra.mxu0 0.0
    %2035 = vmatprep.subr.mxu0 0.0
    %2036 = vmatpush2.xpose.msra.mxu0 0.0
    %2037 = vmatprep.mubr.f32.mxu0 0.0
    %2038 = vmatmul.mubr.f32.gmra.mxu0 %v1971
    %v2039 = vpop.f32.mrf.mxu0
    %v2040 = vadd.f32 0.0, %v2039
    %v2041 = vpop.f32.mrf.mxu0
    %2042 = vmatprep.mubr.f32.mxu0 0.0
    %2043 = vmatmul.mubr.f32.gmra.mxu0 %v1972
    %v2044 = vpop.f32.mrf.mxu0
    %v2045 = vadd.f32 0.0, %v2044
    %v2046 = vpop.f32.mrf.mxu0
    %2047 = vdwg.mxu0
    %v2048 = vmul.f32 %v2040, 0.35355338
    %v2049 = vmul.f32 %v2045, 0.35355338
    %v2050 = vadd.f32 %v2048, %v146
    %v2051 = vadd.f32 %v2049, %v147
    %v2052 = vsel %vm492, %v2050, -inf
    %2053 = vmax.xlane.f32.xlu0 %v2052
    %v2054 = vpop.xlane.xlu0 %2053
    %v2055 = vsel %vm492, %v2051, -inf
    %2056 = vmax.xlane.f32.xlu0 %v2055
    %v2057 = vpop.xlane.xlu0 %2056
    %v2058 = vsub.f32 %v2050, %v2054
    %v2059 = vsub.f32 %v2051, %v2057
    %v2060 = vmul.f32 %v2058, 1.442695
    %v2061 = vpow.pop %v2060
    %v2062 = vmul.f32 %v2059, 1.442695
    %v2063 = vpow.pop %v2062
    %v2064 = vsel %vm492, %v2061, 0.0
    %2065 = vadd.xlane.f32.xlu0 %v2064
    %v2066 = vpop.xlane.xlu0 %2065
    %v2067 = vsel %vm492, %v2063, 0.0
    %2068 = vadd.xlane.f32.xlu0 %v2067
    %v2069 = vpop.xlane.xlu0 %2068
    %v2070 = vrcp.pop %v2066
    %v2071 = vmul.f32 %v2061, %v2070
    %v2072 = vrcp.pop %v2069
    %v2073 = vmul.f32 %v2063, %v2072
    %v2075 = vsel %vm492, %v2071, 0
    %v2078 = vsel %vm492, %v2073, 0
    %2080 = vmatprep.subr.mxu0 0.0
    %2081 = vmatpush1.msra.mxu0 0.0
    %2082 = vmatprep.subr.mxu0 0.0
    %2083 = vmatpush1.msra.mxu0 0.0
    %2084 = vmatprep.subr.mxu0 0.0
    %2085 = vmatpush1.msra.mxu0 0.0
    %2086 = vmatprep.subr.mxu0 0.0
    %2087 = vmatpush1.msra.mxu0 0.0
    %2088 = vmatprep.subr.mxu0 0.0
    %2089 = vmatpush1.msra.mxu0 0.0
    %2090 = vmatprep.subr.mxu0 0.0
    %2091 = vmatpush1.msra.mxu0 0.0
    %2092 = vmatprep.subr.mxu0 0.0
    %2093 = vmatpush1.msra.mxu0 0.0
    %2094 = vmatprep.subr.mxu0 0.0
    %2095 = vmatpush1.msra.mxu0 0.0
    %2096 = vmatprep.subr.mxu0 0.0
    %2097 = vmatpush1.msra.mxu0 0.0
    %2098 = vmatprep.subr.mxu0 0.0
    %2099 = vmatpush1.msra.mxu0 0.0
    %2100 = vmatprep.subr.mxu0 0.0
    %2101 = vmatpush1.msra.mxu0 0.0
    %2102 = vmatprep.subr.mxu0 0.0
    %2103 = vmatpush1.msra.mxu0 0.0
    %2104 = vmatprep.subr.mxu0 0.0
    %2105 = vmatpush1.msra.mxu0 0.0
    %2106 = vmatprep.subr.mxu0 0.0
    %2107 = vmatpush1.msra.mxu0 0.0
    %2108 = vmatprep.subr.mxu0 0.0
    %2109 = vmatpush1.msra.mxu0 %v1780
    %2110 = vmatprep.subr.mxu0 0.0
    %2111 = vmatpush1.msra.mxu0 %v1775
    %2112 = vmatprep.subr.mxu0 0.0
    %2113 = vmatpush2.msra.mxu0 0.0
    %2114 = vmatprep.subr.mxu0 0.0
    %2115 = vmatpush2.msra.mxu0 0.0
    %2116 = vmatprep.subr.mxu0 0.0
    %2117 = vmatpush2.msra.mxu0 0.0
    %2118 = vmatprep.subr.mxu0 0.0
    %2119 = vmatpush2.msra.mxu0 0.0
    %2120 = vmatprep.subr.mxu0 0.0
    %2121 = vmatpush2.msra.mxu0 0.0
    %2122 = vmatprep.subr.mxu0 0.0
    %2123 = vmatpush2.msra.mxu0 0.0
    %2124 = vmatprep.subr.mxu0 0.0
    %2125 = vmatpush2.msra.mxu0 0.0
    %2126 = vmatprep.subr.mxu0 0.0
    %2127 = vmatpush2.msra.mxu0 0.0
    %2128 = vmatprep.subr.mxu0 0.0
    %2129 = vmatpush2.msra.mxu0 0.0
    %2130 = vmatprep.subr.mxu0 0.0
    %2131 = vmatpush2.msra.mxu0 0.0
    %2132 = vmatprep.subr.mxu0 0.0
    %2133 = vmatpush2.msra.mxu0 0.0
    %2134 = vmatprep.subr.mxu0 0.0
    %2135 = vmatpush2.msra.mxu0 0.0
    %2136 = vmatprep.subr.mxu0 0.0
    %2137 = vmatpush2.msra.mxu0 0.0
    %2138 = vmatprep.subr.mxu0 0.0
    %2139 = vmatpush2.msra.mxu0 0.0
    %2140 = vmatprep.subr.mxu0 0.0
    %2141 = vmatpush2.msra.mxu0 0.0
    %2142 = vmatprep.subr.mxu0 0.0
    %2143 = vmatpush2.msra.mxu0 0.0
    %2144 = vmatprep.mubr.f32.mxu0 0.0
    %2145 = vmatmul.mubr.f32.gmra.mxu0 %v2075
    %v2146 = vpop.f32.mrf.mxu0
    %v2147 = vadd.f32 0.0, %v2146
    %v2148 = vpop.f32.mrf.mxu0
    %2149 = vmatprep.mubr.f32.mxu0 0.0
    %2150 = vmatmul.mubr.f32.gmra.mxu0 %v2078
    %v2151 = vpop.f32.mrf.mxu0
    %v2152 = vadd.f32 0.0, %v2151
    %v2153 = vpop.f32.mrf.mxu0
    %2154 = vdwg.mxu0
    %v2155 = vmul.f32 %v2147, %v136
    %v2156 = vmul.f32 %v2152, %v136
    %v2157 = vadd.f32 %v1969, %v2155
    %v2158 = vadd.f32 %v1970, %v2156
    %v2159 = vmul.f32 %v1698, %v141
    %v2160 = vmul.f32 %v1704, %v141
    %2161 = vmatprep.subr.mxu0 0.0
    %2162 = vmatpush1.xpose.msra.mxu0 0.0
    %2163 = vmatprep.subr.mxu0 0.0
    %2164 = vmatpush1.xpose.msra.mxu0 0.0
    %2165 = vmatprep.subr.mxu0 0.0
    %2166 = vmatpush1.xpose.msra.mxu0 0.0
    %2167 = vmatprep.subr.mxu0 0.0
    %2168 = vmatpush1.xpose.msra.mxu0 0.0
    %2169 = vmatprep.subr.mxu0 0.0
    %2170 = vmatpush1.xpose.msra.mxu0 0.0
    %2171 = vmatprep.subr.mxu0 0.0
    %2172 = vmatpush1.xpose.msra.mxu0 0.0
    %2173 = vmatprep.subr.mxu0 0.0
    %2174 = vmatpush1.xpose.msra.mxu0 0.0
    %2175 = vmatprep.subr.mxu0 0.0
    %2176 = vmatpush1.xpose.msra.mxu0 0.0
    %2177 = vmatprep.subr.mxu0 0.0
    %2178 = vmatpush1.xpose.msra.mxu0 0.0
    %2179 = vmatprep.subr.mxu0 0.0
    %2180 = vmatpush1.xpose.msra.mxu0 0.0
    %2181 = vmatprep.subr.mxu0 0.0
    %2182 = vmatpush1.xpose.msra.mxu0 0.0
    %2183 = vmatprep.subr.mxu0 0.0
    %2184 = vmatpush1.xpose.msra.mxu0 0.0
    %2185 = vmatprep.subr.mxu0 0.0
    %2186 = vmatpush1.xpose.msra.mxu0 0.0
    %2187 = vmatprep.subr.mxu0 0.0
    %2188 = vmatpush1.xpose.msra.mxu0 0.0
    %2189 = vmatprep.subr.mxu0 0.0
    %2190 = vmatpush1.xpose.msra.mxu0 %v1706
    %2191 = vmatprep.subr.mxu0 0.0
    %2192 = vmatpush1.xpose.msra.mxu0 %v1700
    %2193 = vmatprep.subr.mxu0 0.0
    %2194 = vmatpush2.xpose.msra.mxu0 0.0
    %2195 = vmatprep.subr.mxu0 0.0
    %2196 = vmatpush2.xpose.msra.mxu0 0.0
    %2197 = vmatprep.subr.mxu0 0.0
    %2198 = vmatpush2.xpose.msra.mxu0 0.0
    %2199 = vmatprep.subr.mxu0 0.0
    %2200 = vmatpush2.xpose.msra.mxu0 0.0
    %2201 = vmatprep.subr.mxu0 0.0
    %2202 = vmatpush2.xpose.msra.mxu0 0.0
    %2203 = vmatprep.subr.mxu0 0.0
    %2204 = vmatpush2.xpose.msra.mxu0 0.0
    %2205 = vmatprep.subr.mxu0 0.0
    %2206 = vmatpush2.xpose.msra.mxu0 0.0
    %2207 = vmatprep.subr.mxu0 0.0
    %2208 = vmatpush2.xpose.msra.mxu0 0.0
    %2209 = vmatprep.subr.mxu0 0.0
    %2210 = vmatpush2.xpose.msra.mxu0 0.0
    %2211 = vmatprep.subr.mxu0 0.0
    %2212 = vmatpush2.xpose.msra.mxu0 0.0
    %2213 = vmatprep.subr.mxu0 0.0
    %2214 = vmatpush2.xpose.msra.mxu0 0.0
    %2215 = vmatprep.subr.mxu0 0.0
    %2216 = vmatpush2.xpose.msra.mxu0 0.0
    %2217 = vmatprep.subr.mxu0 0.0
    %2218 = vmatpush2.xpose.msra.mxu0 0.0
    %2219 = vmatprep.subr.mxu0 0.0
    %2220 = vmatpush2.xpose.msra.mxu0 0.0
    %2221 = vmatprep.subr.mxu0 0.0
    %2222 = vmatpush2.xpose.msra.mxu0 0.0
    %2223 = vmatprep.subr.mxu0 0.0
    %2224 = vmatpush2.xpose.msra.mxu0 0.0
    %2225 = vmatprep.mubr.f32.mxu0 0.0
    %2226 = vmatmul.mubr.f32.gmra.mxu0 %v2159
    %v2227 = vpop.f32.mrf.mxu0
    %v2228 = vadd.f32 0.0, %v2227
    %v2229 = vpop.f32.mrf.mxu0
    %2230 = vmatprep.mubr.f32.mxu0 0.0
    %2231 = vmatmul.mubr.f32.gmra.mxu0 %v2160
    %v2232 = vpop.f32.mrf.mxu0
    %v2233 = vadd.f32 0.0, %v2232
    %v2234 = vpop.f32.mrf.mxu0
    %2235 = vdwg.mxu0
    %v2236 = vmul.f32 %v2228, 0.35355338
    %v2237 = vmul.f32 %v2233, 0.35355338
    %v2238 = vadd.f32 %v2236, %v146
    %v2239 = vadd.f32 %v2237, %v147
    %v2240 = vsel %vm492, %v2238, -inf
    %2241 = vmax.xlane.f32.xlu0 %v2240
    %v2242 = vpop.xlane.xlu0 %2241
    %v2243 = vsel %vm492, %v2239, -inf
    %2244 = vmax.xlane.f32.xlu0 %v2243
    %v2245 = vpop.xlane.xlu0 %2244
    %v2246 = vsub.f32 %v2238, %v2242
    %v2247 = vsub.f32 %v2239, %v2245
    %v2248 = vmul.f32 %v2246, 1.442695
    %v2249 = vpow.pop %v2248
    %v2250 = vmul.f32 %v2247, 1.442695
    %v2251 = vpow.pop %v2250
    %v2252 = vsel %vm492, %v2249, 0.0
    %2253 = vadd.xlane.f32.xlu0 %v2252
    %v2254 = vpop.xlane.xlu0 %2253
    %v2255 = vsel %vm492, %v2251, 0.0
    %2256 = vadd.xlane.f32.xlu0 %v2255
    %v2257 = vpop.xlane.xlu0 %2256
    %v2258 = vrcp.pop %v2254
    %v2259 = vmul.f32 %v2249, %v2258
    %v2260 = vrcp.pop %v2257
    %v2261 = vmul.f32 %v2251, %v2260
    %v2263 = vsel %vm492, %v2259, 0
    %v2266 = vsel %vm492, %v2261, 0
    %2268 = vmatprep.subr.mxu0 0.0
    %2269 = vmatpush1.msra.mxu0 0.0
    %2270 = vmatprep.subr.mxu0 0.0
    %2271 = vmatpush1.msra.mxu0 0.0
    %2272 = vmatprep.subr.mxu0 0.0
    %2273 = vmatpush1.msra.mxu0 0.0
    %2274 = vmatprep.subr.mxu0 0.0
    %2275 = vmatpush1.msra.mxu0 0.0
    %2276 = vmatprep.subr.mxu0 0.0
    %2277 = vmatpush1.msra.mxu0 0.0
    %2278 = vmatprep.subr.mxu0 0.0
    %2279 = vmatpush1.msra.mxu0 0.0
    %2280 = vmatprep.subr.mxu0 0.0
    %2281 = vmatpush1.msra.mxu0 0.0
    %2282 = vmatprep.subr.mxu0 0.0
    %2283 = vmatpush1.msra.mxu0 0.0
    %2284 = vmatprep.subr.mxu0 0.0
    %2285 = vmatpush1.msra.mxu0 0.0
    %2286 = vmatprep.subr.mxu0 0.0
    %2287 = vmatpush1.msra.mxu0 0.0
    %2288 = vmatprep.subr.mxu0 0.0
    %2289 = vmatpush1.msra.mxu0 0.0
    %2290 = vmatprep.subr.mxu0 0.0
    %2291 = vmatpush1.msra.mxu0 0.0
    %2292 = vmatprep.subr.mxu0 0.0
    %2293 = vmatpush1.msra.mxu0 0.0
    %2294 = vmatprep.subr.mxu0 0.0
    %2295 = vmatpush1.msra.mxu0 0.0
    %2296 = vmatprep.subr.mxu0 0.0
    %2297 = vmatpush1.msra.mxu0 %v1780
    %2298 = vmatprep.subr.mxu0 0.0
    %2299 = vmatpush1.msra.mxu0 %v1775
    %2300 = vmatprep.subr.mxu0 0.0
    %2301 = vmatpush2.msra.mxu0 0.0
    %2302 = vmatprep.subr.mxu0 0.0
    %2303 = vmatpush2.msra.mxu0 0.0
    %2304 = vmatprep.subr.mxu0 0.0
    %2305 = vmatpush2.msra.mxu0 0.0
    %2306 = vmatprep.subr.mxu0 0.0
    %2307 = vmatpush2.msra.mxu0 0.0
    %2308 = vmatprep.subr.mxu0 0.0
    %2309 = vmatpush2.msra.mxu0 0.0
    %2310 = vmatprep.subr.mxu0 0.0
    %2311 = vmatpush2.msra.mxu0 0.0
    %2312 = vmatprep.subr.mxu0 0.0
    %2313 = vmatpush2.msra.mxu0 0.0
    %2314 = vmatprep.subr.mxu0 0.0
    %2315 = vmatpush2.msra.mxu0 0.0
    %2316 = vmatprep.subr.mxu0 0.0
    %2317 = vmatpush2.msra.mxu0 0.0
    %2318 = vmatprep.subr.mxu0 0.0
    %2319 = vmatpush2.msra.mxu0 0.0
    %2320 = vmatprep.subr.mxu0 0.0
    %2321 = vmatpush2.msra.mxu0 0.0
    %2322 = vmatprep.subr.mxu0 0.0
    %2323 = vmatpush2.msra.mxu0 0.0
    %2324 = vmatprep.subr.mxu0 0.0
    %2325 = vmatpush2.msra.mxu0 0.0
    %2326 = vmatprep.subr.mxu0 0.0
    %2327 = vmatpush2.msra.mxu0 0.0
    %2328 = vmatprep.subr.mxu0 0.0
    %2329 = vmatpush2.msra.mxu0 0.0
    %2330 = vmatprep.subr.mxu0 0.0
    %2331 = vmatpush2.msra.mxu0 0.0
    %2332 = vmatprep.mubr.f32.mxu0 0.0
    %2333 = vmatmul.mubr.f32.gmra.mxu0 %v2263
    %v2334 = vpop.f32.mrf.mxu0
    %v2335 = vadd.f32 0.0, %v2334
    %v2336 = vpop.f32.mrf.mxu0
    %2337 = vmatprep.mubr.f32.mxu0 0.0
    %2338 = vmatmul.mubr.f32.gmra.mxu0 %v2266
    %v2339 = vpop.f32.mrf.mxu0
    %v2340 = vadd.f32 0.0, %v2339
    %v2341 = vpop.f32.mrf.mxu0
    %2342 = vdwg.mxu0
    %v2343 = vmul.f32 %v2335, %v141
    %v2344 = vmul.f32 %v2340, %v141
    %v2345 = vadd.f32 %v2157, %v2343
    %v2346 = vadd.f32 %v2158, %v2344
    %v2347 = vmul.f32 %v1698, %v145
    %v2348 = vmul.f32 %v1704, %v145
    %2349 = vmatprep.subr.mxu0 0.0
    %2350 = vmatpush1.xpose.msra.mxu0 0.0
    %2351 = vmatprep.subr.mxu0 0.0
    %2352 = vmatpush1.xpose.msra.mxu0 0.0
    %2353 = vmatprep.subr.mxu0 0.0
    %2354 = vmatpush1.xpose.msra.mxu0 0.0
    %2355 = vmatprep.subr.mxu0 0.0
    %2356 = vmatpush1.xpose.msra.mxu0 0.0
    %2357 = vmatprep.subr.mxu0 0.0
    %2358 = vmatpush1.xpose.msra.mxu0 0.0
    %2359 = vmatprep.subr.mxu0 0.0
    %2360 = vmatpush1.xpose.msra.mxu0 0.0
    %2361 = vmatprep.subr.mxu0 0.0
    %2362 = vmatpush1.xpose.msra.mxu0 0.0
    %2363 = vmatprep.subr.mxu0 0.0
    %2364 = vmatpush1.xpose.msra.mxu0 0.0
    %2365 = vmatprep.subr.mxu0 0.0
    %2366 = vmatpush1.xpose.msra.mxu0 0.0
    %2367 = vmatprep.subr.mxu0 0.0
    %2368 = vmatpush1.xpose.msra.mxu0 0.0
    %2369 = vmatprep.subr.mxu0 0.0
    %2370 = vmatpush1.xpose.msra.mxu0 0.0
    %2371 = vmatprep.subr.mxu0 0.0
    %2372 = vmatpush1.xpose.msra.mxu0 0.0
    %2373 = vmatprep.subr.mxu0 0.0
    %2374 = vmatpush1.xpose.msra.mxu0 0.0
    %2375 = vmatprep.subr.mxu0 0.0
    %2376 = vmatpush1.xpose.msra.mxu0 0.0
    %2377 = vmatprep.subr.mxu0 0.0
    %2378 = vmatpush1.xpose.msra.mxu0 %v1706
    %2379 = vmatprep.subr.mxu0 0.0
    %2380 = vmatpush1.xpose.msra.mxu0 %v1700
    %2381 = vmatprep.subr.mxu0 0.0
    %2382 = vmatpush2.xpose.msra.mxu0 0.0
    %2383 = vmatprep.subr.mxu0 0.0
    %2384 = vmatpush2.xpose.msra.mxu0 0.0
    %2385 = vmatprep.subr.mxu0 0.0
    %2386 = vmatpush2.xpose.msra.mxu0 0.0
    %2387 = vmatprep.subr.mxu0 0.0
    %2388 = vmatpush2.xpose.msra.mxu0 0.0
    %2389 = vmatprep.subr.mxu0 0.0
    %2390 = vmatpush2.xpose.msra.mxu0 0.0
    %2391 = vmatprep.subr.mxu0 0.0
    %2392 = vmatpush2.xpose.msra.mxu0 0.0
    %2393 = vmatprep.subr.mxu0 0.0
    %2394 = vmatpush2.xpose.msra.mxu0 0.0
    %2395 = vmatprep.subr.mxu0 0.0
    %2396 = vmatpush2.xpose.msra.mxu0 0.0
    %2397 = vmatprep.subr.mxu0 0.0
    %2398 = vmatpush2.xpose.msra.mxu0 0.0
    %2399 = vmatprep.subr.mxu0 0.0
    %2400 = vmatpush2.xpose.msra.mxu0 0.0
    %2401 = vmatprep.subr.mxu0 0.0
    %2402 = vmatpush2.xpose.msra.mxu0 0.0
    %2403 = vmatprep.subr.mxu0 0.0
    %2404 = vmatpush2.xpose.msra.mxu0 0.0
    %2405 = vmatprep.subr.mxu0 0.0
    %2406 = vmatpush2.xpose.msra.mxu0 0.0
    %2407 = vmatprep.subr.mxu0 0.0
    %2408 = vmatpush2.xpose.msra.mxu0 0.0
    %2409 = vmatprep.subr.mxu0 0.0
    %2410 = vmatpush2.xpose.msra.mxu0 0.0
    %2411 = vmatprep.subr.mxu0 0.0
    %2412 = vmatpush2.xpose.msra.mxu0 0.0
    %2413 = vmatprep.mubr.f32.mxu0 0.0
    %2414 = vmatmul.mubr.f32.gmra.mxu0 %v2347
    %v2415 = vpop.f32.mrf.mxu0
    %v2416 = vadd.f32 0.0, %v2415
    %v2417 = vpop.f32.mrf.mxu0
    %2418 = vmatprep.mubr.f32.mxu0 0.0
    %2419 = vmatmul.mubr.f32.gmra.mxu0 %v2348
    %v2420 = vpop.f32.mrf.mxu0
    %v2421 = vadd.f32 0.0, %v2420
    %v2422 = vpop.f32.mrf.mxu0
    %2423 = vdwg.mxu0
    %v2424 = vmul.f32 %v2416, 0.35355338
    %v2425 = vmul.f32 %v2421, 0.35355338
    %v2426 = vadd.f32 %v2424, %v146
    %v2427 = vadd.f32 %v2425, %v147
    %v2428 = vsel %vm492, %v2426, -inf
    %2429 = vmax.xlane.f32.xlu0 %v2428
    %v2430 = vpop.xlane.xlu0 %2429
    %v2431 = vsel %vm492, %v2427, -inf
    %2432 = vmax.xlane.f32.xlu0 %v2431
    %v2433 = vpop.xlane.xlu0 %2432
    %v2434 = vsub.f32 %v2426, %v2430
    %v2435 = vsub.f32 %v2427, %v2433
    %v2436 = vmul.f32 %v2434, 1.442695
    %v2437 = vpow.pop %v2436
    %v2438 = vmul.f32 %v2435, 1.442695
    %v2439 = vpow.pop %v2438
    %v2440 = vsel %vm492, %v2437, 0.0
    %2441 = vadd.xlane.f32.xlu0 %v2440
    %v2442 = vpop.xlane.xlu0 %2441
    %v2443 = vsel %vm492, %v2439, 0.0
    %2444 = vadd.xlane.f32.xlu0 %v2443
    %v2445 = vpop.xlane.xlu0 %2444
    %v2446 = vrcp.pop %v2442
    %v2447 = vmul.f32 %v2437, %v2446
    %v2448 = vrcp.pop %v2445
    %v2449 = vmul.f32 %v2439, %v2448
    %v2451 = vsel %vm492, %v2447, 0
    %v2454 = vsel %vm492, %v2449, 0
    %2456 = vmatprep.subr.mxu0 0.0
    %2457 = vmatpush1.msra.mxu0 0.0
    %2458 = vmatprep.subr.mxu0 0.0
    %2459 = vmatpush1.msra.mxu0 0.0
    %2460 = vmatprep.subr.mxu0 0.0
    %2461 = vmatpush1.msra.mxu0 0.0
    %2462 = vmatprep.subr.mxu0 0.0
    %2463 = vmatpush1.msra.mxu0 0.0
    %2464 = vmatprep.subr.mxu0 0.0
    %2465 = vmatpush1.msra.mxu0 0.0
    %2466 = vmatprep.subr.mxu0 0.0
    %2467 = vmatpush1.msra.mxu0 0.0
    %2468 = vmatprep.subr.mxu0 0.0
    %2469 = vmatpush1.msra.mxu0 0.0
    %2470 = vmatprep.subr.mxu0 0.0
    %2471 = vmatpush1.msra.mxu0 0.0
    %2472 = vmatprep.subr.mxu0 0.0
    %2473 = vmatpush1.msra.mxu0 0.0
    %2474 = vmatprep.subr.mxu0 0.0
    %2475 = vmatpush1.msra.mxu0 0.0
    %2476 = vmatprep.subr.mxu0 0.0
    %2477 = vmatpush1.msra.mxu0 0.0
    %2478 = vmatprep.subr.mxu0 0.0
    %2479 = vmatpush1.msra.mxu0 0.0
    %2480 = vmatprep.subr.mxu0 0.0
    %2481 = vmatpush1.msra.mxu0 0.0
    %2482 = vmatprep.subr.mxu0 0.0
    %2483 = vmatpush1.msra.mxu0 0.0
    %2484 = vmatprep.subr.mxu0 0.0
    %2485 = vmatpush1.msra.mxu0 %v1780
    %2486 = vmatprep.subr.mxu0 0.0
    %2487 = vmatpush1.msra.mxu0 %v1775
    %2488 = vmatprep.subr.mxu0 0.0
    %2489 = vmatpush2.msra.mxu0 0.0
    %2490 = vmatprep.subr.mxu0 0.0
    %2491 = vmatpush2.msra.mxu0 0.0
    %2492 = vmatprep.subr.mxu0 0.0
    %2493 = vmatpush2.msra.mxu0 0.0
    %2494 = vmatprep.subr.mxu0 0.0
    %2495 = vmatpush2.msra.mxu0 0.0
    %2496 = vmatprep.subr.mxu0 0.0
    %2497 = vmatpush2.msra.mxu0 0.0
    %2498 = vmatprep.subr.mxu0 0.0
    %2499 = vmatpush2.msra.mxu0 0.0
    %2500 = vmatprep.subr.mxu0 0.0
    %2501 = vmatpush2.msra.mxu0 0.0
    %2502 = vmatprep.subr.mxu0 0.0
    %2503 = vmatpush2.msra.mxu0 0.0
    %2504 = vmatprep.subr.mxu0 0.0
    %2505 = vmatpush2.msra.mxu0 0.0
    %2506 = vmatprep.subr.mxu0 0.0
    %2507 = vmatpush2.msra.mxu0 0.0
    %2508 = vmatprep.subr.mxu0 0.0
    %2509 = vmatpush2.msra.mxu0 0.0
    %2510 = vmatprep.subr.mxu0 0.0
    %2511 = vmatpush2.msra.mxu0 0.0
    %2512 = vmatprep.subr.mxu0 0.0
    %2513 = vmatpush2.msra.mxu0 0.0
    %2514 = vmatprep.subr.mxu0 0.0
    %2515 = vmatpush2.msra.mxu0 0.0
    %2516 = vmatprep.subr.mxu0 0.0
    %2517 = vmatpush2.msra.mxu0 0.0
    %2518 = vmatprep.subr.mxu0 0.0
    %2519 = vmatpush2.msra.mxu0 0.0
    %2520 = vmatprep.mubr.f32.mxu0 0.0
    %2521 = vmatmul.mubr.f32.gmra.mxu0 %v2451
    %v2522 = vpop.f32.mrf.mxu0
    %v2523 = vadd.f32 0.0, %v2522
    %v2524 = vpop.f32.mrf.mxu0
    %2525 = vmatprep.mubr.f32.mxu0 0.0
    %2526 = vmatmul.mubr.f32.gmra.mxu0 %v2454
    %v2527 = vpop.f32.mrf.mxu0
    %v2528 = vadd.f32 0.0, %v2527
    %v2529 = vpop.f32.mrf.mxu0
    %2530 = vdwg.mxu0
    %v2531 = vmul.f32 %v2523, %v145
    %v2532 = vmul.f32 %v2528, %v145
    %v2533 = vadd.f32 %v2345, %v2531
    %v2534 = vadd.f32 %v2346, %v2532
    %s2535 = scalar_lea.vmem %s6, 128
    %v2536 = vld [vmem:[%s2535] sm:$0xff]
    %v2537 = vld [vmem:[%s2535 + $0x8] sm:$0xff]
    %v2538 = vld [vmem:[%s2535 + $0x10] sm:$0xff]
    %v2539 = vld [vmem:[%s2535 + $0x18] sm:$0xff]
    %v2540 = vld [vmem:[%s2535 + $0x20] sm:$0xff]
    %v2541 = vld [vmem:[%s2535 + $0x28] sm:$0xff]
    %v2542 = vld [vmem:[%s2535 + $0x30] sm:$0xff]
    %v2543 = vld [vmem:[%s2535 + $0x38] sm:$0xff]
    %v2544 = vld [vmem:[%s2535 + $0x40] sm:$0xff]
    %v2545 = vld [vmem:[%s2535 + $0x48] sm:$0xff]
    %v2546 = vld [vmem:[%s2535 + $0x50] sm:$0xff]
    %v2547 = vld [vmem:[%s2535 + $0x58] sm:$0xff]
    %v2548 = vld [vmem:[%s2535 + $0x60] sm:$0xff]
    %v2549 = vld [vmem:[%s2535 + $0x68] sm:$0xff]
    %v2550 = vld [vmem:[%s2535 + $0x70] sm:$0xff]
    %v2551 = vld [vmem:[%s2535 + $0x78] sm:$0xff]
    %s2552 = scalar_lea.vmem %s7, 1
    %v2553 = vld [vmem:[%s2552] sm:$0x1]
    %v2555 = vlaneseq
    %v2556 = vshrl.u32 %v2555, 7
    %v2557 = vsub.s32 0, %v2556
    %v2558 = vrot.slane %v2553, %v2557
    %2560 = vmatprep.subr.mxu0 0.0
    %2561 = vmatpush1.msra.mxu0 %v2551
    %2562 = vmatprep.subr.mxu0 0.0
    %2563 = vmatpush1.msra.mxu0 %v2550
    %2564 = vmatprep.subr.mxu0 0.0
    %2565 = vmatpush1.msra.mxu0 %v2549
    %2566 = vmatprep.subr.mxu0 0.0
    %2567 = vmatpush1.msra.mxu0 %v2548
    %2568 = vmatprep.subr.mxu0 0.0
    %2569 = vmatpush1.msra.mxu0 %v2547
    %2570 = vmatprep.subr.mxu0 0.0
    %2571 = vmatpush1.msra.mxu0 %v2546
    %2572 = vmatprep.subr.mxu0 0.0
    %2573 = vmatpush1.msra.mxu0 %v2545
    %2574 = vmatprep.subr.mxu0 0.0
    %2575 = vmatpush1.msra.mxu0 %v2544
    %2576 = vmatprep.subr.mxu0 0.0
    %2577 = vmatpush1.msra.mxu0 %v2543
    %2578 = vmatprep.subr.mxu0 0.0
    %2579 = vmatpush1.msra.mxu0 %v2542
    %2580 = vmatprep.subr.mxu0 0.0
    %2581 = vmatpush1.msra.mxu0 %v2541
    %2582 = vmatprep.subr.mxu0 0.0
    %2583 = vmatpush1.msra.mxu0 %v2540
    %2584 = vmatprep.subr.mxu0 0.0
    %2585 = vmatpush1.msra.mxu0 %v2539
    %2586 = vmatprep.subr.mxu0 0.0
    %2587 = vmatpush1.msra.mxu0 %v2538
    %2588 = vmatprep.subr.mxu0 0.0
    %2589 = vmatpush1.msra.mxu0 %v2537
    %2590 = vmatprep.subr.mxu0 0.0
    %2591 = vmatpush1.msra.mxu0 %v2536
    %2592 = vmatprep.subr.mxu0 0.0
    %2593 = vmatpush2.msra.mxu0 0.0
    %2594 = vmatprep.subr.mxu0 0.0
    %2595 = vmatpush2.msra.mxu0 0.0
    %2596 = vmatprep.subr.mxu0 0.0
    %2597 = vmatpush2.msra.mxu0 0.0
    %2598 = vmatprep.subr.mxu0 0.0
    %2599 = vmatpush2.msra.mxu0 0.0
    %2600 = vmatprep.subr.mxu0 0.0
    %2601 = vmatpush2.msra.mxu0 0.0
    %2602 = vmatprep.subr.mxu0 0.0
    %2603 = vmatpush2.msra.mxu0 0.0
    %2604 = vmatprep.subr.mxu0 0.0
    %2605 = vmatpush2.msra.mxu0 0.0
    %2606 = vmatprep.subr.mxu0 0.0
    %2607 = vmatpush2.msra.mxu0 0.0
    %2608 = vmatprep.subr.mxu0 0.0
    %2609 = vmatpush2.msra.mxu0 0.0
    %2610 = vmatprep.subr.mxu0 0.0
    %2611 = vmatpush2.msra.mxu0 0.0
    %2612 = vmatprep.subr.mxu0 0.0
    %2613 = vmatpush2.msra.mxu0 0.0
    %2614 = vmatprep.subr.mxu0 0.0
    %2615 = vmatpush2.msra.mxu0 0.0
    %2616 = vmatprep.subr.mxu0 0.0
    %2617 = vmatpush2.msra.mxu0 0.0
    %2618 = vmatprep.subr.mxu0 0.0
    %2619 = vmatpush2.msra.mxu0 0.0
    %2620 = vmatprep.subr.mxu0 0.0
    %2621 = vmatpush2.msra.mxu0 0.0
    %2622 = vmatprep.subr.mxu0 0.0
    %2623 = vmatpush2.msra.mxu0 0.0
    %2624 = vmatprep.mubr.f32.mxu0 0.0
    %2625 = vmatmul.mubr.f32.gmra.mxu0 %v2533
    %v2626 = vpop.f32.mrf.mxu0
    %v2627 = vadd.f32 %v2558, %v2626
    %v2628 = vpop.f32.mrf.mxu0
    %2629 = vmatprep.mubr.f32.mxu0 0.0
    %2630 = vmatmul.mubr.f32.gmra.mxu0 %v2534
    %v2631 = vpop.f32.mrf.mxu0
    %v2632 = vadd.f32 %v2558, %v2631
    %v2633 = vpop.f32.mrf.mxu0
    %2634 = vdwg.mxu0
    %v2635 = vadd.f32 %v2627, %v1562
    %v2636 = vadd.f32 %v2632, %v1563
    %s2637 = scalar_lea.vmem %s8, 1
    %v2638 = vld [vmem:[%s2637] sm:$0x1]
    %s2639 = scalar_lea.vmem %s9, 1
    %v2640 = vld [vmem:[%s2639] sm:$0x1]
    %2641 = vadd.xlane.f32.xlu0 %v2635
    %v2642 = vpop.xlane.xlu0 %2641
    %2643 = vadd.xlane.f32.xlu0 %v2636
    %v2644 = vpop.xlane.xlu0 %2643
    %v2645 = vmul.f32 %v2642, 0.03125
    %v2646 = vmul.f32 %v2644, 0.03125
    %v2647 = vsub.f32 %v2635, %v2645
    %v2648 = vsub.f32 %v2636, %v2646
    %v2649 = vsel %vm161, %v2647, 0.0
    %v2650 = vsel %vm161, %v2648, 0.0
    %v2651 = vmul.f32 %v2649, %v2649
    %v2652 = vmul.f32 %v2650, %v2650
    %2653 = vadd.xlane.f32.xlu0 %v2651
    %v2654 = vpop.xlane.xlu0 %2653
    %2655 = vadd.xlane.f32.xlu0 %v2652
    %v2656 = vpop.xlane.xlu0 %2655
    %v2657 = vmul.f32 %v2654, 0.03125
    %v2658 = vmul.f32 %v2656, 0.03125
    %v2659 = vadd.f32 %v2657, 1e-12
    %v2660 = vadd.f32 %v2658, 1e-12
    %v2661 = vrsqrt.pop %v2659
    %v2662 = vrsqrt.pop %v2660
    %v2663 = vmul.f32 %v2649, %v2661
    %v2664 = vmul.f32 %v2650, %v2662
    %v2666 = vlaneseq
    %v2667 = vshrl.u32 %v2666, 7
    %v2668 = vsub.s32 0, %v2667
    %v2669 = vrot.slane %v2638, %v2668
    %v2671 = vmul.f32 %v2663, %v2669
    %v2672 = vmul.f32 %v2664, %v2669
    %v2674 = vlaneseq
    %v2675 = vshrl.u32 %v2674, 7
    %v2676 = vsub.s32 0, %v2675
    %v2677 = vrot.slane %v2640, %v2676
    %v2679 = vadd.f32 %v2671, %v2677
    %v2680 = vadd.f32 %v2672, %v2677
    %s2681 = scalar_lea.vmem [#allocation5], 128
    %v2682 = vld [vmem:[%s2681] sm:$0xff]
    %v2683 = vld [vmem:[%s2681 + $0x8] sm:$0xff]
    %v2684 = vld [vmem:[%s2681 + $0x10] sm:$0xff]
    %v2685 = vld [vmem:[%s2681 + $0x18] sm:$0xff]
    %v2686 = vld [vmem:[%s2681 + $0x20] sm:$0xff]
    %v2687 = vld [vmem:[%s2681 + $0x28] sm:$0xff]
    %v2688 = vld [vmem:[%s2681 + $0x30] sm:$0xff]
    %v2689 = vld [vmem:[%s2681 + $0x38] sm:$0xff]
    %v2690 = vld [vmem:[%s2681 + $0x40] sm:$0xff]
    %v2691 = vld [vmem:[%s2681 + $0x48] sm:$0xff]
    %v2692 = vld [vmem:[%s2681 + $0x50] sm:$0xff]
    %v2693 = vld [vmem:[%s2681 + $0x58] sm:$0xff]
    %v2694 = vld [vmem:[%s2681 + $0x60] sm:$0xff]
    %v2695 = vld [vmem:[%s2681 + $0x68] sm:$0xff]
    %v2696 = vld [vmem:[%s2681 + $0x70] sm:$0xff]
    %v2697 = vld [vmem:[%s2681 + $0x78] sm:$0xff]
    %s2698 = scalar_lea.vmem %s11, 1
    %v2699 = vld [vmem:[%s2698] sm:$0x1]
    %v2701 = vlaneseq
    %v2702 = vshrl.u32 %v2701, 7
    %v2703 = vsub.s32 0, %v2702
    %v2704 = vrot.slane %v2699, %v2703
    %2706 = vmatprep.subr.mxu0 0.0
    %2707 = vmatpush1.msra.mxu0 %v2697
    %2708 = vmatprep.subr.mxu0 0.0
    %2709 = vmatpush1.msra.mxu0 %v2696
    %2710 = vmatprep.subr.mxu0 0.0
    %2711 = vmatpush1.msra.mxu0 %v2695
    %2712 = vmatprep.subr.mxu0 0.0
    %2713 = vmatpush1.msra.mxu0 %v2694
    %2714 = vmatprep.subr.mxu0 0.0
    %2715 = vmatpush1.msra.mxu0 %v2693
    %2716 = vmatprep.subr.mxu0 0.0
    %2717 = vmatpush1.msra.mxu0 %v2692
    %2718 = vmatprep.subr.mxu0 0.0
    %2719 = vmatpush1.msra.mxu0 %v2691
    %2720 = vmatprep.subr.mxu0 0.0
    %2721 = vmatpush1.msra.mxu0 %v2690
    %2722 = vmatprep.subr.mxu0 0.0
    %2723 = vmatpush1.msra.mxu0 %v2689
    %2724 = vmatprep.subr.mxu0 0.0
    %2725 = vmatpush1.msra.mxu0 %v2688
    %2726 = vmatprep.subr.mxu0 0.0
    %2727 = vmatpush1.msra.mxu0 %v2687
    %2728 = vmatprep.subr.mxu0 0.0
    %2729 = vmatpush1.msra.mxu0 %v2686
    %2730 = vmatprep.subr.mxu0 0.0
    %2731 = vmatpush1.msra.mxu0 %v2685
    %2732 = vmatprep.subr.mxu0 0.0
    %2733 = vmatpush1.msra.mxu0 %v2684
    %2734 = vmatprep.subr.mxu0 0.0
    %2735 = vmatpush1.msra.mxu0 %v2683
    %2736 = vmatprep.subr.mxu0 0.0
    %2737 = vmatpush1.msra.mxu0 %v2682
    %2738 = vmatprep.subr.mxu0 0.0
    %2739 = vmatpush2.msra.mxu0 0.0
    %2740 = vmatprep.subr.mxu0 0.0
    %2741 = vmatpush2.msra.mxu0 0.0
    %2742 = vmatprep.subr.mxu0 0.0
    %2743 = vmatpush2.msra.mxu0 0.0
    %2744 = vmatprep.subr.mxu0 0.0
    %2745 = vmatpush2.msra.mxu0 0.0
    %2746 = vmatprep.subr.mxu0 0.0
    %2747 = vmatpush2.msra.mxu0 0.0
    %2748 = vmatprep.subr.mxu0 0.0
    %2749 = vmatpush2.msra.mxu0 0.0
    %2750 = vmatprep.subr.mxu0 0.0
    %2751 = vmatpush2.msra.mxu0 0.0
    %2752 = vmatprep.subr.mxu0 0.0
    %2753 = vmatpush2.msra.mxu0 0.0
    %2754 = vmatprep.subr.mxu0 0.0
    %2755 = vmatpush2.msra.mxu0 0.0
    %2756 = vmatprep.subr.mxu0 0.0
    %2757 = vmatpush2.msra.mxu0 0.0
    %2758 = vmatprep.subr.mxu0 0.0
    %2759 = vmatpush2.msra.mxu0 0.0
    %2760 = vmatprep.subr.mxu0 0.0
    %2761 = vmatpush2.msra.mxu0 0.0
    %2762 = vmatprep.subr.mxu0 0.0
    %2763 = vmatpush2.msra.mxu0 0.0
    %2764 = vmatprep.subr.mxu0 0.0
    %2765 = vmatpush2.msra.mxu0 0.0
    %2766 = vmatprep.subr.mxu0 0.0
    %2767 = vmatpush2.msra.mxu0 0.0
    %2768 = vmatprep.subr.mxu0 0.0
    %2769 = vmatpush2.msra.mxu0 0.0
    %2770 = vmatprep.mubr.f32.mxu0 0.0
    %2771 = vmatmul.mubr.f32.gmra.mxu0 %v2679
    %v2772 = vpop.f32.mrf.mxu0
    %v2773 = vadd.f32 %v2704, %v2772
    %v2774 = vpop.f32.mrf.mxu0
    %2775 = vmatprep.mubr.f32.mxu0 0.0
    %2776 = vmatmul.mubr.f32.gmra.mxu0 %v2680
    %v2777 = vpop.f32.mrf.mxu0
    %v2778 = vadd.f32 %v2704, %v2777
    %v2779 = vpop.f32.mrf.mxu0
    %2780 = vdwg.mxu0
    %v2781 = vmul.f32 %v2773, 0.5
    %v2782 = vmul.f32 %v2778, 0.5
    %v2783 = vmul.f32 %v2773, 0.044715
    %v2784 = vmul.f32 %v2778, 0.044715
    %v2785 = vmul.f32 %v2783, %v2773
    %v2786 = vmul.f32 %v2784, %v2778
    %v2787 = vmul.f32 %v2785, %v2773
    %v2788 = vmul.f32 %v2786, %v2778
    %v2789 = vadd.f32 %v2773, %v2787
    %v2790 = vadd.f32 %v2778, %v2788
    %v2791 = vmul.f32 %v2789, 0.7978846
    %v2792 = vmul.f32 %v2790, 0.7978846
    %v2793 = vtanh.pop %v2791
    %v2794 = vtanh.pop %v2792
    %v2795 = vadd.f32 %v2793, 1.0
    %v2796 = vadd.f32 %v2794, 1.0
    %v2797 = vmul.f32 %v2781, %v2795
    %v2798 = vmul.f32 %v2782, %v2796
    %s2799 = scalar_lea.vmem [#allocation7], 128
    %v2800 = vld [vmem:[%s2799] sm:$0xff]
    %v2801 = vld [vmem:[%s2799 + $0x8] sm:$0xff]
    %v2802 = vld [vmem:[%s2799 + $0x10] sm:$0xff]
    %v2803 = vld [vmem:[%s2799 + $0x18] sm:$0xff]
    %v2804 = vld [vmem:[%s2799 + $0x20] sm:$0xff]
    %v2805 = vld [vmem:[%s2799 + $0x28] sm:$0xff]
    %v2806 = vld [vmem:[%s2799 + $0x30] sm:$0xff]
    %v2807 = vld [vmem:[%s2799 + $0x38] sm:$0xff]
    %v2808 = vld [vmem:[%s2799 + $0x40] sm:$0xff]
    %v2809 = vld [vmem:[%s2799 + $0x48] sm:$0xff]
    %v2810 = vld [vmem:[%s2799 + $0x50] sm:$0xff]
    %v2811 = vld [vmem:[%s2799 + $0x58] sm:$0xff]
    %v2812 = vld [vmem:[%s2799 + $0x60] sm:$0xff]
    %v2813 = vld [vmem:[%s2799 + $0x68] sm:$0xff]
    %v2814 = vld [vmem:[%s2799 + $0x70] sm:$0xff]
    %v2815 = vld [vmem:[%s2799 + $0x78] sm:$0xff]
    %s2816 = scalar_lea.vmem %s13, 1
    %v2817 = vld [vmem:[%s2816] sm:$0x1]
    %v2819 = vlaneseq
    %v2820 = vshrl.u32 %v2819, 7
    %v2821 = vsub.s32 0, %v2820
    %v2822 = vrot.slane %v2817, %v2821
    %2824 = vmatprep.subr.mxu0 0.0
    %2825 = vmatpush1.msra.mxu0 %v2815
    %2826 = vmatprep.subr.mxu0 0.0
    %2827 = vmatpush1.msra.mxu0 %v2814
    %2828 = vmatprep.subr.mxu0 0.0
    %2829 = vmatpush1.msra.mxu0 %v2813
    %2830 = vmatprep.subr.mxu0 0.0
    %2831 = vmatpush1.msra.mxu0 %v2812
    %2832 = vmatprep.subr.mxu0 0.0
    %2833 = vmatpush1.msra.mxu0 %v2811
    %2834 = vmatprep.subr.mxu0 0.0
    %2835 = vmatpush1.msra.mxu0 %v2810
    %2836 = vmatprep.subr.mxu0 0.0
    %2837 = vmatpush1.msra.mxu0 %v2809
    %2838 = vmatprep.subr.mxu0 0.0
    %2839 = vmatpush1.msra.mxu0 %v2808
    %2840 = vmatprep.subr.mxu0 0.0
    %2841 = vmatpush1.msra.mxu0 %v2807
    %2842 = vmatprep.subr.mxu0 0.0
    %2843 = vmatpush1.msra.mxu0 %v2806
    %2844 = vmatprep.subr.mxu0 0.0
    %2845 = vmatpush1.msra.mxu0 %v2805
    %2846 = vmatprep.subr.mxu0 0.0
    %2847 = vmatpush1.msra.mxu0 %v2804
    %2848 = vmatprep.subr.mxu0 0.0
    %2849 = vmatpush1.msra.mxu0 %v2803
    %2850 = vmatprep.subr.mxu0 0.0
    %2851 = vmatpush1.msra.mxu0 %v2802
    %2852 = vmatprep.subr.mxu0 0.0
    %2853 = vmatpush1.msra.mxu0 %v2801
    %2854 = vmatprep.subr.mxu0 0.0
    %2855 = vmatpush1.msra.mxu0 %v2800
    %2856 = vmatprep.subr.mxu0 0.0
    %2857 = vmatpush2.msra.mxu0 0.0
    %2858 = vmatprep.subr.mxu0 0.0
    %2859 = vmatpush2.msra.mxu0 0.0
    %2860 = vmatprep.subr.mxu0 0.0
    %2861 = vmatpush2.msra.mxu0 0.0
    %2862 = vmatprep.subr.mxu0 0.0
    %2863 = vmatpush2.msra.mxu0 0.0
    %2864 = vmatprep.subr.mxu0 0.0
    %2865 = vmatpush2.msra.mxu0 0.0
    %2866 = vmatprep.subr.mxu0 0.0
    %2867 = vmatpush2.msra.mxu0 0.0
    %2868 = vmatprep.subr.mxu0 0.0
    %2869 = vmatpush2.msra.mxu0 0.0
    %2870 = vmatprep.subr.mxu0 0.0
    %2871 = vmatpush2.msra.mxu0 0.0
    %2872 = vmatprep.subr.mxu0 0.0
    %2873 = vmatpush2.msra.mxu0 0.0
    %2874 = vmatprep.subr.mxu0 0.0
    %2875 = vmatpush2.msra.mxu0 0.0
    %2876 = vmatprep.subr.mxu0 0.0
    %2877 = vmatpush2.msra.mxu0 0.0
    %2878 = vmatprep.subr.mxu0 0.0
    %2879 = vmatpush2.msra.mxu0 0.0
    %2880 = vmatprep.subr.mxu0 0.0
    %2881 = vmatpush2.msra.mxu0 0.0
    %2882 = vmatprep.subr.mxu0 0.0
    %2883 = vmatpush2.msra.mxu0 0.0
    %2884 = vmatprep.subr.mxu0 0.0
    %2885 = vmatpush2.msra.mxu0 0.0
    %2886 = vmatprep.subr.mxu0 0.0
    %2887 = vmatpush2.msra.mxu0 0.0
    %2888 = vmatprep.mubr.f32.mxu0 0.0
    %2889 = vmatmul.mubr.f32.gmra.mxu0 %v2797
    %v2890 = vpop.f32.mrf.mxu0
    %v2891 = vadd.f32 %v2822, %v2890
    %v2892 = vpop.f32.mrf.mxu0
    %2893 = vmatprep.mubr.f32.mxu0 0.0
    %2894 = vmatmul.mubr.f32.gmra.mxu0 %v2798
    %v2895 = vpop.f32.mrf.mxu0
    %v2896 = vadd.f32 %v2822, %v2895
    %v2897 = vpop.f32.mrf.mxu0
    %2898 = vdwg.mxu0
    %v2899 = vadd.f32 %v2891, %v2679
    %v2900 = vadd.f32 %v2896, %v2680
    %s2901 = scalar_lea.vmem %s14, 1
    %v2902 = vld [vmem:[%s2901] sm:$0x1]
    %s2903 = scalar_lea.vmem %s15, 1
    %v2904 = vld [vmem:[%s2903] sm:$0x1]
    %2905 = vadd.xlane.f32.xlu0 %v2899
    %v2906 = vpop.xlane.xlu0 %2905
    %2907 = vadd.xlane.f32.xlu0 %v2900
    %v2908 = vpop.xlane.xlu0 %2907
    %v2909 = vmul.f32 %v2906, 0.03125
    %v2910 = vmul.f32 %v2908, 0.03125
    %v2911 = vsub.f32 %v2899, %v2909
    %v2912 = vsub.f32 %v2900, %v2910
    %v2913 = vsel %vm161, %v2911, 0.0
    %v2914 = vsel %vm161, %v2912, 0.0
    %v2915 = vmul.f32 %v2913, %v2913
    %v2916 = vmul.f32 %v2914, %v2914
    %2917 = vadd.xlane.f32.xlu0 %v2915
    %v2918 = vpop.xlane.xlu0 %2917
    %2919 = vadd.xlane.f32.xlu0 %v2916
    %v2920 = vpop.xlane.xlu0 %2919
    %v2921 = vmul.f32 %v2918, 0.03125
    %v2922 = vmul.f32 %v2920, 0.03125
    %v2923 = vadd.f32 %v2921, 1e-12
    %v2924 = vadd.f32 %v2922, 1e-12
    %v2925 = vrsqrt.pop %v2923
    %v2926 = vrsqrt.pop %v2924
    %v2927 = vmul.f32 %v2913, %v2925
    %v2928 = vmul.f32 %v2914, %v2926
    %v2930 = vlaneseq
    %v2931 = vshrl.u32 %v2930, 7
    %v2932 = vsub.s32 0, %v2931
    %v2933 = vrot.slane %v2902, %v2932
    %v2935 = vmul.f32 %v2927, %v2933
    %v2936 = vmul.f32 %v2928, %v2933
    %v2938 = vlaneseq
    %v2939 = vshrl.u32 %v2938, 7
    %v2940 = vsub.s32 0, %v2939
    %v2941 = vrot.slane %v2904, %v2940
    %v2943 = vadd.f32 %v2935, %v2941
    %v2944 = vadd.f32 %v2936, %v2941
    %v2946 = vrot.slane %v2944, 7
    %vm2948 = vcmask 1040384
    %v2949 = vsel %vm2948, %v2943, %v2946
    %v2950 = vld [vmem:[%s16] sm:$0xff]
    %v2951 = vld [vmem:[%s16 + $0x8] sm:$0xff]
    %v2952 = vld [vmem:[%s16 + $0x10] sm:$0xff]
    %v2953 = vld [vmem:[%s16 + $0x18] sm:$0xff]
    %v2954 = vld [vmem:[%s16 + $0x20] sm:$0xff]
    %v2955 = vld [vmem:[%s16 + $0x28] sm:$0xff]
    %v2956 = vld [vmem:[%s16 + $0x30] sm:$0xff]
    %v2957 = vld [vmem:[%s16 + $0x38] sm:$0xff]
    %v2958 = vld [vmem:[%s16 + $0x40] sm:$0xff]
    %v2959 = vld [vmem:[%s16 + $0x48] sm:$0xff]
    %v2960 = vld [vmem:[%s16 + $0x50] sm:$0xff]
    %v2961 = vld [vmem:[%s16 + $0x58] sm:$0xff]
    %v2962 = vld [vmem:[%s16 + $0x60] sm:$0xff]
    %v2963 = vld [vmem:[%s16 + $0x68] sm:$0xff]
    %v2964 = vld [vmem:[%s16 + $0x70] sm:$0xff]
    %v2965 = vld [vmem:[%s16 + $0x78] sm:$0xff]
    %v2966 = vld [vmem:[%s17] sm:$0x1]
    %v2968 = vlaneseq
    %v2969 = vshrl.u32 %v2968, 7
    %v2970 = vsub.s32 0, %v2969
    %v2971 = vrot.slane %v2966, %v2970
    %2973 = vmatprep.subr.mxu0 0.0
    %2974 = vmatpush1.msra.mxu0 %v2965
    %2975 = vmatprep.subr.mxu0 0.0
    %2976 = vmatpush1.msra.mxu0 %v2964
    %2977 = vmatprep.subr.mxu0 0.0
    %2978 = vmatpush1.msra.mxu0 %v2963
    %2979 = vmatprep.subr.mxu0 0.0
    %2980 = vmatpush1.msra.mxu0 %v2962
    %2981 = vmatprep.subr.mxu0 0.0
    %2982 = vmatpush1.msra.mxu0 %v2961
    %2983 = vmatprep.subr.mxu0 0.0
    %2984 = vmatpush1.msra.mxu0 %v2960
    %2985 = vmatprep.subr.mxu0 0.0
    %2986 = vmatpush1.msra.mxu0 %v2959
    %2987 = vmatprep.subr.mxu0 0.0
    %2988 = vmatpush1.msra.mxu0 %v2958
    %2989 = vmatprep.subr.mxu0 0.0
    %2990 = vmatpush1.msra.mxu0 %v2957
    %2991 = vmatprep.subr.mxu0 0.0
    %2992 = vmatpush1.msra.mxu0 %v2956
    %2993 = vmatprep.subr.mxu0 0.0
    %2994 = vmatpush1.msra.mxu0 %v2955
    %2995 = vmatprep.subr.mxu0 0.0
    %2996 = vmatpush1.msra.mxu0 %v2954
    %2997 = vmatprep.subr.mxu0 0.0
    %2998 = vmatpush1.msra.mxu0 %v2953
    %2999 = vmatprep.subr.mxu0 0.0
    %3000 = vmatpush1.msra.mxu0 %v2952
    %3001 = vmatprep.subr.mxu0 0.0
    %3002 = vmatpush1.msra.mxu0 %v2951
    %3003 = vmatprep.subr.mxu0 0.0
    %3004 = vmatpush1.msra.mxu0 %v2950
    %3005 = vmatprep.subr.mxu0 0.0
    %3006 = vmatpush2.msra.mxu0 0.0
    %3007 = vmatprep.subr.mxu0 0.0
    %3008 = vmatpush2.msra.mxu0 0.0
    %3009 = vmatprep.subr.mxu0 0.0
    %3010 = vmatpush2.msra.mxu0 0.0
    %3011 = vmatprep.subr.mxu0 0.0
    %3012 = vmatpush2.msra.mxu0 0.0
    %3013 = vmatprep.subr.mxu0 0.0
    %3014 = vmatpush2.msra.mxu0 0.0
    %3015 = vmatprep.subr.mxu0 0.0
    %3016 = vmatpush2.msra.mxu0 0.0
    %3017 = vmatprep.subr.mxu0 0.0
    %3018 = vmatpush2.msra.mxu0 0.0
    %3019 = vmatprep.subr.mxu0 0.0
    %3020 = vmatpush2.msra.mxu0 0.0
    %3021 = vmatprep.subr.mxu0 0.0
    %3022 = vmatpush2.msra.mxu0 0.0
    %3023 = vmatprep.subr.mxu0 0.0
    %3024 = vmatpush2.msra.mxu0 0.0
    %3025 = vmatprep.subr.mxu0 0.0
    %3026 = vmatpush2.msra.mxu0 0.0
    %3027 = vmatprep.subr.mxu0 0.0
    %3028 = vmatpush2.msra.mxu0 0.0
    %3029 = vmatprep.subr.mxu0 0.0
    %3030 = vmatpush2.msra.mxu0 0.0
    %3031 = vmatprep.subr.mxu0 0.0
    %3032 = vmatpush2.msra.mxu0 0.0
    %3033 = vmatprep.subr.mxu0 0.0
    %3034 = vmatpush2.msra.mxu0 0.0
    %3035 = vmatprep.subr.mxu0 0.0
    %3036 = vmatpush2.msra.mxu0 0.0
    %3037 = vmatprep.mubr.f32.mxu0 0.0
    %3038 = vmatmul.mubr.f32.gmra.mxu0 %v2949
    %v3039 = vpop.f32.mrf.mxu0
    %v3040 = vadd.f32 %v2971, %v3039
    %v3041 = vpop.f32.mrf.mxu0
    %3042 = vdwg.mxu0
    %v3043 = vtanh.pop %v3040
    %v3044 = vld [vmem:[#allocation8] sm:$0xff]
    %v3045 = vld [vmem:[#allocation8 + $0x8] sm:$0xff]
    %v3046 = vld [vmem:[#allocation8 + $0x10] sm:$0xff]
    %v3047 = vld [vmem:[#allocation8 + $0x18] sm:$0xff]
    %v3048 = vld [vmem:[#allocation8 + $0x20] sm:$0xff]
    %v3049 = vld [vmem:[#allocation8 + $0x28] sm:$0xff]
    %v3050 = vld [vmem:[#allocation8 + $0x30] sm:$0xff]
    %v3051 = vld [vmem:[#allocation8 + $0x38] sm:$0xff]
    %v3052 = vld [vmem:[#allocation8 + $0x40] sm:$0xff]
    %v3053 = vld [vmem:[#allocation8 + $0x48] sm:$0xff]
    %v3054 = vld [vmem:[#allocation8 + $0x50] sm:$0xff]
    %v3055 = vld [vmem:[#allocation8 + $0x58] sm:$0xff]
    %v3056 = vld [vmem:[#allocation8 + $0x60] sm:$0xff]
    %v3057 = vld [vmem:[#allocation8 + $0x68] sm:$0xff]
    %v3058 = vld [vmem:[#allocation8 + $0x70] sm:$0xff]
    %v3059 = vld [vmem:[#allocation8 + $0x78] sm:$0xff]
    %v3060 = vld [vmem:[%s19] sm:$0x1]
    %v3062 = vlaneseq
    %v3063 = vshrl.u32 %v3062, 7
    %v3064 = vsub.s32 0, %v3063
    %v3065 = vrot.slane %v3060, %v3064
    %3067 = vmatprep.subr.mxu0 0.0
    %3068 = vmatpush1.msra.mxu0 %v3059
    %3069 = vmatprep.subr.mxu0 0.0
    %3070 = vmatpush1.msra.mxu0 %v3058
    %3071 = vmatprep.subr.mxu0 0.0
    %3072 = vmatpush1.msra.mxu0 %v3057
    %3073 = vmatprep.subr.mxu0 0.0
    %3074 = vmatpush1.msra.mxu0 %v3056
    %3075 = vmatprep.subr.mxu0 0.0
    %3076 = vmatpush1.msra.mxu0 %v3055
    %3077 = vmatprep.subr.mxu0 0.0
    %3078 = vmatpush1.msra.mxu0 %v3054
    %3079 = vmatprep.subr.mxu0 0.0
    %3080 = vmatpush1.msra.mxu0 %v3053
    %3081 = vmatprep.subr.mxu0 0.0
    %3082 = vmatpush1.msra.mxu0 %v3052
    %3083 = vmatprep.subr.mxu0 0.0
    %3084 = vmatpush1.msra.mxu0 %v3051
    %3085 = vmatprep.subr.mxu0 0.0
    %3086 = vmatpush1.msra.mxu0 %v3050
    %3087 = vmatprep.subr.mxu0 0.0
    %3088 = vmatpush1.msra.mxu0 %v3049
    %3089 = vmatprep.subr.mxu0 0.0
    %3090 = vmatpush1.msra.mxu0 %v3048
    %3091 = vmatprep.subr.mxu0 0.0
    %3092 = vmatpush1.msra.mxu0 %v3047
    %3093 = vmatprep.subr.mxu0 0.0
    %3094 = vmatpush1.msra.mxu0 %v3046
    %3095 = vmatprep.subr.mxu0 0.0
    %3096 = vmatpush1.msra.mxu0 %v3045
    %3097 = vmatprep.subr.mxu0 0.0
    %3098 = vmatpush1.msra.mxu0 %v3044
    %3099 = vmatprep.subr.mxu0 0.0
    %3100 = vmatpush2.msra.mxu0 0.0
    %3101 = vmatprep.subr.mxu0 0.0
    %3102 = vmatpush2.msra.mxu0 0.0
    %3103 = vmatprep.subr.mxu0 0.0
    %3104 = vmatpush2.msra.mxu0 0.0
    %3105 = vmatprep.subr.mxu0 0.0
    %3106 = vmatpush2.msra.mxu0 0.0
    %3107 = vmatprep.subr.mxu0 0.0
    %3108 = vmatpush2.msra.mxu0 0.0
    %3109 = vmatprep.subr.mxu0 0.0
    %3110 = vmatpush2.msra.mxu0 0.0
    %3111 = vmatprep.subr.mxu0 0.0
    %3112 = vmatpush2.msra.mxu0 0.0
    %3113 = vmatprep.subr.mxu0 0.0
    %3114 = vmatpush2.msra.mxu0 0.0
    %3115 = vmatprep.subr.mxu0 0.0
    %3116 = vmatpush2.msra.mxu0 0.0
    %3117 = vmatprep.subr.mxu0 0.0
    %3118 = vmatpush2.msra.mxu0 0.0
    %3119 = vmatprep.subr.mxu0 0.0
    %3120 = vmatpush2.msra.mxu0 0.0
    %3121 = vmatprep.subr.mxu0 0.0
    %3122 = vmatpush2.msra.mxu0 0.0
    %3123 = vmatprep.subr.mxu0 0.0
    %3124 = vmatpush2.msra.mxu0 0.0
    %3125 = vmatprep.subr.mxu0 0.0
    %3126 = vmatpush2.msra.mxu0 0.0
    %3127 = vmatprep.subr.mxu0 0.0
    %3128 = vmatpush2.msra.mxu0 0.0
    %3129 = vmatprep.subr.mxu0 0.0
    %3130 = vmatpush2.msra.mxu0 0.0
    %3131 = vmatprep.mubr.f32.mxu0 0.0
    %3132 = vmatmul.mubr.f32.gmra.mxu0 %v3043
    %v3133 = vpop.f32.mrf.mxu0
    %v3134 = vadd.f32 %v3065, %v3133
    %v3135 = vpop.f32.mrf.mxu0
    %3136 = vdwg.mxu0
    %vm3137 = vcmp.lt.s32.totalorder %v125, 2
    %v3138 = vsel %vm3137, 1, 0
    %vm3139 = vcmp.eq.s32.totalorder %v3138, 1
    %v3140 = vsel %vm3139, %v3134, -1e+30
    %vm3141 = vcmask 1041408
    %v3142 = vsel %vm3141, %v3140, -inf
    %3143 = vmax.xlane.f32.xlu0 %v3142
    %v3144 = vpop.xlane.xlu0 %3143
    %v3145 = vsub.f32 %v3140, %v3144
    %v3146 = vmul.f32 %v3145, 1.442695
    %v3147 = vpow.pop %v3146
    %v3148 = vsel %vm3139, %v3147, 0.0
    %v3149 = vsel %vm3141, %v3148, 0.0
    %3150 = vadd.xlane.f32.xlu0 %v3149
    %v3151 = vpop.xlane.xlu0 %3150
    %v3152 = vrcp.pop %v3151
    %v3153 = vmul.f32 %v3148, %v3152
    %3154 = vst [vmem:[#allocation10] sm:$0x3] %v3134
    %3155 = vst [vmem:[#allocation11] sm:$0x3] %v3153
    // Predicated region
    $region98: #{bert_model_predict.1} parent=1 // pred_check
      _
    $region99: #{bert_model_predict.1} parent=1 // pred_check_branch
      %3157 = sbr.rel (0) target = $region101
    $region100: #{bert_model_predict.1} parent=1 // pred_region
      %s3159 = ssub.s32 32, 32
      %3160 = vsyncadd [#allocation4], %s3159
      %s3162 = sshll.u32 [#allocation10], 4
      %s3163 = int_to_ptr.vmem [resolvable:$true] %s3162
      %3165 = dma.vmem_to_hbm [thread:$0]  %s3163, 32, %s20, [#allocation4]
    $region101: #{bert_model_predict.1} parent=1 // pred_fallthru
      _
    // Predicated region
    $region102: #{bert_model_predict.1} parent=1 // pred_check
      _
    $region103: #{bert_model_predict.1} parent=1 // pred_check_branch
      %3167 = sbr.rel (0) target = $region105
    $region104: #{bert_model_predict.1} parent=1 // pred_region
      %s3169 = ssub.s32 32, 32
      %3170 = vsyncadd [#allocation12], %s3169
      %s3172 = sshll.u32 [#allocation11], 4
      %s3173 = int_to_ptr.vmem [resolvable:$true] %s3172
      %3175 = dma.vmem_to_hbm [thread:$0]  %s3173, 32, %s21, [#allocation12]
    $region105: #{bert_model_predict.1} parent=1 // pred_fallthru
      _
    // Predicated region
    $region106: #{bert_model_predict.1} parent=1 // pred_check
      _
    $region107: #{bert_model_predict.1} parent=1 // pred_check_branch
      %3177 = sbr.rel (0) target = $region109
    $region108: #{bert_model_predict.1} parent=1 // pred_region
      %3178 = dma.done [#allocation4], 32
    $region109: #{bert_model_predict.1} parent=1 // pred_fallthru
      _
    // Predicated region
    $region110: #{bert_model_predict.1} parent=1 // pred_check
      _
    $region111: #{bert_model_predict.1} parent=1 // pred_check_branch
      %3180 = sbr.rel (0) target = $region113
    $region112: #{bert_model_predict.1} parent=1 // pred_region
      %3181 = dma.done [#allocation12], 32
    $region113: #{bert_model_predict.1} parent=1 // pred_fallthru
      _
    %3182 = vsyncpa [#allocation3], 1
    %3183 = vsyncpa [#allocation6], 1
    %3184 = vsyncpa [#allocation9], 1
    %3185 = vsyncpa [#allocation4], 1
    %3186 = vsyncpa [#allocation12], 1

</llo_original>
